<compile_context>
chip_gen: v7x
topology: tpu7x:2x2x1
jax: 0.10.0
libtpu: 0.0.40
codegen_flags: <defaults>
</compile_context>

<pallas_src>
import jax
import jax.numpy as jnp
from jax.experimental import pallas as pl
from jax.experimental.pallas import tpu as pltpu

NEG_SLOPE = 0.01  # nn.LeakyReLU(0.01)


def _lrelu(x):
    return jnp.where(x >= 0, x, NEG_SLOPE * x)


def _shift_m1(x):
    """y[:, l] = x[:, l-1], zero at l=0 (left 'same' pad)."""
    return jnp.concatenate([jnp.zeros_like(x[:, :1]), x[:, :-1]], axis=1)


def _shift_p1(x):
    """y[:, l] = x[:, l+1], zero at l=L-1 (right 'same' pad)."""
    return jnp.concatenate([x[:, 1:], jnp.zeros_like(x[:, :1])], axis=1)


def _conv3(x, w, b):
    """Conv1d(kernel=3, stride=1, padding=1) in (C, L) layout.

    x: (Cin, L); w: (Cout, 3*Cin) with columns ordered [tap0 | tap1 | tap2]
    (tap k, in-channel i at column k*Cin + i); b: (Cout, 1).  Returns (Cout, L).
    """
    cin = x.shape[0]
    x_m1 = _shift_m1(x)
    x_p1 = _shift_p1(x)
    if cin == 1:
        # Stem conv (Cin=1): broadcast multiplies on the VPU, no MXU needed.
        return (w[:, 0:1] * x_m1 + w[:, 1:2] * x + w[:, 2:3] * x_p1) + b
    if cin % 8 == 0:
        # Sublane-aligned channels: single im2col matmul on the MXU.
        xcol = jnp.concatenate([x_m1, x, x_p1], axis=0)            # (3*Cin, L)
        return jnp.dot(w, xcol, preferred_element_type=jnp.float32) + b
    # General fallback: one matmul per tap.
    acc = jnp.dot(w[:, cin:2 * cin], x, preferred_element_type=jnp.float32)
    acc = acc + jnp.dot(w[:, :cin], x_m1, preferred_element_type=jnp.float32)
    acc = acc + jnp.dot(w[:, 2 * cin:], x_p1, preferred_element_type=jnp.float32)
    return acc + b


# ------------------------------ fused kernel -------------------------------

def fused_forward_kernel(x_ref,
                         w1, b1, r1wa, r1ba, r1wb, r1bb,
                         w2, b2, r2wa, r2ba, r2wb, r2bb,
                         fw1, fb1, fw2, fb2,
                         o_ref):
    x = x_ref[0]                                                   # (1, L)

    h = _lrelu(_conv3(x, w1[...], b1[...]))                        # conv1
    t = _lrelu(_conv3(h, r1wa[...], r1ba[...]))                    # rb1.conv1
    h = _lrelu(_conv3(t, r1wb[...], r1bb[...]) + h)                # rb1.conv2+res
    h = _lrelu(_conv3(h, w2[...], b2[...]))                        # conv2
    t = _lrelu(_conv3(h, r2wa[...], r2ba[...]))                    # rb2.conv1
    h = _lrelu(_conv3(t, r2wb[...], r2bb[...]) + h)                # rb2.conv2+res

    # fc1 over the channel-major flatten (== torch x.view(N, -1) on NCL).
    c2 = fw1.shape[0]
    hid = fb1[...]                                                 # (1, 512)
    for c in range(c2):                                            # static unroll
        hid = hid + jnp.dot(h[c:c + 1, :], fw1[c],
                            preferred_element_type=jnp.float32)
    hid = _lrelu(hid)
    o_ref[0] = jnp.dot(hid, fw2[...],
                       preferred_element_type=jnp.float32) + fb2[...]


# ------------------------------ call wrapper -------------------------------

_PARAM_ORDER = ('w1', 'b1', 'r1wa', 'r1ba', 'r1wb', 'r1bb',
                'w2', 'b2', 'r2wa', 'r2ba', 'r2wb', 'r2bb',
                'fw1', 'fb1', 'fw2', 'fb2')


def forward_pallas(x_ncl, p):
    """x_ncl: (N, 1, L) float32 (torch NCL input). Returns (N, 1)."""
    N, cin, L = x_ncl.shape
    assert cin == 1
    weights = [p[k] for k in _PARAM_ORDER]

    def resident(a):
        # Weight stays in VMEM for all grid steps (constant block index).
        if a.ndim == 2:
            return pl.BlockSpec(a.shape, lambda n: (0, 0))
        return pl.BlockSpec(a.shape, lambda n: (0, 0, 0))

    in_specs = [pl.BlockSpec((1, 1, L), lambda n: (n, 0, 0))]
    in_specs += [resident(a) for a in weights]

    out = pl.pallas_call(
        fused_forward_kernel,
        out_shape=jax.ShapeDtypeStruct((N, 1, 1), jnp.float32),
        grid=(N,),
        in_specs=in_specs,
        out_specs=pl.BlockSpec((1, 1, 1), lambda n: (n, 0, 0)),
        compiler_params=pltpu.CompilerParams(
            dimension_semantics=("parallel",)),
    )(x_ncl.astype(jnp.float32), *weights)
    return out.reshape(N, 1)


# ---------------------- pure-JAX reference (torch math) --------------------

def _conv1d_ref(x_ncl, w2d, b):
    cout, k3 = w2d.shape
    cin = k3 // 3
    w_oik = w2d.reshape(cout, 3, cin).transpose(0, 2, 1)           # (O, I, K)
    y = jax.lax.conv_general_dilated(x_ncl, w_oik, window_strides=(1,),
                                     padding=[(1, 1)],
                                     dimension_numbers=('NCH', 'OIH', 'NCH'))
    return y + b.reshape(1, cout, 1)


def forward_ref(x_ncl, p):
    h = _lrelu(_conv1d_ref(x_ncl, p['w1'], p['b1']))
    r = h
    t = _lrelu(_conv1d_ref(h, p['r1wa'], p['r1ba']))
    h = _lrelu(_conv1d_ref(t, p['r1wb'], p['r1bb']) + r)
    h = _lrelu(_conv1d_ref(h, p['w2'], p['b2']))
    r = h
    t = _lrelu(_conv1d_ref(h, p['r2wa'], p['r2ba']))
    h = _lrelu(_conv1d_ref(t, p['r2wb'], p['r2bb']) + r)
    flat = h.reshape(h.shape[0], -1)                               # channel-major
    fw1_2d = p['fw1'].reshape(flat.shape[1], -1)
    hid = _lrelu(flat @ fw1_2d + p['fb1'])
    return hid @ p['fw2'] + p['fb2']


# ---------------------------- deterministic init ---------------------------

def init_params(key, L):
    C1 = min(64, L // 10)
    C2 = min(32, L // 20)
    ks = jax.random.split(key, 16)

    def w(k, shape, fan_in):
        return (jax.random.normal(k, shape, jnp.float32)
                / jnp.sqrt(jnp.float32(fan_in)))

    p = {
        'w1':   w(ks[0],  (C1, 3 * 1), 3),        'b1':   w(ks[1],  (C1, 1), 3),
        'r1wa': w(ks[2],  (C1, 3 * C1), 3 * C1),  'r1ba': w(ks[3],  (C1, 1), 3 * C1),
        'r1wb': w(ks[4],  (C1, 3 * C1), 3 * C1),  'r1bb': w(ks[5],  (C1, 1), 3 * C1),
        'w2':   w(ks[6],  (C2, 3 * C1), 3 * C1),  'b2':   w(ks[7],  (C2, 1), 3 * C1),
        'r2wa': w(ks[8],  (C2, 3 * C2), 3 * C2),  'r2ba': w(ks[9],  (C2, 1), 3 * C2),
        'r2wb': w(ks[10], (C2, 3 * C2), 3 * C2),  'r2bb': w(ks[11], (C2, 1), 3 * C2),
        'fw1':  w(ks[12], (C2, L, 512), C2 * L),  'fb1':  w(ks[13], (1, 512), C2 * L),
        'fw2':  w(ks[14], (512, 1), 512),         'fb2':  w(ks[15], (1, 1), 512),
    }
    return p, C1, C2


if __name__ == "__main__":
    L = 160   # input_size -> conv1 channels = 16, conv2 channels = 8, to_linear = 1280
    N = 2

    key = jax.random.PRNGKey(0)
    kx, kp = jax.random.split(key)
    x = jax.random.normal(kx, (N, 1, L), jnp.float32)   # (batch, 1, input_size), torch NCL
    params, C1, C2 = init_params(kp, L)

    out = jax.block_until_ready(forward_pallas(x, params))
    ref = forward_ref(x, params)

    assert out.shape == (N, 1), out.shape
    if not jnp.allclose(out, ref, atol=1e-3, rtol=1e-3):
        raise AssertionError(f"Pallas output mismatch:\n{out}\nvs ref\n{ref}")
    print("KERNEL_OK")
</pallas_src>

<mosaic_0001>
module attributes {stable_mosaic.version = 11 : i64} {
  func.func @fused_forward_kernel(%arg0: i32, %arg1: memref<1x1x160xf32, #tpu.memory_space<vmem>>, %arg2: memref<16x3xf32, #tpu.memory_space<vmem>>, %arg3: memref<16x1xf32, #tpu.memory_space<vmem>>, %arg4: memref<16x48xf32, #tpu.memory_space<vmem>>, %arg5: memref<16x1xf32, #tpu.memory_space<vmem>>, %arg6: memref<16x48xf32, #tpu.memory_space<vmem>>, %arg7: memref<16x1xf32, #tpu.memory_space<vmem>>, %arg8: memref<8x48xf32, #tpu.memory_space<vmem>>, %arg9: memref<8x1xf32, #tpu.memory_space<vmem>>, %arg10: memref<8x24xf32, #tpu.memory_space<vmem>>, %arg11: memref<8x1xf32, #tpu.memory_space<vmem>>, %arg12: memref<8x24xf32, #tpu.memory_space<vmem>>, %arg13: memref<8x1xf32, #tpu.memory_space<vmem>>, %arg14: memref<8x160x512xf32, #tpu.memory_space<vmem>>, %arg15: memref<1x512xf32, #tpu.memory_space<vmem>>, %arg16: memref<512x1xf32, #tpu.memory_space<vmem>>, %arg17: memref<1x1xf32, #tpu.memory_space<vmem>>, %arg18: memref<1x1x1xf32, #tpu.memory_space<vmem>>) attributes {dimension_semantics = [#tpu.dimension_semantics<parallel>], iteration_bounds = array<i64: 2>, scalar_prefetch = 0 : i64, scratch_operands = 0 : i64, tpu.core_type = #tpu.core_type<tc>, window_params = [{transform_indices = @transform_0, window_bounds = array<i64: 1, 1, 160>}, {pipeline_mode = #tpu.pipeline_mode<synchronous>, transform_indices = @transform_1, window_bounds = array<i64: 16, 3>}, {pipeline_mode = #tpu.pipeline_mode<synchronous>, transform_indices = @transform_2, window_bounds = array<i64: 16, 1>}, {pipeline_mode = #tpu.pipeline_mode<synchronous>, transform_indices = @transform_3, window_bounds = array<i64: 16, 48>}, {pipeline_mode = #tpu.pipeline_mode<synchronous>, transform_indices = @transform_4, window_bounds = array<i64: 16, 1>}, {pipeline_mode = #tpu.pipeline_mode<synchronous>, transform_indices = @transform_5, window_bounds = array<i64: 16, 48>}, {pipeline_mode = #tpu.pipeline_mode<synchronous>, transform_indices = @transform_6, window_bounds = array<i64: 16, 1>}, {pipeline_mode = #tpu.pipeline_mode<synchronous>, transform_indices = @transform_7, window_bounds = array<i64: 8, 48>}, {pipeline_mode = #tpu.pipeline_mode<synchronous>, transform_indices = @transform_8, window_bounds = array<i64: 8, 1>}, {pipeline_mode = #tpu.pipeline_mode<synchronous>, transform_indices = @transform_9, window_bounds = array<i64: 8, 24>}, {pipeline_mode = #tpu.pipeline_mode<synchronous>, transform_indices = @transform_10, window_bounds = array<i64: 8, 1>}, {pipeline_mode = #tpu.pipeline_mode<synchronous>, transform_indices = @transform_11, window_bounds = array<i64: 8, 24>}, {pipeline_mode = #tpu.pipeline_mode<synchronous>, transform_indices = @transform_12, window_bounds = array<i64: 8, 1>}, {pipeline_mode = #tpu.pipeline_mode<synchronous>, transform_indices = @transform_13, window_bounds = array<i64: 8, 160, 512>}, {pipeline_mode = #tpu.pipeline_mode<synchronous>, transform_indices = @transform_14, window_bounds = array<i64: 1, 512>}, {pipeline_mode = #tpu.pipeline_mode<synchronous>, transform_indices = @transform_15, window_bounds = array<i64: 512, 1>}, {pipeline_mode = #tpu.pipeline_mode<synchronous>, transform_indices = @transform_16, window_bounds = array<i64: 1, 1>}, {transform_indices = @transform_17, window_bounds = array<i64: 1, 1, 1>}]} {
    %c0 = arith.constant 0 : index
    %c0_0 = arith.constant 0 : index
    %c0_1 = arith.constant 0 : index
    %0 = vector.load %arg1[%c0, %c0_0, %c0_1] : memref<1x1x160xf32, #tpu.memory_space<vmem>>, vector<1x1x160xf32>
    %1 = vector.shape_cast %0 : vector<1x1x160xf32> to vector<1x160xf32>
    %c0_2 = arith.constant 0 : index
    %c0_3 = arith.constant 0 : index
    %2 = vector.load %arg2[%c0_2, %c0_3] : memref<16x3xf32, #tpu.memory_space<vmem>>, vector<16x3xf32>
    %c0_4 = arith.constant 0 : index
    %c0_5 = arith.constant 0 : index
    %3 = vector.load %arg3[%c0_4, %c0_5] : memref<16x1xf32, #tpu.memory_space<vmem>>, vector<16x1xf32>
    %cst = arith.constant 0.000000e+00 : f32
    %4 = vector.broadcast %cst : f32 to vector<1x1xf32>
    %5 = vector.extract_strided_slice %1 {offsets = [0, 0], sizes = [1, 159], strides = [1, 1]} : vector<1x160xf32> to vector<1x159xf32>
    %6 = tpu.concatenate %4, %5 in 1 : vector<1x1xf32>, vector<1x159xf32> -> vector<1x160xf32>
    %7 = vector.extract_strided_slice %1 {offsets = [0, 1], sizes = [1, 159], strides = [1, 1]} : vector<1x160xf32> to vector<1x159xf32>
    %cst_6 = arith.constant 0.000000e+00 : f32
    %8 = vector.broadcast %cst_6 : f32 to vector<1x1xf32>
    %9 = tpu.concatenate %7, %8 in 1 : vector<1x159xf32>, vector<1x1xf32> -> vector<1x160xf32>
    %10 = vector.extract_strided_slice %2 {offsets = [0, 0], sizes = [16, 1], strides = [1, 1]} : vector<16x3xf32> to vector<16x1xf32>
    %11 = vector.broadcast %10 : vector<16x1xf32> to vector<16x160xf32>
    %12 = vector.broadcast %6 : vector<1x160xf32> to vector<16x160xf32>
    %13 = arith.mulf %11, %12 : vector<16x160xf32>
    %14 = vector.extract_strided_slice %2 {offsets = [0, 1], sizes = [16, 1], strides = [1, 1]} : vector<16x3xf32> to vector<16x1xf32>
    %15 = vector.broadcast %14 : vector<16x1xf32> to vector<16x160xf32>
    %16 = vector.broadcast %1 : vector<1x160xf32> to vector<16x160xf32>
    %17 = arith.mulf %15, %16 : vector<16x160xf32>
    %18 = arith.addf %13, %17 : vector<16x160xf32>
    %19 = vector.extract_strided_slice %2 {offsets = [0, 2], sizes = [16, 1], strides = [1, 1]} : vector<16x3xf32> to vector<16x1xf32>
    %20 = vector.broadcast %19 : vector<16x1xf32> to vector<16x160xf32>
    %21 = vector.broadcast %9 : vector<1x160xf32> to vector<16x160xf32>
    %22 = arith.mulf %20, %21 : vector<16x160xf32>
    %23 = arith.addf %18, %22 : vector<16x160xf32>
    %24 = vector.broadcast %3 : vector<16x1xf32> to vector<16x160xf32>
    %25 = arith.addf %23, %24 : vector<16x160xf32>
    %cst_7 = arith.constant 0.000000e+00 : f32
    %26 = vector.broadcast %cst_7 : f32 to vector<16x160xf32>
    %27 = arith.cmpf oge, %25, %26 : vector<16x160xf32>
    %cst_8 = arith.constant 0.00999999977 : f32
    %28 = vector.broadcast %cst_8 : f32 to vector<16x160xf32>
    %29 = arith.mulf %28, %25 : vector<16x160xf32>
    %30 = arith.select %27, %25, %29 : vector<16x160xi1>, vector<16x160xf32>
    %c0_9 = arith.constant 0 : index
    %c0_10 = arith.constant 0 : index
    %31 = vector.load %arg4[%c0_9, %c0_10] : memref<16x48xf32, #tpu.memory_space<vmem>>, vector<16x48xf32>
    %c0_11 = arith.constant 0 : index
    %c0_12 = arith.constant 0 : index
    %32 = vector.load %arg5[%c0_11, %c0_12] : memref<16x1xf32, #tpu.memory_space<vmem>>, vector<16x1xf32>
    %cst_13 = arith.constant 0.000000e+00 : f32
    %33 = vector.broadcast %cst_13 : f32 to vector<16x1xf32>
    %34 = vector.extract_strided_slice %30 {offsets = [0, 0], sizes = [16, 159], strides = [1, 1]} : vector<16x160xf32> to vector<16x159xf32>
    %35 = tpu.concatenate %33, %34 in 1 : vector<16x1xf32>, vector<16x159xf32> -> vector<16x160xf32>
    %36 = vector.extract_strided_slice %30 {offsets = [0, 1], sizes = [16, 159], strides = [1, 1]} : vector<16x160xf32> to vector<16x159xf32>
    %cst_14 = arith.constant 0.000000e+00 : f32
    %37 = vector.broadcast %cst_14 : f32 to vector<16x1xf32>
    %38 = tpu.concatenate %36, %37 in 1 : vector<16x159xf32>, vector<16x1xf32> -> vector<16x160xf32>
    %39 = tpu.concatenate %35, %30, %38 in 0 : vector<16x160xf32>, vector<16x160xf32>, vector<16x160xf32> -> vector<48x160xf32>
    %cst_15 = arith.constant dense<0.000000e+00> : vector<16x160xf32>
    %40 = tpu.matmul %31, %39, %cst_15 {dimension_numbers = #tpu.dot_dimension_numbers<[1], [0], [0], [1], [0, 0, 1, 1], [], []>} : vector<16x48xf32>, vector<48x160xf32>, vector<16x160xf32> -> vector<16x160xf32>
    %41 = vector.broadcast %32 : vector<16x1xf32> to vector<16x160xf32>
    %42 = arith.addf %40, %41 : vector<16x160xf32>
    %cst_16 = arith.constant 0.000000e+00 : f32
    %43 = vector.broadcast %cst_16 : f32 to vector<16x160xf32>
    %44 = arith.cmpf oge, %42, %43 : vector<16x160xf32>
    %cst_17 = arith.constant 0.00999999977 : f32
    %45 = vector.broadcast %cst_17 : f32 to vector<16x160xf32>
    %46 = arith.mulf %45, %42 : vector<16x160xf32>
    %47 = arith.select %44, %42, %46 : vector<16x160xi1>, vector<16x160xf32>
    %c0_18 = arith.constant 0 : index
    %c0_19 = arith.constant 0 : index
    %48 = vector.load %arg6[%c0_18, %c0_19] : memref<16x48xf32, #tpu.memory_space<vmem>>, vector<16x48xf32>
    %c0_20 = arith.constant 0 : index
    %c0_21 = arith.constant 0 : index
    %49 = vector.load %arg7[%c0_20, %c0_21] : memref<16x1xf32, #tpu.memory_space<vmem>>, vector<16x1xf32>
    %cst_22 = arith.constant 0.000000e+00 : f32
    %50 = vector.broadcast %cst_22 : f32 to vector<16x1xf32>
    %51 = vector.extract_strided_slice %47 {offsets = [0, 0], sizes = [16, 159], strides = [1, 1]} : vector<16x160xf32> to vector<16x159xf32>
    %52 = tpu.concatenate %50, %51 in 1 : vector<16x1xf32>, vector<16x159xf32> -> vector<16x160xf32>
    %53 = vector.extract_strided_slice %47 {offsets = [0, 1], sizes = [16, 159], strides = [1, 1]} : vector<16x160xf32> to vector<16x159xf32>
    %cst_23 = arith.constant 0.000000e+00 : f32
    %54 = vector.broadcast %cst_23 : f32 to vector<16x1xf32>
    %55 = tpu.concatenate %53, %54 in 1 : vector<16x159xf32>, vector<16x1xf32> -> vector<16x160xf32>
    %56 = tpu.concatenate %52, %47, %55 in 0 : vector<16x160xf32>, vector<16x160xf32>, vector<16x160xf32> -> vector<48x160xf32>
    %cst_24 = arith.constant dense<0.000000e+00> : vector<16x160xf32>
    %57 = tpu.matmul %48, %56, %cst_24 {dimension_numbers = #tpu.dot_dimension_numbers<[1], [0], [0], [1], [0, 0, 1, 1], [], []>} : vector<16x48xf32>, vector<48x160xf32>, vector<16x160xf32> -> vector<16x160xf32>
    %58 = vector.broadcast %49 : vector<16x1xf32> to vector<16x160xf32>
    %59 = arith.addf %57, %58 : vector<16x160xf32>
    %60 = arith.addf %59, %30 : vector<16x160xf32>
    %cst_25 = arith.constant 0.000000e+00 : f32
    %61 = vector.broadcast %cst_25 : f32 to vector<16x160xf32>
    %62 = arith.cmpf oge, %60, %61 : vector<16x160xf32>
    %cst_26 = arith.constant 0.00999999977 : f32
    %63 = vector.broadcast %cst_26 : f32 to vector<16x160xf32>
    %64 = arith.mulf %63, %60 : vector<16x160xf32>
    %65 = arith.select %62, %60, %64 : vector<16x160xi1>, vector<16x160xf32>
    %c0_27 = arith.constant 0 : index
    %c0_28 = arith.constant 0 : index
    %66 = vector.load %arg8[%c0_27, %c0_28] : memref<8x48xf32, #tpu.memory_space<vmem>>, vector<8x48xf32>
    %c0_29 = arith.constant 0 : index
    %c0_30 = arith.constant 0 : index
    %67 = vector.load %arg9[%c0_29, %c0_30] : memref<8x1xf32, #tpu.memory_space<vmem>>, vector<8x1xf32>
    %cst_31 = arith.constant 0.000000e+00 : f32
    %68 = vector.broadcast %cst_31 : f32 to vector<16x1xf32>
    %69 = vector.extract_strided_slice %65 {offsets = [0, 0], sizes = [16, 159], strides = [1, 1]} : vector<16x160xf32> to vector<16x159xf32>
    %70 = tpu.concatenate %68, %69 in 1 : vector<16x1xf32>, vector<16x159xf32> -> vector<16x160xf32>
    %71 = vector.extract_strided_slice %65 {offsets = [0, 1], sizes = [16, 159], strides = [1, 1]} : vector<16x160xf32> to vector<16x159xf32>
    %cst_32 = arith.constant 0.000000e+00 : f32
    %72 = vector.broadcast %cst_32 : f32 to vector<16x1xf32>
    %73 = tpu.concatenate %71, %72 in 1 : vector<16x159xf32>, vector<16x1xf32> -> vector<16x160xf32>
    %74 = tpu.concatenate %70, %65, %73 in 0 : vector<16x160xf32>, vector<16x160xf32>, vector<16x160xf32> -> vector<48x160xf32>
    %cst_33 = arith.constant dense<0.000000e+00> : vector<8x160xf32>
    %75 = tpu.matmul %66, %74, %cst_33 {dimension_numbers = #tpu.dot_dimension_numbers<[1], [0], [0], [1], [0, 0, 1, 1], [], []>} : vector<8x48xf32>, vector<48x160xf32>, vector<8x160xf32> -> vector<8x160xf32>
    %76 = vector.broadcast %67 : vector<8x1xf32> to vector<8x160xf32>
    %77 = arith.addf %75, %76 : vector<8x160xf32>
    %cst_34 = arith.constant 0.000000e+00 : f32
    %78 = vector.broadcast %cst_34 : f32 to vector<8x160xf32>
    %79 = arith.cmpf oge, %77, %78 : vector<8x160xf32>
    %cst_35 = arith.constant 0.00999999977 : f32
    %80 = vector.broadcast %cst_35 : f32 to vector<8x160xf32>
    %81 = arith.mulf %80, %77 : vector<8x160xf32>
    %82 = arith.select %79, %77, %81 : vector<8x160xi1>, vector<8x160xf32>
    %c0_36 = arith.constant 0 : index
    %c0_37 = arith.constant 0 : index
    %83 = vector.load %arg10[%c0_36, %c0_37] : memref<8x24xf32, #tpu.memory_space<vmem>>, vector<8x24xf32>
    %c0_38 = arith.constant 0 : index
    %c0_39 = arith.constant 0 : index
    %84 = vector.load %arg11[%c0_38, %c0_39] : memref<8x1xf32, #tpu.memory_space<vmem>>, vector<8x1xf32>
    %cst_40 = arith.constant 0.000000e+00 : f32
    %85 = vector.broadcast %cst_40 : f32 to vector<8x1xf32>
    %86 = vector.extract_strided_slice %82 {offsets = [0, 0], sizes = [8, 159], strides = [1, 1]} : vector<8x160xf32> to vector<8x159xf32>
    %87 = tpu.concatenate %85, %86 in 1 : vector<8x1xf32>, vector<8x159xf32> -> vector<8x160xf32>
    %88 = vector.extract_strided_slice %82 {offsets = [0, 1], sizes = [8, 159], strides = [1, 1]} : vector<8x160xf32> to vector<8x159xf32>
    %cst_41 = arith.constant 0.000000e+00 : f32
    %89 = vector.broadcast %cst_41 : f32 to vector<8x1xf32>
    %90 = tpu.concatenate %88, %89 in 1 : vector<8x159xf32>, vector<8x1xf32> -> vector<8x160xf32>
    %91 = tpu.concatenate %87, %82, %90 in 0 : vector<8x160xf32>, vector<8x160xf32>, vector<8x160xf32> -> vector<24x160xf32>
    %cst_42 = arith.constant dense<0.000000e+00> : vector<8x160xf32>
    %92 = tpu.matmul %83, %91, %cst_42 {dimension_numbers = #tpu.dot_dimension_numbers<[1], [0], [0], [1], [0, 0, 1, 1], [], []>} : vector<8x24xf32>, vector<24x160xf32>, vector<8x160xf32> -> vector<8x160xf32>
    %93 = vector.broadcast %84 : vector<8x1xf32> to vector<8x160xf32>
    %94 = arith.addf %92, %93 : vector<8x160xf32>
    %cst_43 = arith.constant 0.000000e+00 : f32
    %95 = vector.broadcast %cst_43 : f32 to vector<8x160xf32>
    %96 = arith.cmpf oge, %94, %95 : vector<8x160xf32>
    %cst_44 = arith.constant 0.00999999977 : f32
    %97 = vector.broadcast %cst_44 : f32 to vector<8x160xf32>
    %98 = arith.mulf %97, %94 : vector<8x160xf32>
    %99 = arith.select %96, %94, %98 : vector<8x160xi1>, vector<8x160xf32>
    %c0_45 = arith.constant 0 : index
    %c0_46 = arith.constant 0 : index
    %100 = vector.load %arg12[%c0_45, %c0_46] : memref<8x24xf32, #tpu.memory_space<vmem>>, vector<8x24xf32>
    %c0_47 = arith.constant 0 : index
    %c0_48 = arith.constant 0 : index
    %101 = vector.load %arg13[%c0_47, %c0_48] : memref<8x1xf32, #tpu.memory_space<vmem>>, vector<8x1xf32>
    %cst_49 = arith.constant 0.000000e+00 : f32
    %102 = vector.broadcast %cst_49 : f32 to vector<8x1xf32>
    %103 = vector.extract_strided_slice %99 {offsets = [0, 0], sizes = [8, 159], strides = [1, 1]} : vector<8x160xf32> to vector<8x159xf32>
    %104 = tpu.concatenate %102, %103 in 1 : vector<8x1xf32>, vector<8x159xf32> -> vector<8x160xf32>
    %105 = vector.extract_strided_slice %99 {offsets = [0, 1], sizes = [8, 159], strides = [1, 1]} : vector<8x160xf32> to vector<8x159xf32>
    %cst_50 = arith.constant 0.000000e+00 : f32
    %106 = vector.broadcast %cst_50 : f32 to vector<8x1xf32>
    %107 = tpu.concatenate %105, %106 in 1 : vector<8x159xf32>, vector<8x1xf32> -> vector<8x160xf32>
    %108 = tpu.concatenate %104, %99, %107 in 0 : vector<8x160xf32>, vector<8x160xf32>, vector<8x160xf32> -> vector<24x160xf32>
    %cst_51 = arith.constant dense<0.000000e+00> : vector<8x160xf32>
    %109 = tpu.matmul %100, %108, %cst_51 {dimension_numbers = #tpu.dot_dimension_numbers<[1], [0], [0], [1], [0, 0, 1, 1], [], []>} : vector<8x24xf32>, vector<24x160xf32>, vector<8x160xf32> -> vector<8x160xf32>
    %110 = vector.broadcast %101 : vector<8x1xf32> to vector<8x160xf32>
    %111 = arith.addf %109, %110 : vector<8x160xf32>
    %112 = arith.addf %111, %82 : vector<8x160xf32>
    %cst_52 = arith.constant 0.000000e+00 : f32
    %113 = vector.broadcast %cst_52 : f32 to vector<8x160xf32>
    %114 = arith.cmpf oge, %112, %113 : vector<8x160xf32>
    %cst_53 = arith.constant 0.00999999977 : f32
    %115 = vector.broadcast %cst_53 : f32 to vector<8x160xf32>
    %116 = arith.mulf %115, %112 : vector<8x160xf32>
    %117 = arith.select %114, %112, %116 : vector<8x160xi1>, vector<8x160xf32>
    %c0_54 = arith.constant 0 : index
    %c0_55 = arith.constant 0 : index
    %118 = vector.load %arg15[%c0_54, %c0_55] : memref<1x512xf32, #tpu.memory_space<vmem>>, vector<1x512xf32>
    %119 = vector.extract_strided_slice %117 {offsets = [0, 0], sizes = [1, 160], strides = [1, 1]} : vector<8x160xf32> to vector<1x160xf32>
    %c0_56 = arith.constant 0 : index
    %c0_57 = arith.constant 0 : index
    %c0_58 = arith.constant 0 : index
    %120 = vector.load %arg14[%c0_56, %c0_57, %c0_58] : memref<8x160x512xf32, #tpu.memory_space<vmem>>, vector<1x160x512xf32>
    %121 = vector.shape_cast %120 : vector<1x160x512xf32> to vector<160x512xf32>
    %cst_59 = arith.constant dense<0.000000e+00> : vector<1x512xf32>
    %122 = tpu.matmul %119, %121, %cst_59 {dimension_numbers = #tpu.dot_dimension_numbers<[1], [0], [0], [1], [0, 0, 1, 1], [], []>} : vector<1x160xf32>, vector<160x512xf32>, vector<1x512xf32> -> vector<1x512xf32>
    %123 = arith.addf %118, %122 : vector<1x512xf32>
    %124 = vector.extract_strided_slice %117 {offsets = [1, 0], sizes = [1, 160], strides = [1, 1]} : vector<8x160xf32> to vector<1x160xf32>
    %c1 = arith.constant 1 : index
    %c0_60 = arith.constant 0 : index
    %c0_61 = arith.constant 0 : index
    %125 = vector.load %arg14[%c1, %c0_60, %c0_61] : memref<8x160x512xf32, #tpu.memory_space<vmem>>, vector<1x160x512xf32>
    %126 = vector.shape_cast %125 : vector<1x160x512xf32> to vector<160x512xf32>
    %cst_62 = arith.constant dense<0.000000e+00> : vector<1x512xf32>
    %127 = tpu.matmul %124, %126, %cst_62 {dimension_numbers = #tpu.dot_dimension_numbers<[1], [0], [0], [1], [0, 0, 1, 1], [], []>} : vector<1x160xf32>, vector<160x512xf32>, vector<1x512xf32> -> vector<1x512xf32>
    %128 = arith.addf %123, %127 : vector<1x512xf32>
    %129 = vector.extract_strided_slice %117 {offsets = [2, 0], sizes = [1, 160], strides = [1, 1]} : vector<8x160xf32> to vector<1x160xf32>
    %c2 = arith.constant 2 : index
    %c0_63 = arith.constant 0 : index
    %c0_64 = arith.constant 0 : index
    %130 = vector.load %arg14[%c2, %c0_63, %c0_64] : memref<8x160x512xf32, #tpu.memory_space<vmem>>, vector<1x160x512xf32>
    %131 = vector.shape_cast %130 : vector<1x160x512xf32> to vector<160x512xf32>
    %cst_65 = arith.constant dense<0.000000e+00> : vector<1x512xf32>
    %132 = tpu.matmul %129, %131, %cst_65 {dimension_numbers = #tpu.dot_dimension_numbers<[1], [0], [0], [1], [0, 0, 1, 1], [], []>} : vector<1x160xf32>, vector<160x512xf32>, vector<1x512xf32> -> vector<1x512xf32>
    %133 = arith.addf %128, %132 : vector<1x512xf32>
    %134 = vector.extract_strided_slice %117 {offsets = [3, 0], sizes = [1, 160], strides = [1, 1]} : vector<8x160xf32> to vector<1x160xf32>
    %c3 = arith.constant 3 : index
    %c0_66 = arith.constant 0 : index
    %c0_67 = arith.constant 0 : index
    %135 = vector.load %arg14[%c3, %c0_66, %c0_67] : memref<8x160x512xf32, #tpu.memory_space<vmem>>, vector<1x160x512xf32>
    %136 = vector.shape_cast %135 : vector<1x160x512xf32> to vector<160x512xf32>
    %cst_68 = arith.constant dense<0.000000e+00> : vector<1x512xf32>
    %137 = tpu.matmul %134, %136, %cst_68 {dimension_numbers = #tpu.dot_dimension_numbers<[1], [0], [0], [1], [0, 0, 1, 1], [], []>} : vector<1x160xf32>, vector<160x512xf32>, vector<1x512xf32> -> vector<1x512xf32>
    %138 = arith.addf %133, %137 : vector<1x512xf32>
    %139 = vector.extract_strided_slice %117 {offsets = [4, 0], sizes = [1, 160], strides = [1, 1]} : vector<8x160xf32> to vector<1x160xf32>
    %c4 = arith.constant 4 : index
    %c0_69 = arith.constant 0 : index
    %c0_70 = arith.constant 0 : index
    %140 = vector.load %arg14[%c4, %c0_69, %c0_70] : memref<8x160x512xf32, #tpu.memory_space<vmem>>, vector<1x160x512xf32>
    %141 = vector.shape_cast %140 : vector<1x160x512xf32> to vector<160x512xf32>
    %cst_71 = arith.constant dense<0.000000e+00> : vector<1x512xf32>
    %142 = tpu.matmul %139, %141, %cst_71 {dimension_numbers = #tpu.dot_dimension_numbers<[1], [0], [0], [1], [0, 0, 1, 1], [], []>} : vector<1x160xf32>, vector<160x512xf32>, vector<1x512xf32> -> vector<1x512xf32>
    %143 = arith.addf %138, %142 : vector<1x512xf32>
    %144 = vector.extract_strided_slice %117 {offsets = [5, 0], sizes = [1, 160], strides = [1, 1]} : vector<8x160xf32> to vector<1x160xf32>
    %c5 = arith.constant 5 : index
    %c0_72 = arith.constant 0 : index
    %c0_73 = arith.constant 0 : index
    %145 = vector.load %arg14[%c5, %c0_72, %c0_73] : memref<8x160x512xf32, #tpu.memory_space<vmem>>, vector<1x160x512xf32>
    %146 = vector.shape_cast %145 : vector<1x160x512xf32> to vector<160x512xf32>
    %cst_74 = arith.constant dense<0.000000e+00> : vector<1x512xf32>
    %147 = tpu.matmul %144, %146, %cst_74 {dimension_numbers = #tpu.dot_dimension_numbers<[1], [0], [0], [1], [0, 0, 1, 1], [], []>} : vector<1x160xf32>, vector<160x512xf32>, vector<1x512xf32> -> vector<1x512xf32>
    %148 = arith.addf %143, %147 : vector<1x512xf32>
    %149 = vector.extract_strided_slice %117 {offsets = [6, 0], sizes = [1, 160], strides = [1, 1]} : vector<8x160xf32> to vector<1x160xf32>
    %c6 = arith.constant 6 : index
    %c0_75 = arith.constant 0 : index
    %c0_76 = arith.constant 0 : index
    %150 = vector.load %arg14[%c6, %c0_75, %c0_76] : memref<8x160x512xf32, #tpu.memory_space<vmem>>, vector<1x160x512xf32>
    %151 = vector.shape_cast %150 : vector<1x160x512xf32> to vector<160x512xf32>
    %cst_77 = arith.constant dense<0.000000e+00> : vector<1x512xf32>
    %152 = tpu.matmul %149, %151, %cst_77 {dimension_numbers = #tpu.dot_dimension_numbers<[1], [0], [0], [1], [0, 0, 1, 1], [], []>} : vector<1x160xf32>, vector<160x512xf32>, vector<1x512xf32> -> vector<1x512xf32>
    %153 = arith.addf %148, %152 : vector<1x512xf32>
    %154 = vector.extract_strided_slice %117 {offsets = [7, 0], sizes = [1, 160], strides = [1, 1]} : vector<8x160xf32> to vector<1x160xf32>
    %c7 = arith.constant 7 : index
    %c0_78 = arith.constant 0 : index
    %c0_79 = arith.constant 0 : index
    %155 = vector.load %arg14[%c7, %c0_78, %c0_79] : memref<8x160x512xf32, #tpu.memory_space<vmem>>, vector<1x160x512xf32>
    %156 = vector.shape_cast %155 : vector<1x160x512xf32> to vector<160x512xf32>
    %cst_80 = arith.constant dense<0.000000e+00> : vector<1x512xf32>
    %157 = tpu.matmul %154, %156, %cst_80 {dimension_numbers = #tpu.dot_dimension_numbers<[1], [0], [0], [1], [0, 0, 1, 1], [], []>} : vector<1x160xf32>, vector<160x512xf32>, vector<1x512xf32> -> vector<1x512xf32>
    %158 = arith.addf %153, %157 : vector<1x512xf32>
    %cst_81 = arith.constant 0.000000e+00 : f32
    %159 = vector.broadcast %cst_81 : f32 to vector<1x512xf32>
    %160 = arith.cmpf oge, %158, %159 : vector<1x512xf32>
    %cst_82 = arith.constant 0.00999999977 : f32
    %161 = vector.broadcast %cst_82 : f32 to vector<1x512xf32>
    %162 = arith.mulf %161, %158 : vector<1x512xf32>
    %163 = arith.select %160, %158, %162 : vector<1x512xi1>, vector<1x512xf32>
    %c0_83 = arith.constant 0 : index
    %c0_84 = arith.constant 0 : index
    %164 = vector.load %arg16[%c0_83, %c0_84] : memref<512x1xf32, #tpu.memory_space<vmem>>, vector<512x1xf32>
    %cst_85 = arith.constant dense<0.000000e+00> : vector<1x1xf32>
    %165 = tpu.matmul %163, %164, %cst_85 {dimension_numbers = #tpu.dot_dimension_numbers<[1], [0], [0], [1], [0, 0, 1, 1], [], []>} : vector<1x512xf32>, vector<512x1xf32>, vector<1x1xf32> -> vector<1x1xf32>
    %c0_86 = arith.constant 0 : index
    %c0_87 = arith.constant 0 : index
    %166 = vector.load %arg17[%c0_86, %c0_87] : memref<1x1xf32, #tpu.memory_space<vmem>>, vector<1x1xf32>
    %167 = arith.addf %165, %166 : vector<1x1xf32>
    %c0_88 = arith.constant 0 : index
    %c0_89 = arith.constant 0 : index
    %c0_90 = arith.constant 0 : index
    %168 = vector.load %arg18[%c0_88, %c0_89, %c0_90] : memref<1x1x1xf32, #tpu.memory_space<vmem>>, vector<1x1x1xf32>
    %169 = vector.shape_cast %168 : vector<1x1x1xf32> to vector<1x1xf32>
    %170 = vector.shape_cast %167 : vector<1x1xf32> to vector<1x1x1xf32>
    tpu.vector_store %arg18[%c0_88, %c0_89, %c0_90], %170 {strides = array<i32>} : memref<1x1x1xf32, #tpu.memory_space<vmem>>, vector<1x1x1xf32>,
    return
  }
  func.func @transform_0(%arg0: i32) -> (i32, i32, i32) {
    %c0_i32 = arith.constant 0 : i32
    %c0_i32_0 = arith.constant 0 : i32
    %c0_i32_1 = arith.constant 0 : i32
    return %arg0, %c0_i32, %c0_i32_0 : i32, i32, i32
  }
  func.func @transform_1(%arg0: i32) -> (i32, i32) {
    %c0_i32 = arith.constant 0 : i32
    %c0_i32_0 = arith.constant 0 : i32
    %c0_i32_1 = arith.constant 0 : i32
    return %c0_i32, %c0_i32_0 : i32, i32
  }
  func.func @transform_2(%arg0: i32) -> (i32, i32) {
    %c0_i32 = arith.constant 0 : i32
    %c0_i32_0 = arith.constant 0 : i32
    %c0_i32_1 = arith.constant 0 : i32
    return %c0_i32, %c0_i32_0 : i32, i32
  }
  func.func @transform_3(%arg0: i32) -> (i32, i32) {
    %c0_i32 = arith.constant 0 : i32
    %c0_i32_0 = arith.constant 0 : i32
    %c0_i32_1 = arith.constant 0 : i32
    return %c0_i32, %c0_i32_0 : i32, i32
  }
  func.func @transform_4(%arg0: i32) -> (i32, i32) {
    %c0_i32 = arith.constant 0 : i32
    %c0_i32_0 = arith.constant 0 : i32
    %c0_i32_1 = arith.constant 0 : i32
    return %c0_i32, %c0_i32_0 : i32, i32
  }
  func.func @transform_5(%arg0: i32) -> (i32, i32) {
    %c0_i32 = arith.constant 0 : i32
    %c0_i32_0 = arith.constant 0 : i32
    %c0_i32_1 = arith.constant 0 : i32
    return %c0_i32, %c0_i32_0 : i32, i32
  }
  func.func @transform_6(%arg0: i32) -> (i32, i32) {
    %c0_i32 = arith.constant 0 : i32
    %c0_i32_0 = arith.constant 0 : i32
    %c0_i32_1 = arith.constant 0 : i32
    return %c0_i32, %c0_i32_0 : i32, i32
  }
  func.func @transform_7(%arg0: i32) -> (i32, i32) {
    %c0_i32 = arith.constant 0 : i32
    %c0_i32_0 = arith.constant 0 : i32
    %c0_i32_1 = arith.constant 0 : i32
    return %c0_i32, %c0_i32_0 : i32, i32
  }
  func.func @transform_8(%arg0: i32) -> (i32, i32) {
    %c0_i32 = arith.constant 0 : i32
    %c0_i32_0 = arith.constant 0 : i32
    %c0_i32_1 = arith.constant 0 : i32
    return %c0_i32, %c0_i32_0 : i32, i32
  }
  func.func @transform_9(%arg0: i32) -> (i32, i32) {
    %c0_i32 = arith.constant 0 : i32
    %c0_i32_0 = arith.constant 0 : i32
    %c0_i32_1 = arith.constant 0 : i32
    return %c0_i32, %c0_i32_0 : i32, i32
  }
  func.func @transform_10(%arg0: i32) -> (i32, i32) {
    %c0_i32 = arith.constant 0 : i32
    %c0_i32_0 = arith.constant 0 : i32
    %c0_i32_1 = arith.constant 0 : i32
    return %c0_i32, %c0_i32_0 : i32, i32
  }
  func.func @transform_11(%arg0: i32) -> (i32, i32) {
    %c0_i32 = arith.constant 0 : i32
    %c0_i32_0 = arith.constant 0 : i32
    %c0_i32_1 = arith.constant 0 : i32
    return %c0_i32, %c0_i32_0 : i32, i32
  }
  func.func @transform_12(%arg0: i32) -> (i32, i32) {
    %c0_i32 = arith.constant 0 : i32
    %c0_i32_0 = arith.constant 0 : i32
    %c0_i32_1 = arith.constant 0 : i32
    return %c0_i32, %c0_i32_0 : i32, i32
  }
  func.func @transform_13(%arg0: i32) -> (i32, i32, i32) {
    %c0_i32 = arith.constant 0 : i32
    %c0_i32_0 = arith.constant 0 : i32
    %c0_i32_1 = arith.constant 0 : i32
    %c0_i32_2 = arith.constant 0 : i32
    return %c0_i32, %c0_i32_0, %c0_i32_1 : i32, i32, i32
  }
  func.func @transform_14(%arg0: i32) -> (i32, i32) {
    %c0_i32 = arith.constant 0 : i32
    %c0_i32_0 = arith.constant 0 : i32
    %c0_i32_1 = arith.constant 0 : i32
    return %c0_i32, %c0_i32_0 : i32, i32
  }
  func.func @transform_15(%arg0: i32) -> (i32, i32) {
    %c0_i32 = arith.constant 0 : i32
    %c0_i32_0 = arith.constant 0 : i32
    %c0_i32_1 = arith.constant 0 : i32
    return %c0_i32, %c0_i32_0 : i32, i32
  }
  func.func @transform_16(%arg0: i32) -> (i32, i32) {
    %c0_i32 = arith.constant 0 : i32
    %c0_i32_0 = arith.constant 0 : i32
    %c0_i32_1 = arith.constant 0 : i32
    return %c0_i32, %c0_i32_0 : i32, i32
  }
  func.func @transform_17(%arg0: i32) -> (i32, i32, i32) {
    %c0_i32 = arith.constant 0 : i32
    %c0_i32_0 = arith.constant 0 : i32
    %c0_i32_1 = arith.constant 0 : i32
    return %arg0, %c0_i32, %c0_i32_0 : i32, i32, i32
  }
}

</mosaic_0001>

<llo_original>
// kernel: tpu_custom_call.1
$region0: #{tpu_custom_call.1}
  #allocation0 [shape = 'u32[]', space=smem, size = 0x4, offset = 0x4, fixed_abs, tag = 'smem constant byte address 0x4 - core index']
  #allocation1 [shape = 'u32[144,128]{1,0:T(1,128)}', space=vmem, size = 0x12000, scoped, tag = 'internal scratch']
  #allocation2 [shape = 'f32[1,1]{1,0:T(1,128)S(1)}', space=vmem, size = 0x200, scoped, tag = 'scoped memory for tpu_custom_call.1']
  %s0 = inlined_call_operand.hbm [shape: f32[2,1,160], index: 0, kind: input, shape index: {}]
  %s1 = inlined_call_operand.vmem [shape: f32[16,3], index: 1, kind: input, shape index: {}]
  %s2 = inlined_call_operand.vmem [shape: f32[16,1], index: 2, kind: input, shape index: {}]
  %s3 = inlined_call_operand.hbm [shape: f32[16,48], index: 3, kind: input, shape index: {}]
  %s4 = inlined_call_operand.vmem [shape: f32[16,1], index: 4, kind: input, shape index: {}]
  %s5 = inlined_call_operand.hbm [shape: f32[16,48], index: 5, kind: input, shape index: {}]
  %s6 = inlined_call_operand.vmem [shape: f32[16,1], index: 6, kind: input, shape index: {}]
  %s7 = inlined_call_operand.hbm [shape: f32[8,48], index: 7, kind: input, shape index: {}]
  %s8 = inlined_call_operand.vmem [shape: f32[8,1], index: 8, kind: input, shape index: {}]
  %s9 = inlined_call_operand.hbm [shape: f32[8,24], index: 9, kind: input, shape index: {}]
  %s10 = inlined_call_operand.vmem [shape: f32[8,1], index: 10, kind: input, shape index: {}]
  %s11 = inlined_call_operand.hbm [shape: f32[8,24], index: 11, kind: input, shape index: {}]
  %s12 = inlined_call_operand.vmem [shape: f32[8,1], index: 12, kind: input, shape index: {}]
  %s13 = inlined_call_operand.hbm [shape: f32[8,160,512], index: 13, kind: input, shape index: {}]
  %s14 = inlined_call_operand.hbm [shape: f32[1,512], index: 14, kind: input, shape index: {}]
  %s15 = inlined_call_operand.vmem [shape: f32[512,1], index: 15, kind: input, shape index: {}]
  %s16 = inlined_call_operand.<no memory space> [shape: f32[1,1], index: 16, kind: input, shape index: {}]
  %s17 = inlined_call_operand.vmem [shape: f32[2,1,1], index: 17, kind: output, shape index: {}]
  %s18 = sld [smem:[#allocation0]]
  $region133: #{tpu_custom_call.1} parent=0
    _
  %s20 = ssub.s32 1, %s18
  %s21 = scalar_select 0, %s20, %s18
  %v22 = vstv %s16
  %23 = vst [vmem:[#allocation2] sm:$0x1] %v22
  $region1: #{tpu_custom_call.1} parent=0
    #allocation3 [shape = 'u8[2048]{0}', space=vmem, size = 0x800, scoped, tag = 'input window, operand 0']
    #allocation4 [shape = 's32[2]{0}', space=sflag, size = 0x8, scoped, tag = 'scoped memory for tpu_custom_call.1']
    #allocation5 [shape = 'u8[8192]{0}', space=vmem, size = 0x2000, scoped, tag = 'input window, operand 3, single buffered']
    #allocation6 [shape = 's32[1]{0}', space=sflag, size = 0x4, scoped, tag = 'scoped memory for tpu_custom_call.1']
    #allocation7 [shape = 'u8[8192]{0}', space=vmem, size = 0x2000, scoped, tag = 'input window, operand 5, single buffered']
    #allocation8 [shape = 'u8[4096]{0}', space=vmem, size = 0x1000, scoped, tag = 'input window, operand 7, single buffered']
    #allocation9 [shape = 's32[1]{0}', space=sflag, size = 0x4, scoped, tag = 'scoped memory for tpu_custom_call.1']
    #allocation10 [shape = 'u8[4096]{0}', space=vmem, size = 0x1000, scoped, tag = 'input window, operand 9, single buffered']
    #allocation11 [shape = 'u8[4096]{0}', space=vmem, size = 0x1000, scoped, tag = 'input window, operand 11, single buffered']
    #allocation12 [shape = 's32[1]{0}', space=sflag, size = 0x4, scoped, tag = 'scoped memory for tpu_custom_call.1']
    #allocation13 [shape = 'u8[2621440]{0}', space=vmem, size = 0x280000, scoped, tag = 'input window, operand 13, single buffered']
    #allocation14 [shape = 'u8[2048]{0}', space=vmem, size = 0x800, scoped, tag = 'input window, operand 14, single buffered']
    #allocation15 [shape = 's32[1]{0}', space=sflag, size = 0x4, scoped, tag = 'scoped memory for tpu_custom_call.1']
    %24 = vsyncpa [#allocation4], 0
    %s25 = scalar_lea.sflag [#allocation4], 1
    %26 = vsyncpa %s25, 0
    %27 = vsyncpa [#allocation6], 0
    %28 = vsyncpa [#allocation9], 0
    %29 = vsyncpa [#allocation12], 0
    %30 = vsyncpa [#allocation15], 0
    loop: start=0, step=1, limit=4
    $region2: #{tpu_custom_call.1} parent=1 // loop_pre_header
      _
    $region3: #{tpu_custom_call.1} parent=1 // loop_header
      %s32 = sphi 0, %s36
      %p33 = scmp.ge.s32.totalorder %s32, 4
      %s42 = sphi 0, %s44
      %s45 = sphi 0, %s42
      %s46 = sphi 0, %s45
      %s62 = sphi 0, %s46
      %s66 = sphi 0, %s66
      %s68 = sphi 0, %s66
      %s69 = sphi 0, %s68
      %s83 = sphi 0, %s69
      %s87 = sphi 0, %s87
      %s89 = sphi 0, %s87
      %s90 = sphi 0, %s89
      %s104 = sphi 0, %s90
      %s108 = sphi 0, %s108
      %s110 = sphi 0, %s108
      %s111 = sphi 0, %s110
      %s125 = sphi 0, %s111
      %s129 = sphi 0, %s129
      %s131 = sphi 0, %s129
      %s132 = sphi 0, %s131
      %s146 = sphi 0, %s132
      %s150 = sphi 0, %s150
      %s152 = sphi 0, %s150
      %s153 = sphi 0, %s152
      %s167 = sphi 0, %s153
      %s171 = sphi 0, %s171
      %s173 = sphi 0, %s171
      %s174 = sphi 0, %s173
      %s188 = sphi 0, %s174
      %s192 = sphi 0, %s192
      %s194 = sphi 0, %s192
      %s195 = sphi 0, %s194
      %s209 = sphi 0, %s195
      %s213 = sphi 0, %s213
      %s215 = sphi 0, %s213
      %s216 = sphi 0, %s215
      %s230 = sphi 0, %s216
      %s234 = sphi 0, %s234
      %s236 = sphi 0, %s234
      %s237 = sphi 0, %s236
      %s251 = sphi 0, %s237
      %s255 = sphi 0, %s255
      %s257 = sphi 0, %s255
      %s258 = sphi 0, %s257
      %s272 = sphi 0, %s258
      %s276 = sphi 0, %s276
      %s278 = sphi 0, %s276
      %s279 = sphi 0, %s278
      %s293 = sphi 0, %s279
      %s297 = sphi 0, %s297
      %s299 = sphi 0, %s297
      %s300 = sphi 0, %s299
      %s314 = sphi 0, %s300
      %s318 = sphi 0, %s318
      %s320 = sphi 0, %s318
      %s321 = sphi 0, %s320
      %s335 = sphi 0, %s321
      %s339 = sphi 0, %s339
      %s341 = sphi 0, %s339
      %s342 = sphi 0, %s341
      %s356 = sphi 0, %s342
      %s360 = sphi 0, %s360
      %s362 = sphi 0, %s360
      %s363 = sphi 0, %s362
      %s377 = sphi 0, %s363
      %s381 = sphi 0, %s381
      %s383 = sphi 0, %s381
      %s384 = sphi 0, %s383
      %s398 = sphi 0, %s384
      %s404 = sphi 0, %s406
      %s407 = sphi 0, %s404
      %s408 = sphi 0, %s407
      %s424 = sphi 0, %s408
    $region4: #{tpu_custom_call.1} parent=1 // loop_header_branch
      %35 = sbr.rel (%p33) target = $region8
    $region5: #{tpu_custom_call.1} parent=1 // loop_body
      %s37 = ssub.s32 %s32, 1
      %s38 = ssub.s32 %s32, 2
      %s39 = sadd.s32 %s32, 1
      %s40 = ssub.s32 %s32, %s39
      %p41 = scmp.eq.s32.totalorder %s40, 0
      %s43 = sadd.s32 %s42, 1
      %s44 = scalar_select %p41, %s42, %s43
      %p47 = pneg %p41
      %p48 = scmp.eq.s32.totalorder %s32, 1
      %p49 = por %p47, %p48
      %p50 = scmp.ne.s32.totalorder %s42, %s45
      %p51 = scmp.eq.s32.totalorder %s32, 0
      %p52 = por %p50, %p51
      %p53 = scmp.ne.s32.totalorder %s42, %s45
      %p54 = scmp.eq.s32.totalorder %s37, 1
      %p55 = por %p53, %p54
      %p56 = scmp.ne.s32.totalorder %s45, %s46
      %p57 = scmp.eq.s32.totalorder %s37, 0
      %p58 = por %p56, %p57
      %p59 = scmp.ne.s32.totalorder %s45, %s46
      %p60 = scmp.eq.s32.totalorder %s38, 1
      %p61 = por %p59, %p60
      %p63 = scmp.ne.s32.totalorder %s46, %s62
      %p64 = scmp.eq.s32.totalorder %s38, 0
      %p65 = por %p63, %p64
      %s67 = sadd.s32 %s66, 1
      %p70 = scmp.eq.s32.totalorder %s32, 1
      %p71 = scmp.ne.s32.totalorder %s66, %s68
      %p72 = scmp.eq.s32.totalorder %s32, 0
      %p73 = por %p71, %p72
      %p74 = scmp.ne.s32.totalorder %s66, %s68
      %p75 = scmp.eq.s32.totalorder %s37, 1
      %p76 = por %p74, %p75
      %p77 = scmp.ne.s32.totalorder %s68, %s69
      %p78 = scmp.eq.s32.totalorder %s37, 0
      %p79 = por %p77, %p78
      %p80 = scmp.ne.s32.totalorder %s68, %s69
      %p81 = scmp.eq.s32.totalorder %s38, 1
      %p82 = por %p80, %p81
      %p84 = scmp.ne.s32.totalorder %s69, %s83
      %p85 = scmp.eq.s32.totalorder %s38, 0
      %p86 = por %p84, %p85
      %s88 = sadd.s32 %s87, 1
      %p91 = scmp.eq.s32.totalorder %s32, 1
      %p92 = scmp.ne.s32.totalorder %s87, %s89
      %p93 = scmp.eq.s32.totalorder %s32, 0
      %p94 = por %p92, %p93
      %p95 = scmp.ne.s32.totalorder %s87, %s89
      %p96 = scmp.eq.s32.totalorder %s37, 1
      %p97 = por %p95, %p96
      %p98 = scmp.ne.s32.totalorder %s89, %s90
      %p99 = scmp.eq.s32.totalorder %s37, 0
      %p100 = por %p98, %p99
      %p101 = scmp.ne.s32.totalorder %s89, %s90
      %p102 = scmp.eq.s32.totalorder %s38, 1
      %p103 = por %p101, %p102
      %p105 = scmp.ne.s32.totalorder %s90, %s104
      %p106 = scmp.eq.s32.totalorder %s38, 0
      %p107 = por %p105, %p106
      %s109 = sadd.s32 %s108, 1
      %p112 = scmp.eq.s32.totalorder %s32, 1
      %p113 = scmp.ne.s32.totalorder %s108, %s110
      %p114 = scmp.eq.s32.totalorder %s32, 0
      %p115 = por %p113, %p114
      %p116 = scmp.ne.s32.totalorder %s108, %s110
      %p117 = scmp.eq.s32.totalorder %s37, 1
      %p118 = por %p116, %p117
      %p119 = scmp.ne.s32.totalorder %s110, %s111
      %p120 = scmp.eq.s32.totalorder %s37, 0
      %p121 = por %p119, %p120
      %p122 = scmp.ne.s32.totalorder %s110, %s111
      %p123 = scmp.eq.s32.totalorder %s38, 1
      %p124 = por %p122, %p123
      %p126 = scmp.ne.s32.totalorder %s111, %s125
      %p127 = scmp.eq.s32.totalorder %s38, 0
      %p128 = por %p126, %p127
      %s130 = sadd.s32 %s129, 1
      %p133 = scmp.eq.s32.totalorder %s32, 1
      %p134 = scmp.ne.s32.totalorder %s129, %s131
      %p135 = scmp.eq.s32.totalorder %s32, 0
      %p136 = por %p134, %p135
      %p137 = scmp.ne.s32.totalorder %s129, %s131
      %p138 = scmp.eq.s32.totalorder %s37, 1
      %p139 = por %p137, %p138
      %p140 = scmp.ne.s32.totalorder %s131, %s132
      %p141 = scmp.eq.s32.totalorder %s37, 0
      %p142 = por %p140, %p141
      %p143 = scmp.ne.s32.totalorder %s131, %s132
      %p144 = scmp.eq.s32.totalorder %s38, 1
      %p145 = por %p143, %p144
      %p147 = scmp.ne.s32.totalorder %s132, %s146
      %p148 = scmp.eq.s32.totalorder %s38, 0
      %p149 = por %p147, %p148
      %s151 = sadd.s32 %s150, 1
      %p154 = scmp.eq.s32.totalorder %s32, 1
      %p155 = scmp.ne.s32.totalorder %s150, %s152
      %p156 = scmp.eq.s32.totalorder %s32, 0
      %p157 = por %p155, %p156
      %p158 = scmp.ne.s32.totalorder %s150, %s152
      %p159 = scmp.eq.s32.totalorder %s37, 1
      %p160 = por %p158, %p159
      %p161 = scmp.ne.s32.totalorder %s152, %s153
      %p162 = scmp.eq.s32.totalorder %s37, 0
      %p163 = por %p161, %p162
      %p164 = scmp.ne.s32.totalorder %s152, %s153
      %p165 = scmp.eq.s32.totalorder %s38, 1
      %p166 = por %p164, %p165
      %p168 = scmp.ne.s32.totalorder %s153, %s167
      %p169 = scmp.eq.s32.totalorder %s38, 0
      %p170 = por %p168, %p169
      %s172 = sadd.s32 %s171, 1
      %p175 = scmp.eq.s32.totalorder %s32, 1
      %p176 = scmp.ne.s32.totalorder %s171, %s173
      %p177 = scmp.eq.s32.totalorder %s32, 0
      %p178 = por %p176, %p177
      %p179 = scmp.ne.s32.totalorder %s171, %s173
      %p180 = scmp.eq.s32.totalorder %s37, 1
      %p181 = por %p179, %p180
      %p182 = scmp.ne.s32.totalorder %s173, %s174
      %p183 = scmp.eq.s32.totalorder %s37, 0
      %p184 = por %p182, %p183
      %p185 = scmp.ne.s32.totalorder %s173, %s174
      %p186 = scmp.eq.s32.totalorder %s38, 1
      %p187 = por %p185, %p186
      %p189 = scmp.ne.s32.totalorder %s174, %s188
      %p190 = scmp.eq.s32.totalorder %s38, 0
      %p191 = por %p189, %p190
      %s193 = sadd.s32 %s192, 1
      %p196 = scmp.eq.s32.totalorder %s32, 1
      %p197 = scmp.ne.s32.totalorder %s192, %s194
      %p198 = scmp.eq.s32.totalorder %s32, 0
      %p199 = por %p197, %p198
      %p200 = scmp.ne.s32.totalorder %s192, %s194
      %p201 = scmp.eq.s32.totalorder %s37, 1
      %p202 = por %p200, %p201
      %p203 = scmp.ne.s32.totalorder %s194, %s195
      %p204 = scmp.eq.s32.totalorder %s37, 0
      %p205 = por %p203, %p204
      %p206 = scmp.ne.s32.totalorder %s194, %s195
      %p207 = scmp.eq.s32.totalorder %s38, 1
      %p208 = por %p206, %p207
      %p210 = scmp.ne.s32.totalorder %s195, %s209
      %p211 = scmp.eq.s32.totalorder %s38, 0
      %p212 = por %p210, %p211
      %s214 = sadd.s32 %s213, 1
      %p217 = scmp.eq.s32.totalorder %s32, 1
      %p218 = scmp.ne.s32.totalorder %s213, %s215
      %p219 = scmp.eq.s32.totalorder %s32, 0
      %p220 = por %p218, %p219
      %p221 = scmp.ne.s32.totalorder %s213, %s215
      %p222 = scmp.eq.s32.totalorder %s37, 1
      %p223 = por %p221, %p222
      %p224 = scmp.ne.s32.totalorder %s215, %s216
      %p225 = scmp.eq.s32.totalorder %s37, 0
      %p226 = por %p224, %p225
      %p227 = scmp.ne.s32.totalorder %s215, %s216
      %p228 = scmp.eq.s32.totalorder %s38, 1
      %p229 = por %p227, %p228
      %p231 = scmp.ne.s32.totalorder %s216, %s230
      %p232 = scmp.eq.s32.totalorder %s38, 0
      %p233 = por %p231, %p232
      %s235 = sadd.s32 %s234, 1
      %p238 = scmp.eq.s32.totalorder %s32, 1
      %p239 = scmp.ne.s32.totalorder %s234, %s236
      %p240 = scmp.eq.s32.totalorder %s32, 0
      %p241 = por %p239, %p240
      %p242 = scmp.ne.s32.totalorder %s234, %s236
      %p243 = scmp.eq.s32.totalorder %s37, 1
      %p244 = por %p242, %p243
      %p245 = scmp.ne.s32.totalorder %s236, %s237
      %p246 = scmp.eq.s32.totalorder %s37, 0
      %p247 = por %p245, %p246
      %p248 = scmp.ne.s32.totalorder %s236, %s237
      %p249 = scmp.eq.s32.totalorder %s38, 1
      %p250 = por %p248, %p249
      %p252 = scmp.ne.s32.totalorder %s237, %s251
      %p253 = scmp.eq.s32.totalorder %s38, 0
      %p254 = por %p252, %p253
      %s256 = sadd.s32 %s255, 1
      %p259 = scmp.eq.s32.totalorder %s32, 1
      %p260 = scmp.ne.s32.totalorder %s255, %s257
      %p261 = scmp.eq.s32.totalorder %s32, 0
      %p262 = por %p260, %p261
      %p263 = scmp.ne.s32.totalorder %s255, %s257
      %p264 = scmp.eq.s32.totalorder %s37, 1
      %p265 = por %p263, %p264
      %p266 = scmp.ne.s32.totalorder %s257, %s258
      %p267 = scmp.eq.s32.totalorder %s37, 0
      %p268 = por %p266, %p267
      %p269 = scmp.ne.s32.totalorder %s257, %s258
      %p270 = scmp.eq.s32.totalorder %s38, 1
      %p271 = por %p269, %p270
      %p273 = scmp.ne.s32.totalorder %s258, %s272
      %p274 = scmp.eq.s32.totalorder %s38, 0
      %p275 = por %p273, %p274
      %s277 = sadd.s32 %s276, 1
      %p280 = scmp.eq.s32.totalorder %s32, 1
      %p281 = scmp.ne.s32.totalorder %s276, %s278
      %p282 = scmp.eq.s32.totalorder %s32, 0
      %p283 = por %p281, %p282
      %p284 = scmp.ne.s32.totalorder %s276, %s278
      %p285 = scmp.eq.s32.totalorder %s37, 1
      %p286 = por %p284, %p285
      %p287 = scmp.ne.s32.totalorder %s278, %s279
      %p288 = scmp.eq.s32.totalorder %s37, 0
      %p289 = por %p287, %p288
      %p290 = scmp.ne.s32.totalorder %s278, %s279
      %p291 = scmp.eq.s32.totalorder %s38, 1
      %p292 = por %p290, %p291
      %p294 = scmp.ne.s32.totalorder %s279, %s293
      %p295 = scmp.eq.s32.totalorder %s38, 0
      %p296 = por %p294, %p295
      %s298 = sadd.s32 %s297, 1
      %p301 = scmp.eq.s32.totalorder %s32, 1
      %p302 = scmp.ne.s32.totalorder %s297, %s299
      %p303 = scmp.eq.s32.totalorder %s32, 0
      %p304 = por %p302, %p303
      %p305 = scmp.ne.s32.totalorder %s297, %s299
      %p306 = scmp.eq.s32.totalorder %s37, 1
      %p307 = por %p305, %p306
      %p308 = scmp.ne.s32.totalorder %s299, %s300
      %p309 = scmp.eq.s32.totalorder %s37, 0
      %p310 = por %p308, %p309
      %p311 = scmp.ne.s32.totalorder %s299, %s300
      %p312 = scmp.eq.s32.totalorder %s38, 1
      %p313 = por %p311, %p312
      %p315 = scmp.ne.s32.totalorder %s300, %s314
      %p316 = scmp.eq.s32.totalorder %s38, 0
      %p317 = por %p315, %p316
      %s319 = sadd.s32 %s318, 1
      %p322 = scmp.eq.s32.totalorder %s32, 1
      %p323 = scmp.ne.s32.totalorder %s318, %s320
      %p324 = scmp.eq.s32.totalorder %s32, 0
      %p325 = por %p323, %p324
      %p326 = scmp.ne.s32.totalorder %s318, %s320
      %p327 = scmp.eq.s32.totalorder %s37, 1
      %p328 = por %p326, %p327
      %p329 = scmp.ne.s32.totalorder %s320, %s321
      %p330 = scmp.eq.s32.totalorder %s37, 0
      %p331 = por %p329, %p330
      %p332 = scmp.ne.s32.totalorder %s320, %s321
      %p333 = scmp.eq.s32.totalorder %s38, 1
      %p334 = por %p332, %p333
      %p336 = scmp.ne.s32.totalorder %s321, %s335
      %p337 = scmp.eq.s32.totalorder %s38, 0
      %p338 = por %p336, %p337
      %s340 = sadd.s32 %s339, 1
      %p343 = scmp.eq.s32.totalorder %s32, 1
      %p344 = scmp.ne.s32.totalorder %s339, %s341
      %p345 = scmp.eq.s32.totalorder %s32, 0
      %p346 = por %p344, %p345
      %p347 = scmp.ne.s32.totalorder %s339, %s341
      %p348 = scmp.eq.s32.totalorder %s37, 1
      %p349 = por %p347, %p348
      %p350 = scmp.ne.s32.totalorder %s341, %s342
      %p351 = scmp.eq.s32.totalorder %s37, 0
      %p352 = por %p350, %p351
      %p353 = scmp.ne.s32.totalorder %s341, %s342
      %p354 = scmp.eq.s32.totalorder %s38, 1
      %p355 = por %p353, %p354
      %p357 = scmp.ne.s32.totalorder %s342, %s356
      %p358 = scmp.eq.s32.totalorder %s38, 0
      %p359 = por %p357, %p358
      %s361 = sadd.s32 %s360, 1
      %p364 = scmp.eq.s32.totalorder %s32, 1
      %p365 = scmp.ne.s32.totalorder %s360, %s362
      %p366 = scmp.eq.s32.totalorder %s32, 0
      %p367 = por %p365, %p366
      %p368 = scmp.ne.s32.totalorder %s360, %s362
      %p369 = scmp.eq.s32.totalorder %s37, 1
      %p370 = por %p368, %p369
      %p371 = scmp.ne.s32.totalorder %s362, %s363
      %p372 = scmp.eq.s32.totalorder %s37, 0
      %p373 = por %p371, %p372
      %p374 = scmp.ne.s32.totalorder %s362, %s363
      %p375 = scmp.eq.s32.totalorder %s38, 1
      %p376 = por %p374, %p375
      %p378 = scmp.ne.s32.totalorder %s363, %s377
      %p379 = scmp.eq.s32.totalorder %s38, 0
      %p380 = por %p378, %p379
      %s382 = sadd.s32 %s381, 1
      %p385 = scmp.eq.s32.totalorder %s32, 1
      %p386 = scmp.ne.s32.totalorder %s381, %s383
      %p387 = scmp.eq.s32.totalorder %s32, 0
      %p388 = por %p386, %p387
      %p389 = scmp.ne.s32.totalorder %s381, %s383
      %p390 = scmp.eq.s32.totalorder %s37, 1
      %p391 = por %p389, %p390
      %p392 = scmp.ne.s32.totalorder %s383, %s384
      %p393 = scmp.eq.s32.totalorder %s37, 0
      %p394 = por %p392, %p393
      %p395 = scmp.ne.s32.totalorder %s383, %s384
      %p396 = scmp.eq.s32.totalorder %s38, 1
      %p397 = por %p395, %p396
      %p399 = scmp.ne.s32.totalorder %s384, %s398
      %p400 = scmp.eq.s32.totalorder %s38, 0
      %p401 = por %p399, %p400
      %s402 = ssub.s32 %s32, %s39
      %p403 = scmp.eq.s32.totalorder %s402, 0
      %s405 = sadd.s32 %s404, 1
      %s406 = scalar_select %p403, %s404, %s405
      %p409 = pneg %p403
      %p410 = scmp.eq.s32.totalorder %s32, 1
      %p411 = por %p409, %p410
      %p412 = scmp.ne.s32.totalorder %s404, %s407
      %p413 = scmp.eq.s32.totalorder %s32, 0
      %p414 = por %p412, %p413
      %p415 = scmp.ne.s32.totalorder %s404, %s407
      %p416 = scmp.eq.s32.totalorder %s37, 1
      %p417 = por %p415, %p416
      %p418 = scmp.ne.s32.totalorder %s407, %s408
      %p419 = scmp.eq.s32.totalorder %s37, 0
      %p420 = por %p418, %p419
      %p421 = scmp.ne.s32.totalorder %s407, %s408
      %p422 = scmp.eq.s32.totalorder %s38, 1
      %p423 = por %p421, %p422
      %p425 = scmp.ne.s32.totalorder %s408, %s424
      %p426 = scmp.eq.s32.totalorder %s38, 0
      %p427 = por %p425, %p426
      %p428 = scmp.le.s32.totalorder 1, %s32
      %p429 = scmp.lt.s32.totalorder %s32, 3
      %p430 = pnand %p428, %p429
      %p431 = pneg %p430
      // Predicated region
      $region9: #{tpu_custom_call.1} parent=5 // pred_check
        _
      $region10: #{tpu_custom_call.1} parent=5 // pred_check_branch
        %433 = sbr.rel (%p430) target = $region12
      $region11: #{tpu_custom_call.1} parent=5 // pred_region
        %s434 = ssub.s32 %s32, 1
        // Predicated region
        $region13: #{tpu_custom_call.1} parent=11 // pred_check
          %p435 = pneg %p79
        $region14: #{tpu_custom_call.1} parent=11 // pred_check_branch
          %437 = sbr.rel (%p435) target = $region16
        $region15: #{tpu_custom_call.1} parent=11 // pred_region
          _
        $region16: #{tpu_custom_call.1} parent=11 // pred_fallthru
          _
        // Predicated region
        $region17: #{tpu_custom_call.1} parent=11 // pred_check
          %p438 = pneg %p100
        $region18: #{tpu_custom_call.1} parent=11 // pred_check_branch
          %440 = sbr.rel (%p438) target = $region20
        $region19: #{tpu_custom_call.1} parent=11 // pred_region
          _
        $region20: #{tpu_custom_call.1} parent=11 // pred_fallthru
          _
        // Predicated region
        $region21: #{tpu_custom_call.1} parent=11 // pred_check
          %p441 = pneg %p121
        $region22: #{tpu_custom_call.1} parent=11 // pred_check_branch
          %443 = sbr.rel (%p441) target = $region24
        $region23: #{tpu_custom_call.1} parent=11 // pred_region
          %s445 = ssub.s32 256, 256
          %446 = vsyncadd [#allocation6], %s445
          %s447 = sshll.u32 [#allocation5], 4
          %s448 = int_to_ptr.vmem [resolvable:$true] %s447
          %453 = dma.hbm_to_vmem [thread:$0]  %s3, 256, %s448, [#allocation6], 128, 128, 8
        $region24: #{tpu_custom_call.1} parent=11 // pred_fallthru
          _
        // Predicated region
        $region25: #{tpu_custom_call.1} parent=11 // pred_check
          %p454 = pneg %p142
        $region26: #{tpu_custom_call.1} parent=11 // pred_check_branch
          %456 = sbr.rel (%p454) target = $region28
        $region27: #{tpu_custom_call.1} parent=11 // pred_region
          _
        $region28: #{tpu_custom_call.1} parent=11 // pred_fallthru
          _
        // Predicated region
        $region29: #{tpu_custom_call.1} parent=11 // pred_check
          %p457 = pneg %p163
        $region30: #{tpu_custom_call.1} parent=11 // pred_check_branch
          %459 = sbr.rel (%p457) target = $region32
        $region31: #{tpu_custom_call.1} parent=11 // pred_region
          %s461 = ssub.s32 256, 256
          %462 = vsyncadd [#allocation6], %s461
          %s463 = sshll.u32 [#allocation7], 4
          %s464 = int_to_ptr.vmem [resolvable:$true] %s463
          %469 = dma.hbm_to_vmem [thread:$0]  %s5, 256, %s464, [#allocation6], 128, 128, 8
        $region32: #{tpu_custom_call.1} parent=11 // pred_fallthru
          _
        // Predicated region
        $region33: #{tpu_custom_call.1} parent=11 // pred_check
          %p470 = pneg %p184
        $region34: #{tpu_custom_call.1} parent=11 // pred_check_branch
          %472 = sbr.rel (%p470) target = $region36
        $region35: #{tpu_custom_call.1} parent=11 // pred_region
          _
        $region36: #{tpu_custom_call.1} parent=11 // pred_fallthru
          _
        // Predicated region
        $region37: #{tpu_custom_call.1} parent=11 // pred_check
          %p473 = pneg %p205
        $region38: #{tpu_custom_call.1} parent=11 // pred_check_branch
          %475 = sbr.rel (%p473) target = $region40
        $region39: #{tpu_custom_call.1} parent=11 // pred_region
          %s477 = ssub.s32 128, 128
          %478 = vsyncadd [#allocation9], %s477
          %s480 = sshll.u32 [#allocation8], 4
          %s481 = int_to_ptr.vmem [resolvable:$true] %s480
          %483 = dma.hbm_to_vmem [thread:$0]  %s7, 128, %s481, [#allocation9]
        $region40: #{tpu_custom_call.1} parent=11 // pred_fallthru
          _
        // Predicated region
        $region41: #{tpu_custom_call.1} parent=11 // pred_check
          %p484 = pneg %p226
        $region42: #{tpu_custom_call.1} parent=11 // pred_check_branch
          %486 = sbr.rel (%p484) target = $region44
        $region43: #{tpu_custom_call.1} parent=11 // pred_region
          _
        $region44: #{tpu_custom_call.1} parent=11 // pred_fallthru
          _
        // Predicated region
        $region45: #{tpu_custom_call.1} parent=11 // pred_check
          %p487 = pneg %p247
        $region46: #{tpu_custom_call.1} parent=11 // pred_check_branch
          %489 = sbr.rel (%p487) target = $region48
        $region47: #{tpu_custom_call.1} parent=11 // pred_region
          %s491 = ssub.s32 128, 128
          %492 = vsyncadd [#allocation9], %s491
          %s494 = sshll.u32 [#allocation10], 4
          %s495 = int_to_ptr.vmem [resolvable:$true] %s494
          %497 = dma.hbm_to_vmem [thread:$0]  %s9, 128, %s495, [#allocation9]
        $region48: #{tpu_custom_call.1} parent=11 // pred_fallthru
          _
        // Predicated region
        $region49: #{tpu_custom_call.1} parent=11 // pred_check
          %p498 = pneg %p268
        $region50: #{tpu_custom_call.1} parent=11 // pred_check_branch
          %500 = sbr.rel (%p498) target = $region52
        $region51: #{tpu_custom_call.1} parent=11 // pred_region
          _
        $region52: #{tpu_custom_call.1} parent=11 // pred_fallthru
          _
        // Predicated region
        $region53: #{tpu_custom_call.1} parent=11 // pred_check
          %p501 = pneg %p289
        $region54: #{tpu_custom_call.1} parent=11 // pred_check_branch
          %503 = sbr.rel (%p501) target = $region56
        $region55: #{tpu_custom_call.1} parent=11 // pred_region
          %s505 = ssub.s32 128, 128
          %506 = vsyncadd [#allocation12], %s505
          %s508 = sshll.u32 [#allocation11], 4
          %s509 = int_to_ptr.vmem [resolvable:$true] %s508
          %511 = dma.hbm_to_vmem [thread:$0]  %s11, 128, %s509, [#allocation12]
        $region56: #{tpu_custom_call.1} parent=11 // pred_fallthru
          _
        // Predicated region
        $region57: #{tpu_custom_call.1} parent=11 // pred_check
          %p512 = pneg %p310
        $region58: #{tpu_custom_call.1} parent=11 // pred_check_branch
          %514 = sbr.rel (%p512) target = $region60
        $region59: #{tpu_custom_call.1} parent=11 // pred_region
          _
        $region60: #{tpu_custom_call.1} parent=11 // pred_fallthru
          _
        // Predicated region
        $region61: #{tpu_custom_call.1} parent=11 // pred_check
          %p515 = pneg %p331
        $region62: #{tpu_custom_call.1} parent=11 // pred_check_branch
          %517 = sbr.rel (%p515) target = $region64
        $region63: #{tpu_custom_call.1} parent=11 // pred_region
          %s519 = ssub.s32 81920, 81920
          %520 = vsyncadd [#allocation12], %s519
          %s521 = sshll.u32 [#allocation13], 4
          %s522 = int_to_ptr.vmem [resolvable:$true] %s521
          %527 = dma.hbm_to_vmem [thread:$0]  %s13, 81920, %s522, [#allocation12], 512, 512, 32
        $region64: #{tpu_custom_call.1} parent=11 // pred_fallthru
          _
        // Predicated region
        $region65: #{tpu_custom_call.1} parent=11 // pred_check
          %p528 = pneg %p352
        $region66: #{tpu_custom_call.1} parent=11 // pred_check_branch
          %530 = sbr.rel (%p528) target = $region68
        $region67: #{tpu_custom_call.1} parent=11 // pred_region
          %s532 = ssub.s32 64, 64
          %533 = vsyncadd [#allocation15], %s532
          %s535 = sshll.u32 [#allocation14], 4
          %s536 = int_to_ptr.vmem [resolvable:$true] %s535
          %538 = dma.hbm_to_vmem [thread:$0]  %s14, 64, %s536, [#allocation15]
        $region68: #{tpu_custom_call.1} parent=11 // pred_fallthru
          _
        // Predicated region
        $region69: #{tpu_custom_call.1} parent=11 // pred_check
          %p539 = pneg %p373
        $region70: #{tpu_custom_call.1} parent=11 // pred_check_branch
          %541 = sbr.rel (%p539) target = $region72
        $region71: #{tpu_custom_call.1} parent=11 // pred_region
          _
        $region72: #{tpu_custom_call.1} parent=11 // pred_fallthru
          _
        // Predicated region
        $region73: #{tpu_custom_call.1} parent=11 // pred_check
          %p542 = pneg %p394
        $region74: #{tpu_custom_call.1} parent=11 // pred_check_branch
          %544 = sbr.rel (%p542) target = $region76
        $region75: #{tpu_custom_call.1} parent=11 // pred_region
          _
        $region76: #{tpu_custom_call.1} parent=11 // pred_fallthru
          _
      $region12: #{tpu_custom_call.1} parent=5 // pred_fallthru
        _
      %p545 = scmp.lt.s32.totalorder %s32, 2
      // Predicated region
      $region77: #{tpu_custom_call.1} parent=5 // pred_check
        %p546 = pneg %p545
      $region78: #{tpu_custom_call.1} parent=5 // pred_check_branch
        %548 = sbr.rel (%p546) target = $region80
      $region79: #{tpu_custom_call.1} parent=5 // pred_region
        // Predicated region
        $region81: #{tpu_custom_call.1} parent=79 // pred_check
          %p549 = pneg %p52
        $region82: #{tpu_custom_call.1} parent=79 // pred_check_branch
          %551 = sbr.rel (%p549) target = $region84
        $region83: #{tpu_custom_call.1} parent=79 // pred_region
          %s552 = sand.u32 %s42, 1
          %s553 = scalar_lea.sflag [#allocation4], %s552
          %s554 = sand.u32 %s42, 1
          %s555 = smul.addr %s554, 2
          %s556 = scalar_lea.vmem [#allocation3], %s555
          %s558 = ssub.s32 32, 32
          %559 = vsyncadd %s553, %s558
          %s560 = smul.addr %s32, 2
          %s561 = smul.addr %s560, 16
          %s562 = scalar_lea.hbm %s0, %s561
          %s564 = sshll.u32 %s556, 4
          %s565 = int_to_ptr.vmem [resolvable:$true] %s564
          %567 = dma.hbm_to_vmem [thread:$0]  %s562, 32, %s565, %s553
        $region84: #{tpu_custom_call.1} parent=79 // pred_fallthru
          _
      $region80: #{tpu_custom_call.1} parent=5 // pred_fallthru
        _
      %p568 = scmp.le.s32.totalorder 1, %s32
      %p569 = scmp.lt.s32.totalorder %s32, 3
      %p570 = pnand %p568, %p569
      %p571 = pneg %p570
      // Predicated region
      $region85: #{tpu_custom_call.1} parent=5 // pred_check
        _
      $region86: #{tpu_custom_call.1} parent=5 // pred_check_branch
        %573 = sbr.rel (%p570) target = $region88
      $region87: #{tpu_custom_call.1} parent=5 // pred_region
        %s574 = ssub.s32 %s32, 1
        %s575 = sand.u32 %s45, 1
        %s576 = scalar_lea.sflag [#allocation4], %s575
        %s577 = sand.u32 %s45, 1
        %s578 = smul.addr %s577, 2
        %s579 = scalar_lea.vmem [#allocation3], %s578
        // Predicated region
        $region89: #{tpu_custom_call.1} parent=87 // pred_check
          %p580 = pneg %p58
        $region90: #{tpu_custom_call.1} parent=87 // pred_check_branch
          %582 = sbr.rel (%p580) target = $region92
        $region91: #{tpu_custom_call.1} parent=87 // pred_region
          %583 = dma.done %s576, 32
        $region92: #{tpu_custom_call.1} parent=87 // pred_fallthru
          _
        // Predicated region
        $region93: #{tpu_custom_call.1} parent=87 // pred_check
          %p584 = pneg %p121
        $region94: #{tpu_custom_call.1} parent=87 // pred_check_branch
          %586 = sbr.rel (%p584) target = $region96
        $region95: #{tpu_custom_call.1} parent=87 // pred_region
          %587 = dma.done [#allocation6], 256
        $region96: #{tpu_custom_call.1} parent=87 // pred_fallthru
          _
        // Predicated region
        $region97: #{tpu_custom_call.1} parent=87 // pred_check
          %p588 = pneg %p163
        $region98: #{tpu_custom_call.1} parent=87 // pred_check_branch
          %590 = sbr.rel (%p588) target = $region100
        $region99: #{tpu_custom_call.1} parent=87 // pred_region
          %591 = dma.done [#allocation6], 256
        $region100: #{tpu_custom_call.1} parent=87 // pred_fallthru
          _
        // Predicated region
        $region101: #{tpu_custom_call.1} parent=87 // pred_check
          %p592 = pneg %p205
        $region102: #{tpu_custom_call.1} parent=87 // pred_check_branch
          %594 = sbr.rel (%p592) target = $region104
        $region103: #{tpu_custom_call.1} parent=87 // pred_region
          %595 = dma.done [#allocation9], 128
        $region104: #{tpu_custom_call.1} parent=87 // pred_fallthru
          _
        // Predicated region
        $region105: #{tpu_custom_call.1} parent=87 // pred_check
          %p596 = pneg %p247
        $region106: #{tpu_custom_call.1} parent=87 // pred_check_branch
          %598 = sbr.rel (%p596) target = $region108
        $region107: #{tpu_custom_call.1} parent=87 // pred_region
          %599 = dma.done [#allocation9], 128
        $region108: #{tpu_custom_call.1} parent=87 // pred_fallthru
          _
        // Predicated region
        $region109: #{tpu_custom_call.1} parent=87 // pred_check
          %p600 = pneg %p289
        $region110: #{tpu_custom_call.1} parent=87 // pred_check_branch
          %602 = sbr.rel (%p600) target = $region112
        $region111: #{tpu_custom_call.1} parent=87 // pred_region
          %603 = dma.done [#allocation12], 128
        $region112: #{tpu_custom_call.1} parent=87 // pred_fallthru
          _
        // Predicated region
        $region113: #{tpu_custom_call.1} parent=87 // pred_check
          %p604 = pneg %p331
        $region114: #{tpu_custom_call.1} parent=87 // pred_check_branch
          %606 = sbr.rel (%p604) target = $region116
        $region115: #{tpu_custom_call.1} parent=87 // pred_region
          %607 = dma.done [#allocation12], 81920
        $region116: #{tpu_custom_call.1} parent=87 // pred_fallthru
          _
        // Predicated region
        $region117: #{tpu_custom_call.1} parent=87 // pred_check
          %p608 = pneg %p352
        $region118: #{tpu_custom_call.1} parent=87 // pred_check_branch
          %610 = sbr.rel (%p608) target = $region120
        $region119: #{tpu_custom_call.1} parent=87 // pred_region
          %611 = dma.done [#allocation15], 64
        $region120: #{tpu_custom_call.1} parent=87 // pred_fallthru
          _
        %s612 = sand.u32 %s45, 1
        %s613 = scalar_lea.sflag [#allocation4], %s612
        %s614 = sand.u32 %s45, 1
        %s615 = smul.addr %s614, 2
        %s616 = scalar_lea.vmem [#allocation3], %s615
        %p617 = pneg %p58
        %p618 = pneg %p55
        %p619 = pneg %p79
        %p620 = pneg %p76
        %p621 = pneg %p100
        %p622 = pneg %p97
        %p623 = pneg %p121
        %p624 = pneg %p118
        %p625 = pneg %p142
        %p626 = pneg %p139
        %p627 = pneg %p163
        %p628 = pneg %p160
        %p629 = pneg %p184
        %p630 = pneg %p181
        %p631 = pneg %p205
        %p632 = pneg %p202
        %p633 = pneg %p226
        %p634 = pneg %p223
        %p635 = pneg %p247
        %p636 = pneg %p244
        %p637 = pneg %p268
        %p638 = pneg %p265
        %p639 = pneg %p289
        %p640 = pneg %p286
        %p641 = pneg %p310
        %p642 = pneg %p307
        %p643 = pneg %p331
        %p644 = pneg %p328
        %p645 = pneg %p352
        %p646 = pneg %p349
        %p647 = pneg %p373
        %p648 = pneg %p370
        %p649 = pneg %p394
        %p650 = pneg %p391
        %p651 = pneg %p420
        %p652 = pneg %p417
        %p653 = scmp.lt.s32.totalorder %s37, 1
        %s654 = scalar_select %p653, %s37, 1
        %s655 = scalar_lea.vmem %s17, %s654
        %p656 = scmp.lt.s32.totalorder %s37, 1
        %s657 = scalar_select %p656, %s37, 1
        %s658 = scalar_lea.vmem %s17, %s657
        %v659 = vld [vmem:[%s579] sm:$0x3]
        %v660 = vld [vmem:[%s1] sm:$0xff]
        %v661 = vld [vmem:[%s1 + $0x8] sm:$0xff]
        %v662 = vld [vmem:[%s2] sm:$0xff]
        %v663 = vld [vmem:[%s2 + $0x8] sm:$0xff]
        %v665 = vlaneseq
        %v666 = vshrl.u32 %v665, 7
        %v667 = vsub.s32 0, %v666
        %v668 = vrot.slane %v659, %v667
        %v669 = vlaneseq
        %v670 = vshrl.u32 %v669, 7
        %v671 = vsub.s32 1, %v670
        %v672 = vrot.slane %v659, %v671
        %673 = vrot.lane.b32.xlu0 %v668, 1
        %v674 = vpop.permute.xlu0 %673
        %675 = vrot.lane.b32.xlu0 %v672, 1
        %v676 = vpop.permute.xlu0 %675
        %vm677 = vcmask 7168
        %v678 = vsel %vm677, %v674, %v676
        %v681 = vsel %vm677, 0.0, %v674
        %682 = vrot.lane.b32.xlu0 %v668, 127
        %v683 = vpop.permute.xlu0 %682
        %684 = vrot.lane.b32.xlu0 %v672, 127
        %v685 = vpop.permute.xlu0 %684
        %vm686 = vcmask 1039360
        %v687 = vsel %vm686, %v683, %v685
        %vm690 = vcmask 252928
        %v691 = vsel %vm690, %v685, 0.0
        %693 = vset.pattern.permute.xlu0 0
        %694 = vperm.xlu0 %693, %v660
        %v695 = vpop.permute.xlu0 %694
        %698 = vset.pattern.permute.xlu0 0
        %699 = vperm.xlu0 %698, %v661
        %v700 = vpop.permute.xlu0 %699
        %v702 = vlaneseq
        %v703 = vshrl.u32 %v702, 7
        %v704 = vsub.s32 0, %v703
        %v705 = vrot.slane %v681, %v704
        %v706 = vlaneseq
        %v707 = vshrl.u32 %v706, 7
        %v708 = vsub.s32 0, %v707
        %v709 = vrot.slane %v678, %v708
        %v710 = vmul.f32 %v695, %v705
        %v711 = vmul.f32 %v695, %v709
        %v712 = vmul.f32 %v700, %v705
        %v713 = vmul.f32 %v700, %v709
        %714 = vset.pattern.permute.xlu0 1
        %715 = vperm.xlu0 %714, %v660
        %v716 = vpop.permute.xlu0 %715
        %718 = vset.pattern.permute.xlu0 1
        %719 = vperm.xlu0 %718, %v661
        %v720 = vpop.permute.xlu0 %719
        %v724 = vmul.f32 %v716, %v668
        %v725 = vmul.f32 %v716, %v672
        %v726 = vmul.f32 %v720, %v668
        %v727 = vmul.f32 %v720, %v672
        %v728 = vadd.f32 %v710, %v724
        %v729 = vadd.f32 %v711, %v725
        %v730 = vadd.f32 %v712, %v726
        %v731 = vadd.f32 %v713, %v727
        %732 = vset.pattern.permute.xlu0 2
        %733 = vperm.xlu0 %732, %v660
        %v734 = vpop.permute.xlu0 %733
        %736 = vset.pattern.permute.xlu0 2
        %737 = vperm.xlu0 %736, %v661
        %v738 = vpop.permute.xlu0 %737
        %v740 = vlaneseq
        %v741 = vshrl.u32 %v740, 7
        %v742 = vsub.s32 0, %v741
        %v743 = vrot.slane %v687, %v742
        %v744 = vlaneseq
        %v745 = vshrl.u32 %v744, 7
        %v746 = vsub.s32 0, %v745
        %v747 = vrot.slane %v691, %v746
        %v748 = vmul.f32 %v734, %v743
        %v749 = vmul.f32 %v734, %v747
        %v750 = vmul.f32 %v738, %v743
        %v751 = vmul.f32 %v738, %v747
        %v752 = vadd.f32 %v728, %v748
        %v753 = vadd.f32 %v729, %v749
        %v754 = vadd.f32 %v730, %v750
        %v755 = vadd.f32 %v731, %v751
        %757 = vset.pattern.permute.xlu0 0
        %758 = vperm.xlu0 %757, %v662
        %v759 = vpop.permute.xlu0 %758
        %762 = vset.pattern.permute.xlu0 0
        %763 = vperm.xlu0 %762, %v663
        %v764 = vpop.permute.xlu0 %763
        %v766 = vadd.f32 %v752, %v759
        %v767 = vadd.f32 %v753, %v759
        %v768 = vadd.f32 %v754, %v764
        %v769 = vadd.f32 %v755, %v764
        %vm770 = vcmp.ge.f32.partialorder %v766, 0.0
        %vm771 = vcmp.ge.f32.partialorder %v767, 0.0
        %vm772 = vcmp.ge.f32.partialorder %v768, 0.0
        %vm773 = vcmp.ge.f32.partialorder %v769, 0.0
        %v774 = vmul.f32 %v766, 0.01
        %v775 = vmul.f32 %v767, 0.01
        %v776 = vmul.f32 %v768, 0.01
        %v777 = vmul.f32 %v769, 0.01
        %v778 = vsel %vm770, %v766, %v774
        %v779 = vsel %vm771, %v767, %v775
        %v780 = vsel %vm772, %v768, %v776
        %v781 = vsel %vm773, %v769, %v777
        %v782 = vld [vmem:[#allocation5] sm:$0xff]
        %v783 = vld [vmem:[#allocation5 + $0x8] sm:$0xff]
        %v784 = vld [vmem:[%s4] sm:$0xff]
        %v785 = vld [vmem:[%s4 + $0x8] sm:$0xff]
        %790 = vrot.lane.b32.xlu0 %v778, 1
        %v791 = vpop.permute.xlu0 %790
        %792 = vrot.lane.b32.xlu0 %v779, 1
        %v793 = vpop.permute.xlu0 %792
        %794 = vrot.lane.b32.xlu0 %v780, 1
        %v795 = vpop.permute.xlu0 %794
        %796 = vrot.lane.b32.xlu0 %v781, 1
        %v797 = vpop.permute.xlu0 %796
        %v798 = vsel %vm677, %v791, %v793
        %v799 = vsel %vm677, %v795, %v797
        %v804 = vsel %vm677, 0.0, %v791
        %v805 = vsel %vm677, 0.0, %v795
        %806 = vrot.lane.b32.xlu0 %v778, 127
        %v807 = vpop.permute.xlu0 %806
        %808 = vrot.lane.b32.xlu0 %v779, 127
        %v809 = vpop.permute.xlu0 %808
        %810 = vrot.lane.b32.xlu0 %v780, 127
        %v811 = vpop.permute.xlu0 %810
        %812 = vrot.lane.b32.xlu0 %v781, 127
        %v813 = vpop.permute.xlu0 %812
        %v814 = vsel %vm686, %v807, %v809
        %v815 = vsel %vm686, %v811, %v813
        %v820 = vsel %vm690, %v809, 0.0
        %v821 = vsel %vm690, %v813, 0.0
        %823 = vset.pattern.permute.xlu0 0
        %824 = vperm.xlu0 %823, %v784
        %v825 = vpop.permute.xlu0 %824
        %828 = vset.pattern.permute.xlu0 0
        %829 = vperm.xlu0 %828, %v785
        %v830 = vpop.permute.xlu0 %829
        %vm832 = vcmask 392192
        %v834 = vsel %vm832, %v782, 0
        %v837 = vsel %vm832, %v783, 0
        %839 = vmatprep.subr.mxu0 %v798
        %840 = vmatpush1.msra.mxu0 %v804
        %841 = vmatprep.subr.mxu0 %v799
        %842 = vmatpush1.msra.mxu0 %v805
        %843 = vmatprep.subr.mxu0 %v779
        %844 = vmatpush1.msra.mxu0 %v778
        %845 = vmatprep.subr.mxu0 %v781
        %846 = vmatpush1.msra.mxu0 %v780
        %847 = vmatprep.subr.mxu0 %v820
        %848 = vmatpush1.msra.mxu0 %v814
        %849 = vmatprep.subr.mxu0 %v821
        %850 = vmatpush1.msra.mxu0 %v815
        %851 = vmatprep.subr.mxu0 0.0
        %852 = vmatpush1.msra.mxu0 0.0
        %853 = vmatprep.subr.mxu0 0.0
        %854 = vmatpush1.msra.mxu0 0.0
        %855 = vmatprep.subr.mxu0 0.0
        %856 = vmatpush1.msra.mxu0 0.0
        %857 = vmatprep.subr.mxu0 0.0
        %858 = vmatpush1.msra.mxu0 0.0
        %859 = vmatprep.subr.mxu0 0.0
        %860 = vmatpush1.msra.mxu0 0.0
        %861 = vmatprep.subr.mxu0 0.0
        %862 = vmatpush1.msra.mxu0 0.0
        %863 = vmatprep.subr.mxu0 0.0
        %864 = vmatpush1.msra.mxu0 0.0
        %865 = vmatprep.subr.mxu0 0.0
        %866 = vmatpush1.msra.mxu0 0.0
        %867 = vmatprep.subr.mxu0 0.0
        %868 = vmatpush1.msra.mxu0 0.0
        %869 = vmatprep.subr.mxu0 0.0
        %870 = vmatpush1.msra.mxu0 0.0
        %871 = vmatprep.subr.mxu0 0.0
        %872 = vmatpush1.msra.mxu0 0.0
        %873 = vmatprep.subr.mxu0 0.0
        %874 = vmatpush1.msra.mxu0 0.0
        %875 = vmatprep.subr.mxu0 0.0
        %876 = vmatpush1.msra.mxu0 0.0
        %877 = vmatprep.subr.mxu0 0.0
        %878 = vmatpush1.msra.mxu0 0.0
        %879 = vmatprep.subr.mxu0 0.0
        %880 = vmatpush1.msra.mxu0 0.0
        %881 = vmatprep.subr.mxu0 0.0
        %882 = vmatpush1.msra.mxu0 0.0
        %883 = vmatprep.subr.mxu0 0.0
        %884 = vmatpush1.msra.mxu0 0.0
        %885 = vmatprep.subr.mxu0 0.0
        %886 = vmatpush1.msra.mxu0 0.0
        %887 = vmatprep.subr.mxu0 0.0
        %888 = vmatpush1.msra.mxu0 0.0
        %889 = vmatprep.subr.mxu0 0.0
        %890 = vmatpush1.msra.mxu0 0.0
        %891 = vmatprep.subr.mxu0 0.0
        %892 = vmatpush1.msra.mxu0 0.0
        %893 = vmatprep.subr.mxu0 0.0
        %894 = vmatpush1.msra.mxu0 0.0
        %895 = vmatprep.subr.mxu0 0.0
        %896 = vmatpush1.msra.mxu0 0.0
        %897 = vmatprep.subr.mxu0 0.0
        %898 = vmatpush1.msra.mxu0 0.0
        %899 = vmatprep.subr.mxu0 0.0
        %900 = vmatpush1.msra.mxu0 0.0
        %901 = vmatprep.subr.mxu0 0.0
        %902 = vmatpush1.msra.mxu0 0.0
        %903 = vmatprep.mubr.f32.mxu0 0.0
        %904 = vmatmul.mubr.f32.gmra.mrb[0].mxu0 %v834
        %v905 = vpop.f32.mrb[0].mxu0
        %v906 = vadd.f32 %v825, %v905
        %v907 = vpop.f32.mrb[0].mxu0
        %v908 = vadd.f32 %v825, %v907
        %909 = vmatprep.mubr.f32.mxu0 0.0
        %910 = vmatmul.mubr.f32.gmra.mrb[0].mxu0 %v837
        %v911 = vpop.f32.mrb[0].mxu0
        %v912 = vadd.f32 %v830, %v911
        %v913 = vpop.f32.mrb[0].mxu0
        %v914 = vadd.f32 %v830, %v913
        %915 = vdwg.mxu0
        %vm916 = vcmp.ge.f32.partialorder %v906, 0.0
        %vm917 = vcmp.ge.f32.partialorder %v908, 0.0
        %vm918 = vcmp.ge.f32.partialorder %v912, 0.0
        %vm919 = vcmp.ge.f32.partialorder %v914, 0.0
        %v920 = vmul.f32 %v906, 0.01
        %v921 = vmul.f32 %v908, 0.01
        %v922 = vmul.f32 %v912, 0.01
        %v923 = vmul.f32 %v914, 0.01
        %v924 = vsel %vm916, %v906, %v920
        %v925 = vsel %vm917, %v908, %v921
        %v926 = vsel %vm918, %v912, %v922
        %v927 = vsel %vm919, %v914, %v923
        %v928 = vld [vmem:[#allocation7] sm:$0xff]
        %v929 = vld [vmem:[#allocation7 + $0x8] sm:$0xff]
        %v930 = vld [vmem:[%s6] sm:$0xff]
        %v931 = vld [vmem:[%s6 + $0x8] sm:$0xff]
        %936 = vrot.lane.b32.xlu0 %v924, 1
        %v937 = vpop.permute.xlu0 %936
        %938 = vrot.lane.b32.xlu0 %v925, 1
        %v939 = vpop.permute.xlu0 %938
        %940 = vrot.lane.b32.xlu0 %v926, 1
        %v941 = vpop.permute.xlu0 %940
        %942 = vrot.lane.b32.xlu0 %v927, 1
        %v943 = vpop.permute.xlu0 %942
        %v944 = vsel %vm677, %v937, %v939
        %v945 = vsel %vm677, %v941, %v943
        %v950 = vsel %vm677, 0.0, %v937
        %v951 = vsel %vm677, 0.0, %v941
        %952 = vrot.lane.b32.xlu0 %v924, 127
        %v953 = vpop.permute.xlu0 %952
        %954 = vrot.lane.b32.xlu0 %v925, 127
        %v955 = vpop.permute.xlu0 %954
        %956 = vrot.lane.b32.xlu0 %v926, 127
        %v957 = vpop.permute.xlu0 %956
        %958 = vrot.lane.b32.xlu0 %v927, 127
        %v959 = vpop.permute.xlu0 %958
        %v960 = vsel %vm686, %v953, %v955
        %v961 = vsel %vm686, %v957, %v959
        %v966 = vsel %vm690, %v955, 0.0
        %v967 = vsel %vm690, %v959, 0.0
        %969 = vset.pattern.permute.xlu0 0
        %970 = vperm.xlu0 %969, %v930
        %v971 = vpop.permute.xlu0 %970
        %974 = vset.pattern.permute.xlu0 0
        %975 = vperm.xlu0 %974, %v931
        %v976 = vpop.permute.xlu0 %975
        %v979 = vsel %vm832, %v928, 0
        %v982 = vsel %vm832, %v929, 0
        %984 = vmatprep.subr.mxu0 %v944
        %985 = vmatpush1.msra.mxu0 %v950
        %986 = vmatprep.subr.mxu0 %v945
        %987 = vmatpush1.msra.mxu0 %v951
        %988 = vmatprep.subr.mxu0 %v925
        %989 = vmatpush1.msra.mxu0 %v924
        %990 = vmatprep.subr.mxu0 %v927
        %991 = vmatpush1.msra.mxu0 %v926
        %992 = vmatprep.subr.mxu0 %v966
        %993 = vmatpush1.msra.mxu0 %v960
        %994 = vmatprep.subr.mxu0 %v967
        %995 = vmatpush1.msra.mxu0 %v961
        %996 = vmatprep.subr.mxu0 0.0
        %997 = vmatpush1.msra.mxu0 0.0
        %998 = vmatprep.subr.mxu0 0.0
        %999 = vmatpush1.msra.mxu0 0.0
        %1000 = vmatprep.subr.mxu0 0.0
        %1001 = vmatpush1.msra.mxu0 0.0
        %1002 = vmatprep.subr.mxu0 0.0
        %1003 = vmatpush1.msra.mxu0 0.0
        %1004 = vmatprep.subr.mxu0 0.0
        %1005 = vmatpush1.msra.mxu0 0.0
        %1006 = vmatprep.subr.mxu0 0.0
        %1007 = vmatpush1.msra.mxu0 0.0
        %1008 = vmatprep.subr.mxu0 0.0
        %1009 = vmatpush1.msra.mxu0 0.0
        %1010 = vmatprep.subr.mxu0 0.0
        %1011 = vmatpush1.msra.mxu0 0.0
        %1012 = vmatprep.subr.mxu0 0.0
        %1013 = vmatpush1.msra.mxu0 0.0
        %1014 = vmatprep.subr.mxu0 0.0
        %1015 = vmatpush1.msra.mxu0 0.0
        %1016 = vmatprep.subr.mxu0 0.0
        %1017 = vmatpush1.msra.mxu0 0.0
        %1018 = vmatprep.subr.mxu0 0.0
        %1019 = vmatpush1.msra.mxu0 0.0
        %1020 = vmatprep.subr.mxu0 0.0
        %1021 = vmatpush1.msra.mxu0 0.0
        %1022 = vmatprep.subr.mxu0 0.0
        %1023 = vmatpush1.msra.mxu0 0.0
        %1024 = vmatprep.subr.mxu0 0.0
        %1025 = vmatpush1.msra.mxu0 0.0
        %1026 = vmatprep.subr.mxu0 0.0
        %1027 = vmatpush1.msra.mxu0 0.0
        %1028 = vmatprep.subr.mxu0 0.0
        %1029 = vmatpush1.msra.mxu0 0.0
        %1030 = vmatprep.subr.mxu0 0.0
        %1031 = vmatpush1.msra.mxu0 0.0
        %1032 = vmatprep.subr.mxu0 0.0
        %1033 = vmatpush1.msra.mxu0 0.0
        %1034 = vmatprep.subr.mxu0 0.0
        %1035 = vmatpush1.msra.mxu0 0.0
        %1036 = vmatprep.subr.mxu0 0.0
        %1037 = vmatpush1.msra.mxu0 0.0
        %1038 = vmatprep.subr.mxu0 0.0
        %1039 = vmatpush1.msra.mxu0 0.0
        %1040 = vmatprep.subr.mxu0 0.0
        %1041 = vmatpush1.msra.mxu0 0.0
        %1042 = vmatprep.subr.mxu0 0.0
        %1043 = vmatpush1.msra.mxu0 0.0
        %1044 = vmatprep.subr.mxu0 0.0
        %1045 = vmatpush1.msra.mxu0 0.0
        %1046 = vmatprep.subr.mxu0 0.0
        %1047 = vmatpush1.msra.mxu0 0.0
        %1048 = vmatprep.mubr.f32.mxu0 0.0
        %1049 = vmatmul.mubr.f32.gmra.mrb[0].mxu0 %v979
        %v1050 = vpop.f32.mrb[0].mxu0
        %v1051 = vadd.f32 %v971, %v1050
        %v1052 = vpop.f32.mrb[0].mxu0
        %v1053 = vadd.f32 %v971, %v1052
        %1054 = vmatprep.mubr.f32.mxu0 0.0
        %1055 = vmatmul.mubr.f32.gmra.mrb[0].mxu0 %v982
        %v1056 = vpop.f32.mrb[0].mxu0
        %v1057 = vadd.f32 %v976, %v1056
        %v1058 = vpop.f32.mrb[0].mxu0
        %v1059 = vadd.f32 %v976, %v1058
        %1060 = vdwg.mxu0
        %v1061 = vadd.f32 %v1051, %v778
        %v1062 = vadd.f32 %v1053, %v779
        %v1063 = vadd.f32 %v1057, %v780
        %v1064 = vadd.f32 %v1059, %v781
        %vm1065 = vcmp.ge.f32.partialorder %v1061, 0.0
        %vm1066 = vcmp.ge.f32.partialorder %v1062, 0.0
        %vm1067 = vcmp.ge.f32.partialorder %v1063, 0.0
        %vm1068 = vcmp.ge.f32.partialorder %v1064, 0.0
        %v1069 = vmul.f32 %v1061, 0.01
        %v1070 = vmul.f32 %v1062, 0.01
        %v1071 = vmul.f32 %v1063, 0.01
        %v1072 = vmul.f32 %v1064, 0.01
        %v1073 = vsel %vm1065, %v1061, %v1069
        %v1074 = vsel %vm1066, %v1062, %v1070
        %v1075 = vsel %vm1067, %v1063, %v1071
        %v1076 = vsel %vm1068, %v1064, %v1072
        %v1077 = vld [vmem:[#allocation8] sm:$0xff]
        %v1078 = vld [vmem:[%s8] sm:$0xff]
        %1083 = vrot.lane.b32.xlu0 %v1073, 1
        %v1084 = vpop.permute.xlu0 %1083
        %1085 = vrot.lane.b32.xlu0 %v1074, 1
        %v1086 = vpop.permute.xlu0 %1085
        %1087 = vrot.lane.b32.xlu0 %v1075, 1
        %v1088 = vpop.permute.xlu0 %1087
        %1089 = vrot.lane.b32.xlu0 %v1076, 1
        %v1090 = vpop.permute.xlu0 %1089
        %v1091 = vsel %vm677, %v1084, %v1086
        %v1092 = vsel %vm677, %v1088, %v1090
        %v1097 = vsel %vm677, 0.0, %v1084
        %v1098 = vsel %vm677, 0.0, %v1088
        %1099 = vrot.lane.b32.xlu0 %v1073, 127
        %v1100 = vpop.permute.xlu0 %1099
        %1101 = vrot.lane.b32.xlu0 %v1074, 127
        %v1102 = vpop.permute.xlu0 %1101
        %1103 = vrot.lane.b32.xlu0 %v1075, 127
        %v1104 = vpop.permute.xlu0 %1103
        %1105 = vrot.lane.b32.xlu0 %v1076, 127
        %v1106 = vpop.permute.xlu0 %1105
        %v1107 = vsel %vm686, %v1100, %v1102
        %v1108 = vsel %vm686, %v1104, %v1106
        %v1113 = vsel %vm690, %v1102, 0.0
        %v1114 = vsel %vm690, %v1106, 0.0
        %1116 = vset.pattern.permute.xlu0 0
        %1117 = vperm.xlu0 %1116, %v1078
        %v1118 = vpop.permute.xlu0 %1117
        %v1121 = vsel %vm832, %v1077, 0
        %1123 = vmatprep.subr.mxu0 %v1091
        %1124 = vmatpush1.msra.mxu0 %v1097
        %1125 = vmatprep.subr.mxu0 %v1092
        %1126 = vmatpush1.msra.mxu0 %v1098
        %1127 = vmatprep.subr.mxu0 %v1074
        %1128 = vmatpush1.msra.mxu0 %v1073
        %1129 = vmatprep.subr.mxu0 %v1076
        %1130 = vmatpush1.msra.mxu0 %v1075
        %1131 = vmatprep.subr.mxu0 %v1113
        %1132 = vmatpush1.msra.mxu0 %v1107
        %1133 = vmatprep.subr.mxu0 %v1114
        %1134 = vmatpush1.msra.mxu0 %v1108
        %1135 = vmatprep.subr.mxu0 0.0
        %1136 = vmatpush1.msra.mxu0 0.0
        %1137 = vmatprep.subr.mxu0 0.0
        %1138 = vmatpush1.msra.mxu0 0.0
        %1139 = vmatprep.subr.mxu0 0.0
        %1140 = vmatpush1.msra.mxu0 0.0
        %1141 = vmatprep.subr.mxu0 0.0
        %1142 = vmatpush1.msra.mxu0 0.0
        %1143 = vmatprep.subr.mxu0 0.0
        %1144 = vmatpush1.msra.mxu0 0.0
        %1145 = vmatprep.subr.mxu0 0.0
        %1146 = vmatpush1.msra.mxu0 0.0
        %1147 = vmatprep.subr.mxu0 0.0
        %1148 = vmatpush1.msra.mxu0 0.0
        %1149 = vmatprep.subr.mxu0 0.0
        %1150 = vmatpush1.msra.mxu0 0.0
        %1151 = vmatprep.subr.mxu0 0.0
        %1152 = vmatpush1.msra.mxu0 0.0
        %1153 = vmatprep.subr.mxu0 0.0
        %1154 = vmatpush1.msra.mxu0 0.0
        %1155 = vmatprep.subr.mxu0 0.0
        %1156 = vmatpush1.msra.mxu0 0.0
        %1157 = vmatprep.subr.mxu0 0.0
        %1158 = vmatpush1.msra.mxu0 0.0
        %1159 = vmatprep.subr.mxu0 0.0
        %1160 = vmatpush1.msra.mxu0 0.0
        %1161 = vmatprep.subr.mxu0 0.0
        %1162 = vmatpush1.msra.mxu0 0.0
        %1163 = vmatprep.subr.mxu0 0.0
        %1164 = vmatpush1.msra.mxu0 0.0
        %1165 = vmatprep.subr.mxu0 0.0
        %1166 = vmatpush1.msra.mxu0 0.0
        %1167 = vmatprep.subr.mxu0 0.0
        %1168 = vmatpush1.msra.mxu0 0.0
        %1169 = vmatprep.subr.mxu0 0.0
        %1170 = vmatpush1.msra.mxu0 0.0
        %1171 = vmatprep.subr.mxu0 0.0
        %1172 = vmatpush1.msra.mxu0 0.0
        %1173 = vmatprep.subr.mxu0 0.0
        %1174 = vmatpush1.msra.mxu0 0.0
        %1175 = vmatprep.subr.mxu0 0.0
        %1176 = vmatpush1.msra.mxu0 0.0
        %1177 = vmatprep.subr.mxu0 0.0
        %1178 = vmatpush1.msra.mxu0 0.0
        %1179 = vmatprep.subr.mxu0 0.0
        %1180 = vmatpush1.msra.mxu0 0.0
        %1181 = vmatprep.subr.mxu0 0.0
        %1182 = vmatpush1.msra.mxu0 0.0
        %1183 = vmatprep.subr.mxu0 0.0
        %1184 = vmatpush1.msra.mxu0 0.0
        %1185 = vmatprep.subr.mxu0 0.0
        %1186 = vmatpush1.msra.mxu0 0.0
        %1187 = vmatprep.mubr.f32.mxu0 0.0
        %1188 = vmatmul.mubr.f32.gmra.mrb[0].mxu0 %v1121
        %v1189 = vpop.f32.mrb[0].mxu0
        %v1190 = vadd.f32 %v1118, %v1189
        %v1191 = vpop.f32.mrb[0].mxu0
        %v1192 = vadd.f32 %v1118, %v1191
        %1193 = vdwg.mxu0
        %vm1194 = vcmp.ge.f32.partialorder %v1190, 0.0
        %vm1195 = vcmp.ge.f32.partialorder %v1192, 0.0
        %v1196 = vmul.f32 %v1190, 0.01
        %v1197 = vmul.f32 %v1192, 0.01
        %v1198 = vsel %vm1194, %v1190, %v1196
        %v1199 = vsel %vm1195, %v1192, %v1197
        %v1200 = vld [vmem:[#allocation10] sm:$0xff]
        %v1201 = vld [vmem:[%s10] sm:$0xff]
        %1204 = vrot.lane.b32.xlu0 %v1198, 1
        %v1205 = vpop.permute.xlu0 %1204
        %1206 = vrot.lane.b32.xlu0 %v1199, 1
        %v1207 = vpop.permute.xlu0 %1206
        %v1208 = vsel %vm677, %v1205, %v1207
        %v1211 = vsel %vm677, 0.0, %v1205
        %1212 = vrot.lane.b32.xlu0 %v1198, 127
        %v1213 = vpop.permute.xlu0 %1212
        %1214 = vrot.lane.b32.xlu0 %v1199, 127
        %v1215 = vpop.permute.xlu0 %1214
        %v1216 = vsel %vm686, %v1213, %v1215
        %v1219 = vsel %vm690, %v1215, 0.0
        %1221 = vset.pattern.permute.xlu0 0
        %1222 = vperm.xlu0 %1221, %v1201
        %v1223 = vpop.permute.xlu0 %1222
        %vm1225 = vcmask 195584
        %v1227 = vsel %vm1225, %v1200, 0
        %1229 = vmatprep.subr.mxu0 %v1208
        %1230 = vmatpush1.msra.mxu0 %v1211
        %1231 = vmatprep.subr.mxu0 %v1199
        %1232 = vmatpush1.msra.mxu0 %v1198
        %1233 = vmatprep.subr.mxu0 %v1219
        %1234 = vmatpush1.msra.mxu0 %v1216
        %1235 = vmatprep.subr.mxu0 0.0
        %1236 = vmatpush1.msra.mxu0 0.0
        %1237 = vmatprep.subr.mxu0 0.0
        %1238 = vmatpush1.msra.mxu0 0.0
        %1239 = vmatprep.subr.mxu0 0.0
        %1240 = vmatpush1.msra.mxu0 0.0
        %1241 = vmatprep.subr.mxu0 0.0
        %1242 = vmatpush1.msra.mxu0 0.0
        %1243 = vmatprep.subr.mxu0 0.0
        %1244 = vmatpush1.msra.mxu0 0.0
        %1245 = vmatprep.subr.mxu0 0.0
        %1246 = vmatpush1.msra.mxu0 0.0
        %1247 = vmatprep.subr.mxu0 0.0
        %1248 = vmatpush1.msra.mxu0 0.0
        %1249 = vmatprep.subr.mxu0 0.0
        %1250 = vmatpush1.msra.mxu0 0.0
        %1251 = vmatprep.subr.mxu0 0.0
        %1252 = vmatpush1.msra.mxu0 0.0
        %1253 = vmatprep.subr.mxu0 0.0
        %1254 = vmatpush1.msra.mxu0 0.0
        %1255 = vmatprep.subr.mxu0 0.0
        %1256 = vmatpush1.msra.mxu0 0.0
        %1257 = vmatprep.subr.mxu0 0.0
        %1258 = vmatpush1.msra.mxu0 0.0
        %1259 = vmatprep.subr.mxu0 0.0
        %1260 = vmatpush1.msra.mxu0 0.0
        %1261 = vmatprep.subr.mxu0 0.0
        %1262 = vmatpush1.msra.mxu0 0.0
        %1263 = vmatprep.subr.mxu0 0.0
        %1264 = vmatpush1.msra.mxu0 0.0
        %1265 = vmatprep.subr.mxu0 0.0
        %1266 = vmatpush1.msra.mxu0 0.0
        %1267 = vmatprep.subr.mxu0 0.0
        %1268 = vmatpush1.msra.mxu0 0.0
        %1269 = vmatprep.subr.mxu0 0.0
        %1270 = vmatpush1.msra.mxu0 0.0
        %1271 = vmatprep.subr.mxu0 0.0
        %1272 = vmatpush1.msra.mxu0 0.0
        %1273 = vmatprep.subr.mxu0 0.0
        %1274 = vmatpush1.msra.mxu0 0.0
        %1275 = vmatprep.subr.mxu0 0.0
        %1276 = vmatpush1.msra.mxu0 0.0
        %1277 = vmatprep.subr.mxu0 0.0
        %1278 = vmatpush1.msra.mxu0 0.0
        %1279 = vmatprep.subr.mxu0 0.0
        %1280 = vmatpush1.msra.mxu0 0.0
        %1281 = vmatprep.subr.mxu0 0.0
        %1282 = vmatpush1.msra.mxu0 0.0
        %1283 = vmatprep.subr.mxu0 0.0
        %1284 = vmatpush1.msra.mxu0 0.0
        %1285 = vmatprep.subr.mxu0 0.0
        %1286 = vmatpush1.msra.mxu0 0.0
        %1287 = vmatprep.subr.mxu0 0.0
        %1288 = vmatpush1.msra.mxu0 0.0
        %1289 = vmatprep.subr.mxu0 0.0
        %1290 = vmatpush1.msra.mxu0 0.0
        %1291 = vmatprep.subr.mxu0 0.0
        %1292 = vmatpush1.msra.mxu0 0.0
        %1293 = vmatprep.mubr.f32.mxu0 0.0
        %1294 = vmatmul.mubr.f32.gmra.mrb[0].mxu0 %v1227
        %v1295 = vpop.f32.mrb[0].mxu0
        %v1296 = vadd.f32 %v1223, %v1295
        %v1297 = vpop.f32.mrb[0].mxu0
        %v1298 = vadd.f32 %v1223, %v1297
        %1299 = vdwg.mxu0
        %vm1300 = vcmp.ge.f32.partialorder %v1296, 0.0
        %vm1301 = vcmp.ge.f32.partialorder %v1298, 0.0
        %v1302 = vmul.f32 %v1296, 0.01
        %v1303 = vmul.f32 %v1298, 0.01
        %v1304 = vsel %vm1300, %v1296, %v1302
        %v1305 = vsel %vm1301, %v1298, %v1303
        %v1306 = vld [vmem:[#allocation11] sm:$0xff]
        %v1307 = vld [vmem:[%s12] sm:$0xff]
        %1310 = vrot.lane.b32.xlu0 %v1304, 1
        %v1311 = vpop.permute.xlu0 %1310
        %1312 = vrot.lane.b32.xlu0 %v1305, 1
        %v1313 = vpop.permute.xlu0 %1312
        %v1314 = vsel %vm677, %v1311, %v1313
        %v1317 = vsel %vm677, 0.0, %v1311
        %1318 = vrot.lane.b32.xlu0 %v1304, 127
        %v1319 = vpop.permute.xlu0 %1318
        %1320 = vrot.lane.b32.xlu0 %v1305, 127
        %v1321 = vpop.permute.xlu0 %1320
        %v1322 = vsel %vm686, %v1319, %v1321
        %v1325 = vsel %vm690, %v1321, 0.0
        %1327 = vset.pattern.permute.xlu0 0
        %1328 = vperm.xlu0 %1327, %v1307
        %v1329 = vpop.permute.xlu0 %1328
        %v1332 = vsel %vm1225, %v1306, 0
        %1334 = vmatprep.subr.mxu0 %v1314
        %1335 = vmatpush1.msra.mxu0 %v1317
        %1336 = vmatprep.subr.mxu0 %v1305
        %1337 = vmatpush1.msra.mxu0 %v1304
        %1338 = vmatprep.subr.mxu0 %v1325
        %1339 = vmatpush1.msra.mxu0 %v1322
        %1340 = vmatprep.subr.mxu0 0.0
        %1341 = vmatpush1.msra.mxu0 0.0
        %1342 = vmatprep.subr.mxu0 0.0
        %1343 = vmatpush1.msra.mxu0 0.0
        %1344 = vmatprep.subr.mxu0 0.0
        %1345 = vmatpush1.msra.mxu0 0.0
        %1346 = vmatprep.subr.mxu0 0.0
        %1347 = vmatpush1.msra.mxu0 0.0
        %1348 = vmatprep.subr.mxu0 0.0
        %1349 = vmatpush1.msra.mxu0 0.0
        %1350 = vmatprep.subr.mxu0 0.0
        %1351 = vmatpush1.msra.mxu0 0.0
        %1352 = vmatprep.subr.mxu0 0.0
        %1353 = vmatpush1.msra.mxu0 0.0
        %1354 = vmatprep.subr.mxu0 0.0
        %1355 = vmatpush1.msra.mxu0 0.0
        %1356 = vmatprep.subr.mxu0 0.0
        %1357 = vmatpush1.msra.mxu0 0.0
        %1358 = vmatprep.subr.mxu0 0.0
        %1359 = vmatpush1.msra.mxu0 0.0
        %1360 = vmatprep.subr.mxu0 0.0
        %1361 = vmatpush1.msra.mxu0 0.0
        %1362 = vmatprep.subr.mxu0 0.0
        %1363 = vmatpush1.msra.mxu0 0.0
        %1364 = vmatprep.subr.mxu0 0.0
        %1365 = vmatpush1.msra.mxu0 0.0
        %1366 = vmatprep.subr.mxu0 0.0
        %1367 = vmatpush1.msra.mxu0 0.0
        %1368 = vmatprep.subr.mxu0 0.0
        %1369 = vmatpush1.msra.mxu0 0.0
        %1370 = vmatprep.subr.mxu0 0.0
        %1371 = vmatpush1.msra.mxu0 0.0
        %1372 = vmatprep.subr.mxu0 0.0
        %1373 = vmatpush1.msra.mxu0 0.0
        %1374 = vmatprep.subr.mxu0 0.0
        %1375 = vmatpush1.msra.mxu0 0.0
        %1376 = vmatprep.subr.mxu0 0.0
        %1377 = vmatpush1.msra.mxu0 0.0
        %1378 = vmatprep.subr.mxu0 0.0
        %1379 = vmatpush1.msra.mxu0 0.0
        %1380 = vmatprep.subr.mxu0 0.0
        %1381 = vmatpush1.msra.mxu0 0.0
        %1382 = vmatprep.subr.mxu0 0.0
        %1383 = vmatpush1.msra.mxu0 0.0
        %1384 = vmatprep.subr.mxu0 0.0
        %1385 = vmatpush1.msra.mxu0 0.0
        %1386 = vmatprep.subr.mxu0 0.0
        %1387 = vmatpush1.msra.mxu0 0.0
        %1388 = vmatprep.subr.mxu0 0.0
        %1389 = vmatpush1.msra.mxu0 0.0
        %1390 = vmatprep.subr.mxu0 0.0
        %1391 = vmatpush1.msra.mxu0 0.0
        %1392 = vmatprep.subr.mxu0 0.0
        %1393 = vmatpush1.msra.mxu0 0.0
        %1394 = vmatprep.subr.mxu0 0.0
        %1395 = vmatpush1.msra.mxu0 0.0
        %1396 = vmatprep.subr.mxu0 0.0
        %1397 = vmatpush1.msra.mxu0 0.0
        %1398 = vmatprep.mubr.f32.mxu0 0.0
        %1399 = vmatmul.mubr.f32.gmra.mrb[0].mxu0 %v1332
        %v1400 = vpop.f32.mrb[0].mxu0
        %v1401 = vadd.f32 %v1329, %v1400
        %v1402 = vpop.f32.mrb[0].mxu0
        %v1403 = vadd.f32 %v1329, %v1402
        %1404 = vdwg.mxu0
        %v1405 = vadd.f32 %v1401, %v1198
        %v1406 = vadd.f32 %v1403, %v1199
        %vm1407 = vcmp.ge.f32.partialorder %v1405, 0.0
        %vm1408 = vcmp.ge.f32.partialorder %v1406, 0.0
        %v1409 = vmul.f32 %v1405, 0.01
        %v1410 = vmul.f32 %v1406, 0.01
        %v1411 = vsel %vm1407, %v1405, %v1409
        %v1412 = vsel %vm1408, %v1406, %v1410
        %v1413 = vld [vmem:[#allocation14] sm:$0xf]
        %v1414 = vld [vmem:[#allocation13] sm:$0xff]
        %v1415 = vld [vmem:[#allocation13 + $0x8] sm:$0xff]
        %v1416 = vld [vmem:[#allocation13 + $0x10] sm:$0xff]
        %v1417 = vld [vmem:[#allocation13 + $0x18] sm:$0xff]
        %v1418 = vld [vmem:[#allocation13 + $0x20] sm:$0xff]
        %v1419 = vld [vmem:[#allocation13 + $0x28] sm:$0xff]
        %v1420 = vld [vmem:[#allocation13 + $0x30] sm:$0xff]
        %v1421 = vld [vmem:[#allocation13 + $0x38] sm:$0xff]
        %v1422 = vld [vmem:[#allocation13 + $0x40] sm:$0xff]
        %v1423 = vld [vmem:[#allocation13 + $0x48] sm:$0xff]
        %v1424 = vld [vmem:[#allocation13 + $0x50] sm:$0xff]
        %v1425 = vld [vmem:[#allocation13 + $0x58] sm:$0xff]
        %v1426 = vld [vmem:[#allocation13 + $0x60] sm:$0xff]
        %v1427 = vld [vmem:[#allocation13 + $0x68] sm:$0xff]
        %v1428 = vld [vmem:[#allocation13 + $0x70] sm:$0xff]
        %v1429 = vld [vmem:[#allocation13 + $0x78] sm:$0xff]
        %v1430 = vld [vmem:[#allocation13 + $0x80] sm:$0xff]
        %v1431 = vld [vmem:[#allocation13 + $0x88] sm:$0xff]
        %v1432 = vld [vmem:[#allocation13 + $0x90] sm:$0xff]
        %v1433 = vld [vmem:[#allocation13 + $0x98] sm:$0xff]
        %v1434 = vld [vmem:[#allocation13 + $0xa0] sm:$0xff]
        %v1435 = vld [vmem:[#allocation13 + $0xa8] sm:$0xff]
        %v1436 = vld [vmem:[#allocation13 + $0xb0] sm:$0xff]
        %v1437 = vld [vmem:[#allocation13 + $0xb8] sm:$0xff]
        %v1438 = vld [vmem:[#allocation13 + $0xc0] sm:$0xff]
        %v1439 = vld [vmem:[#allocation13 + $0xc8] sm:$0xff]
        %v1440 = vld [vmem:[#allocation13 + $0xd0] sm:$0xff]
        %v1441 = vld [vmem:[#allocation13 + $0xd8] sm:$0xff]
        %v1442 = vld [vmem:[#allocation13 + $0xe0] sm:$0xff]
        %v1443 = vld [vmem:[#allocation13 + $0xe8] sm:$0xff]
        %v1444 = vld [vmem:[#allocation13 + $0xf0] sm:$0xff]
        %v1445 = vld [vmem:[#allocation13 + $0xf8] sm:$0xff]
        %v1446 = vld [vmem:[#allocation13 + $0x100] sm:$0xff]
        %v1447 = vld [vmem:[#allocation13 + $0x108] sm:$0xff]
        %v1448 = vld [vmem:[#allocation13 + $0x110] sm:$0xff]
        %v1449 = vld [vmem:[#allocation13 + $0x118] sm:$0xff]
        %v1450 = vld [vmem:[#allocation13 + $0x120] sm:$0xff]
        %v1451 = vld [vmem:[#allocation13 + $0x128] sm:$0xff]
        %v1452 = vld [vmem:[#allocation13 + $0x130] sm:$0xff]
        %v1453 = vld [vmem:[#allocation13 + $0x138] sm:$0xff]
        %v1454 = vld [vmem:[#allocation13 + $0x140] sm:$0xff]
        %v1455 = vld [vmem:[#allocation13 + $0x148] sm:$0xff]
        %v1456 = vld [vmem:[#allocation13 + $0x150] sm:$0xff]
        %v1457 = vld [vmem:[#allocation13 + $0x158] sm:$0xff]
        %v1458 = vld [vmem:[#allocation13 + $0x160] sm:$0xff]
        %v1459 = vld [vmem:[#allocation13 + $0x168] sm:$0xff]
        %v1460 = vld [vmem:[#allocation13 + $0x170] sm:$0xff]
        %v1461 = vld [vmem:[#allocation13 + $0x178] sm:$0xff]
        %v1462 = vld [vmem:[#allocation13 + $0x180] sm:$0xff]
        %v1463 = vld [vmem:[#allocation13 + $0x188] sm:$0xff]
        %v1464 = vld [vmem:[#allocation13 + $0x190] sm:$0xff]
        %v1465 = vld [vmem:[#allocation13 + $0x198] sm:$0xff]
        %v1466 = vld [vmem:[#allocation13 + $0x1a0] sm:$0xff]
        %v1467 = vld [vmem:[#allocation13 + $0x1a8] sm:$0xff]
        %v1468 = vld [vmem:[#allocation13 + $0x1b0] sm:$0xff]
        %v1469 = vld [vmem:[#allocation13 + $0x1b8] sm:$0xff]
        %v1470 = vld [vmem:[#allocation13 + $0x1c0] sm:$0xff]
        %v1471 = vld [vmem:[#allocation13 + $0x1c8] sm:$0xff]
        %v1472 = vld [vmem:[#allocation13 + $0x1d0] sm:$0xff]
        %v1473 = vld [vmem:[#allocation13 + $0x1d8] sm:$0xff]
        %v1474 = vld [vmem:[#allocation13 + $0x1e0] sm:$0xff]
        %v1475 = vld [vmem:[#allocation13 + $0x1e8] sm:$0xff]
        %v1476 = vld [vmem:[#allocation13 + $0x1f0] sm:$0xff]
        %v1477 = vld [vmem:[#allocation13 + $0x1f8] sm:$0xff]
        %v1478 = vld [vmem:[#allocation13 + $0x200] sm:$0xff]
        %v1479 = vld [vmem:[#allocation13 + $0x208] sm:$0xff]
        %v1480 = vld [vmem:[#allocation13 + $0x210] sm:$0xff]
        %v1481 = vld [vmem:[#allocation13 + $0x218] sm:$0xff]
        %v1482 = vld [vmem:[#allocation13 + $0x220] sm:$0xff]
        %v1483 = vld [vmem:[#allocation13 + $0x228] sm:$0xff]
        %v1484 = vld [vmem:[#allocation13 + $0x230] sm:$0xff]
        %v1485 = vld [vmem:[#allocation13 + $0x238] sm:$0xff]
        %v1486 = vld [vmem:[#allocation13 + $0x240] sm:$0xff]
        %v1487 = vld [vmem:[#allocation13 + $0x248] sm:$0xff]
        %v1488 = vld [vmem:[#allocation13 + $0x250] sm:$0xff]
        %v1489 = vld [vmem:[#allocation13 + $0x258] sm:$0xff]
        %v1490 = vld [vmem:[#allocation13 + $0x260] sm:$0xff]
        %v1491 = vld [vmem:[#allocation13 + $0x268] sm:$0xff]
        %v1492 = vld [vmem:[#allocation13 + $0x270] sm:$0xff]
        %v1493 = vld [vmem:[#allocation13 + $0x278] sm:$0xff]
        %vm1494 = vcmask 261120
        %v1496 = vsel %vm1494, %v1412, 0
        %1498 = vmatprep.subr.mxu0 %v1415
        %1499 = vmatpush1.msra.mxu0 %v1414
        %1500 = vmatprep.subr.mxu0 %v1419
        %1501 = vmatpush1.msra.mxu0 %v1418
        %1502 = vmatprep.subr.mxu0 %v1423
        %1503 = vmatpush1.msra.mxu0 %v1422
        %1504 = vmatprep.subr.mxu0 %v1427
        %1505 = vmatpush1.msra.mxu0 %v1426
        %1506 = vmatprep.subr.mxu0 %v1431
        %1507 = vmatpush1.msra.mxu0 %v1430
        %1508 = vmatprep.subr.mxu0 %v1435
        %1509 = vmatpush1.msra.mxu0 %v1434
        %1510 = vmatprep.subr.mxu0 %v1439
        %1511 = vmatpush1.msra.mxu0 %v1438
        %1512 = vmatprep.subr.mxu0 %v1443
        %1513 = vmatpush1.msra.mxu0 %v1442
        %1514 = vmatprep.subr.mxu0 %v1447
        %1515 = vmatpush1.msra.mxu0 %v1446
        %1516 = vmatprep.subr.mxu0 %v1451
        %1517 = vmatpush1.msra.mxu0 %v1450
        %1518 = vmatprep.subr.mxu0 %v1455
        %1519 = vmatpush1.msra.mxu0 %v1454
        %1520 = vmatprep.subr.mxu0 %v1459
        %1521 = vmatpush1.msra.mxu0 %v1458
        %1522 = vmatprep.subr.mxu0 %v1463
        %1523 = vmatpush1.msra.mxu0 %v1462
        %1524 = vmatprep.subr.mxu0 %v1467
        %1525 = vmatpush1.msra.mxu0 %v1466
        %1526 = vmatprep.subr.mxu0 %v1471
        %1527 = vmatpush1.msra.mxu0 %v1470
        %1528 = vmatprep.subr.mxu0 %v1475
        %1529 = vmatpush1.msra.mxu0 %v1474
        %1530 = vmatprep.subr.mxu0 %v1479
        %1531 = vmatpush1.msra.mxu0 %v1478
        %1532 = vmatprep.subr.mxu0 %v1483
        %1533 = vmatpush1.msra.mxu0 %v1482
        %1534 = vmatprep.subr.mxu0 %v1487
        %1535 = vmatpush1.msra.mxu0 %v1486
        %1536 = vmatprep.subr.mxu0 %v1491
        %1537 = vmatpush1.msra.mxu0 %v1490
        %1538 = vmatprep.subr.mxu0 0.0
        %1539 = vmatpush1.msra.mxu0 0.0
        %1540 = vmatprep.subr.mxu0 0.0
        %1541 = vmatpush1.msra.mxu0 0.0
        %1542 = vmatprep.subr.mxu0 0.0
        %1543 = vmatpush1.msra.mxu0 0.0
        %1544 = vmatprep.subr.mxu0 0.0
        %1545 = vmatpush1.msra.mxu0 0.0
        %1546 = vmatprep.subr.mxu0 0.0
        %1547 = vmatpush1.msra.mxu0 0.0
        %1548 = vmatprep.subr.mxu0 0.0
        %1549 = vmatpush1.msra.mxu0 0.0
        %1550 = vmatprep.subr.mxu0 0.0
        %1551 = vmatpush1.msra.mxu0 0.0
        %1552 = vmatprep.subr.mxu0 0.0
        %1553 = vmatpush1.msra.mxu0 0.0
        %1554 = vmatprep.subr.mxu0 0.0
        %1555 = vmatpush1.msra.mxu0 0.0
        %1556 = vmatprep.subr.mxu0 0.0
        %1557 = vmatpush1.msra.mxu0 0.0
        %1558 = vmatprep.subr.mxu0 0.0
        %1559 = vmatpush1.msra.mxu0 0.0
        %1560 = vmatprep.subr.mxu0 0.0
        %1561 = vmatpush1.msra.mxu0 0.0
        %1562 = vmatprep.mubr.f32.mxu0 %v1496
        %1563 = vmatmul.mubr.f32.gmra.mrb[0].mxu0 %v1411
        %v1564 = vpop.f32.mrb[0].mxu0
        %v1565 = vadd.f32 0.0, %v1564
        %v1566 = vpop.f32.mrb[0].mxu0
        %v1567 = vadd.f32 0.0, %v1566
        %1568 = vdwg.mxu0
        %1569 = vmatprep.subr.mxu0 %v1417
        %1570 = vmatpush1.msra.mxu0 %v1416
        %1571 = vmatprep.subr.mxu0 %v1421
        %1572 = vmatpush1.msra.mxu0 %v1420
        %1573 = vmatprep.subr.mxu0 %v1425
        %1574 = vmatpush1.msra.mxu0 %v1424
        %1575 = vmatprep.subr.mxu0 %v1429
        %1576 = vmatpush1.msra.mxu0 %v1428
        %1577 = vmatprep.subr.mxu0 %v1433
        %1578 = vmatpush1.msra.mxu0 %v1432
        %1579 = vmatprep.subr.mxu0 %v1437
        %1580 = vmatpush1.msra.mxu0 %v1436
        %1581 = vmatprep.subr.mxu0 %v1441
        %1582 = vmatpush1.msra.mxu0 %v1440
        %1583 = vmatprep.subr.mxu0 %v1445
        %1584 = vmatpush1.msra.mxu0 %v1444
        %1585 = vmatprep.subr.mxu0 %v1449
        %1586 = vmatpush1.msra.mxu0 %v1448
        %1587 = vmatprep.subr.mxu0 %v1453
        %1588 = vmatpush1.msra.mxu0 %v1452
        %1589 = vmatprep.subr.mxu0 %v1457
        %1590 = vmatpush1.msra.mxu0 %v1456
        %1591 = vmatprep.subr.mxu0 %v1461
        %1592 = vmatpush1.msra.mxu0 %v1460
        %1593 = vmatprep.subr.mxu0 %v1465
        %1594 = vmatpush1.msra.mxu0 %v1464
        %1595 = vmatprep.subr.mxu0 %v1469
        %1596 = vmatpush1.msra.mxu0 %v1468
        %1597 = vmatprep.subr.mxu0 %v1473
        %1598 = vmatpush1.msra.mxu0 %v1472
        %1599 = vmatprep.subr.mxu0 %v1477
        %1600 = vmatpush1.msra.mxu0 %v1476
        %1601 = vmatprep.subr.mxu0 %v1481
        %1602 = vmatpush1.msra.mxu0 %v1480
        %1603 = vmatprep.subr.mxu0 %v1485
        %1604 = vmatpush1.msra.mxu0 %v1484
        %1605 = vmatprep.subr.mxu0 %v1489
        %1606 = vmatpush1.msra.mxu0 %v1488
        %1607 = vmatprep.subr.mxu0 %v1493
        %1608 = vmatpush1.msra.mxu0 %v1492
        %1609 = vmatprep.subr.mxu0 0.0
        %1610 = vmatpush1.msra.mxu0 0.0
        %1611 = vmatprep.subr.mxu0 0.0
        %1612 = vmatpush1.msra.mxu0 0.0
        %1613 = vmatprep.subr.mxu0 0.0
        %1614 = vmatpush1.msra.mxu0 0.0
        %1615 = vmatprep.subr.mxu0 0.0
        %1616 = vmatpush1.msra.mxu0 0.0
        %1617 = vmatprep.subr.mxu0 0.0
        %1618 = vmatpush1.msra.mxu0 0.0
        %1619 = vmatprep.subr.mxu0 0.0
        %1620 = vmatpush1.msra.mxu0 0.0
        %1621 = vmatprep.subr.mxu0 0.0
        %1622 = vmatpush1.msra.mxu0 0.0
        %1623 = vmatprep.subr.mxu0 0.0
        %1624 = vmatpush1.msra.mxu0 0.0
        %1625 = vmatprep.subr.mxu0 0.0
        %1626 = vmatpush1.msra.mxu0 0.0
        %1627 = vmatprep.subr.mxu0 0.0
        %1628 = vmatpush1.msra.mxu0 0.0
        %1629 = vmatprep.subr.mxu0 0.0
        %1630 = vmatpush1.msra.mxu0 0.0
        %1631 = vmatprep.subr.mxu0 0.0
        %1632 = vmatpush1.msra.mxu0 0.0
        %1633 = vmatprep.mubr.f32.mxu0 %v1496
        %1634 = vmatmul.mubr.f32.gmra.mrb[0].mxu0 %v1411
        %v1635 = vpop.f32.mrb[0].mxu0
        %v1636 = vadd.f32 0.0, %v1635
        %v1637 = vpop.f32.mrb[0].mxu0
        %v1638 = vadd.f32 0.0, %v1637
        %1639 = vdwg.mxu0
        %v1644 = vcombine.low %v1565, %v1567
        %v1645 = vcombine.low %v1636, %v1638
        %v1647 = vunpack.c.l.s4 1966171168
        %v1648 = vunpack.c.0.s8 %v1647
        %v1649 = vlaneseq
        %v1650 = vshrl.u32 %v1649, 7
        %v1651 = vsub.s32 %v1648, %v1650
        %v1652 = vrot.slane %v1644, %v1651
        %v1654 = vunpack.c.l.s4 1966171168
        %v1655 = vunpack.c.0.s8 %v1654
        %v1656 = vlaneseq
        %v1657 = vshrl.u32 %v1656, 7
        %v1658 = vsub.s32 %v1655, %v1657
        %v1659 = vrot.slane %v1645, %v1658
        %v1660 = vcombine.low %v1652, %v1659
        %v1662 = vunpack.c.l.s4 1966171168
        %v1663 = vunpack.c.0.s8 %v1662
        %v1664 = vlaneseq
        %v1665 = vshrl.u32 %v1664, 7
        %v1666 = vsub.s32 %v1663, %v1665
        %v1667 = vrot.slane %v1660, %v1666
        %v1669 = vadd.f32 %v1413, %v1667
        %s1670 = scalar_lea.vmem [#allocation13], 640
        %v1671 = vld [vmem:[%s1670] sm:$0xff]
        %v1672 = vld [vmem:[%s1670 + $0x8] sm:$0xff]
        %v1673 = vld [vmem:[%s1670 + $0x10] sm:$0xff]
        %v1674 = vld [vmem:[%s1670 + $0x18] sm:$0xff]
        %v1675 = vld [vmem:[%s1670 + $0x20] sm:$0xff]
        %v1676 = vld [vmem:[%s1670 + $0x28] sm:$0xff]
        %v1677 = vld [vmem:[%s1670 + $0x30] sm:$0xff]
        %v1678 = vld [vmem:[%s1670 + $0x38] sm:$0xff]
        %v1679 = vld [vmem:[%s1670 + $0x40] sm:$0xff]
        %v1680 = vld [vmem:[%s1670 + $0x48] sm:$0xff]
        %v1681 = vld [vmem:[%s1670 + $0x50] sm:$0xff]
        %v1682 = vld [vmem:[%s1670 + $0x58] sm:$0xff]
        %v1683 = vld [vmem:[%s1670 + $0x60] sm:$0xff]
        %v1684 = vld [vmem:[%s1670 + $0x68] sm:$0xff]
        %v1685 = vld [vmem:[%s1670 + $0x70] sm:$0xff]
        %v1686 = vld [vmem:[%s1670 + $0x78] sm:$0xff]
        %v1687 = vld [vmem:[%s1670 + $0x80] sm:$0xff]
        %v1688 = vld [vmem:[%s1670 + $0x88] sm:$0xff]
        %v1689 = vld [vmem:[%s1670 + $0x90] sm:$0xff]
        %v1690 = vld [vmem:[%s1670 + $0x98] sm:$0xff]
        %v1691 = vld [vmem:[%s1670 + $0xa0] sm:$0xff]
        %v1692 = vld [vmem:[%s1670 + $0xa8] sm:$0xff]
        %v1693 = vld [vmem:[%s1670 + $0xb0] sm:$0xff]
        %v1694 = vld [vmem:[%s1670 + $0xb8] sm:$0xff]
        %v1695 = vld [vmem:[%s1670 + $0xc0] sm:$0xff]
        %v1696 = vld [vmem:[%s1670 + $0xc8] sm:$0xff]
        %v1697 = vld [vmem:[%s1670 + $0xd0] sm:$0xff]
        %v1698 = vld [vmem:[%s1670 + $0xd8] sm:$0xff]
        %v1699 = vld [vmem:[%s1670 + $0xe0] sm:$0xff]
        %v1700 = vld [vmem:[%s1670 + $0xe8] sm:$0xff]
        %v1701 = vld [vmem:[%s1670 + $0xf0] sm:$0xff]
        %v1702 = vld [vmem:[%s1670 + $0xf8] sm:$0xff]
        %v1703 = vld [vmem:[%s1670 + $0x100] sm:$0xff]
        %v1704 = vld [vmem:[%s1670 + $0x108] sm:$0xff]
        %v1705 = vld [vmem:[%s1670 + $0x110] sm:$0xff]
        %v1706 = vld [vmem:[%s1670 + $0x118] sm:$0xff]
        %v1707 = vld [vmem:[%s1670 + $0x120] sm:$0xff]
        %v1708 = vld [vmem:[%s1670 + $0x128] sm:$0xff]
        %v1709 = vld [vmem:[%s1670 + $0x130] sm:$0xff]
        %v1710 = vld [vmem:[%s1670 + $0x138] sm:$0xff]
        %v1711 = vld [vmem:[%s1670 + $0x140] sm:$0xff]
        %v1712 = vld [vmem:[%s1670 + $0x148] sm:$0xff]
        %v1713 = vld [vmem:[%s1670 + $0x150] sm:$0xff]
        %v1714 = vld [vmem:[%s1670 + $0x158] sm:$0xff]
        %v1715 = vld [vmem:[%s1670 + $0x160] sm:$0xff]
        %v1716 = vld [vmem:[%s1670 + $0x168] sm:$0xff]
        %v1717 = vld [vmem:[%s1670 + $0x170] sm:$0xff]
        %v1718 = vld [vmem:[%s1670 + $0x178] sm:$0xff]
        %v1719 = vld [vmem:[%s1670 + $0x180] sm:$0xff]
        %v1720 = vld [vmem:[%s1670 + $0x188] sm:$0xff]
        %v1721 = vld [vmem:[%s1670 + $0x190] sm:$0xff]
        %v1722 = vld [vmem:[%s1670 + $0x198] sm:$0xff]
        %v1723 = vld [vmem:[%s1670 + $0x1a0] sm:$0xff]
        %v1724 = vld [vmem:[%s1670 + $0x1a8] sm:$0xff]
        %v1725 = vld [vmem:[%s1670 + $0x1b0] sm:$0xff]
        %v1726 = vld [vmem:[%s1670 + $0x1b8] sm:$0xff]
        %v1727 = vld [vmem:[%s1670 + $0x1c0] sm:$0xff]
        %v1728 = vld [vmem:[%s1670 + $0x1c8] sm:$0xff]
        %v1729 = vld [vmem:[%s1670 + $0x1d0] sm:$0xff]
        %v1730 = vld [vmem:[%s1670 + $0x1d8] sm:$0xff]
        %v1731 = vld [vmem:[%s1670 + $0x1e0] sm:$0xff]
        %v1732 = vld [vmem:[%s1670 + $0x1e8] sm:$0xff]
        %v1733 = vld [vmem:[%s1670 + $0x1f0] sm:$0xff]
        %v1734 = vld [vmem:[%s1670 + $0x1f8] sm:$0xff]
        %v1735 = vld [vmem:[%s1670 + $0x200] sm:$0xff]
        %v1736 = vld [vmem:[%s1670 + $0x208] sm:$0xff]
        %v1737 = vld [vmem:[%s1670 + $0x210] sm:$0xff]
        %v1738 = vld [vmem:[%s1670 + $0x218] sm:$0xff]
        %v1739 = vld [vmem:[%s1670 + $0x220] sm:$0xff]
        %v1740 = vld [vmem:[%s1670 + $0x228] sm:$0xff]
        %v1741 = vld [vmem:[%s1670 + $0x230] sm:$0xff]
        %v1742 = vld [vmem:[%s1670 + $0x238] sm:$0xff]
        %v1743 = vld [vmem:[%s1670 + $0x240] sm:$0xff]
        %v1744 = vld [vmem:[%s1670 + $0x248] sm:$0xff]
        %v1745 = vld [vmem:[%s1670 + $0x250] sm:$0xff]
        %v1746 = vld [vmem:[%s1670 + $0x258] sm:$0xff]
        %v1747 = vld [vmem:[%s1670 + $0x260] sm:$0xff]
        %v1748 = vld [vmem:[%s1670 + $0x268] sm:$0xff]
        %v1749 = vld [vmem:[%s1670 + $0x270] sm:$0xff]
        %v1750 = vld [vmem:[%s1670 + $0x278] sm:$0xff]
        %v1752 = vrot.slane %v1411, 1
        %v1753 = vrot.slane %v1412, 1
        %v1755 = vsel %vm1494, %v1753, 0
        %1757 = vmatprep.subr.mxu0 %v1672
        %1758 = vmatpush1.msra.mxu0 %v1671
        %1759 = vmatprep.subr.mxu0 %v1676
        %1760 = vmatpush1.msra.mxu0 %v1675
        %1761 = vmatprep.subr.mxu0 %v1680
        %1762 = vmatpush1.msra.mxu0 %v1679
        %1763 = vmatprep.subr.mxu0 %v1684
        %1764 = vmatpush1.msra.mxu0 %v1683
        %1765 = vmatprep.subr.mxu0 %v1688
        %1766 = vmatpush1.msra.mxu0 %v1687
        %1767 = vmatprep.subr.mxu0 %v1692
        %1768 = vmatpush1.msra.mxu0 %v1691
        %1769 = vmatprep.subr.mxu0 %v1696
        %1770 = vmatpush1.msra.mxu0 %v1695
        %1771 = vmatprep.subr.mxu0 %v1700
        %1772 = vmatpush1.msra.mxu0 %v1699
        %1773 = vmatprep.subr.mxu0 %v1704
        %1774 = vmatpush1.msra.mxu0 %v1703
        %1775 = vmatprep.subr.mxu0 %v1708
        %1776 = vmatpush1.msra.mxu0 %v1707
        %1777 = vmatprep.subr.mxu0 %v1712
        %1778 = vmatpush1.msra.mxu0 %v1711
        %1779 = vmatprep.subr.mxu0 %v1716
        %1780 = vmatpush1.msra.mxu0 %v1715
        %1781 = vmatprep.subr.mxu0 %v1720
        %1782 = vmatpush1.msra.mxu0 %v1719
        %1783 = vmatprep.subr.mxu0 %v1724
        %1784 = vmatpush1.msra.mxu0 %v1723
        %1785 = vmatprep.subr.mxu0 %v1728
        %1786 = vmatpush1.msra.mxu0 %v1727
        %1787 = vmatprep.subr.mxu0 %v1732
        %1788 = vmatpush1.msra.mxu0 %v1731
        %1789 = vmatprep.subr.mxu0 %v1736
        %1790 = vmatpush1.msra.mxu0 %v1735
        %1791 = vmatprep.subr.mxu0 %v1740
        %1792 = vmatpush1.msra.mxu0 %v1739
        %1793 = vmatprep.subr.mxu0 %v1744
        %1794 = vmatpush1.msra.mxu0 %v1743
        %1795 = vmatprep.subr.mxu0 %v1748
        %1796 = vmatpush1.msra.mxu0 %v1747
        %1797 = vmatprep.subr.mxu0 0.0
        %1798 = vmatpush1.msra.mxu0 0.0
        %1799 = vmatprep.subr.mxu0 0.0
        %1800 = vmatpush1.msra.mxu0 0.0
        %1801 = vmatprep.subr.mxu0 0.0
        %1802 = vmatpush1.msra.mxu0 0.0
        %1803 = vmatprep.subr.mxu0 0.0
        %1804 = vmatpush1.msra.mxu0 0.0
        %1805 = vmatprep.subr.mxu0 0.0
        %1806 = vmatpush1.msra.mxu0 0.0
        %1807 = vmatprep.subr.mxu0 0.0
        %1808 = vmatpush1.msra.mxu0 0.0
        %1809 = vmatprep.subr.mxu0 0.0
        %1810 = vmatpush1.msra.mxu0 0.0
        %1811 = vmatprep.subr.mxu0 0.0
        %1812 = vmatpush1.msra.mxu0 0.0
        %1813 = vmatprep.subr.mxu0 0.0
        %1814 = vmatpush1.msra.mxu0 0.0
        %1815 = vmatprep.subr.mxu0 0.0
        %1816 = vmatpush1.msra.mxu0 0.0
        %1817 = vmatprep.subr.mxu0 0.0
        %1818 = vmatpush1.msra.mxu0 0.0
        %1819 = vmatprep.subr.mxu0 0.0
        %1820 = vmatpush1.msra.mxu0 0.0
        %1821 = vmatprep.mubr.f32.mxu0 %v1755
        %1822 = vmatmul.mubr.f32.gmra.mrb[0].mxu0 %v1752
        %v1823 = vpop.f32.mrb[0].mxu0
        %v1824 = vadd.f32 0.0, %v1823
        %v1825 = vpop.f32.mrb[0].mxu0
        %v1826 = vadd.f32 0.0, %v1825
        %1827 = vdwg.mxu0
        %1828 = vmatprep.subr.mxu0 %v1674
        %1829 = vmatpush1.msra.mxu0 %v1673
        %1830 = vmatprep.subr.mxu0 %v1678
        %1831 = vmatpush1.msra.mxu0 %v1677
        %1832 = vmatprep.subr.mxu0 %v1682
        %1833 = vmatpush1.msra.mxu0 %v1681
        %1834 = vmatprep.subr.mxu0 %v1686
        %1835 = vmatpush1.msra.mxu0 %v1685
        %1836 = vmatprep.subr.mxu0 %v1690
        %1837 = vmatpush1.msra.mxu0 %v1689
        %1838 = vmatprep.subr.mxu0 %v1694
        %1839 = vmatpush1.msra.mxu0 %v1693
        %1840 = vmatprep.subr.mxu0 %v1698
        %1841 = vmatpush1.msra.mxu0 %v1697
        %1842 = vmatprep.subr.mxu0 %v1702
        %1843 = vmatpush1.msra.mxu0 %v1701
        %1844 = vmatprep.subr.mxu0 %v1706
        %1845 = vmatpush1.msra.mxu0 %v1705
        %1846 = vmatprep.subr.mxu0 %v1710
        %1847 = vmatpush1.msra.mxu0 %v1709
        %1848 = vmatprep.subr.mxu0 %v1714
        %1849 = vmatpush1.msra.mxu0 %v1713
        %1850 = vmatprep.subr.mxu0 %v1718
        %1851 = vmatpush1.msra.mxu0 %v1717
        %1852 = vmatprep.subr.mxu0 %v1722
        %1853 = vmatpush1.msra.mxu0 %v1721
        %1854 = vmatprep.subr.mxu0 %v1726
        %1855 = vmatpush1.msra.mxu0 %v1725
        %1856 = vmatprep.subr.mxu0 %v1730
        %1857 = vmatpush1.msra.mxu0 %v1729
        %1858 = vmatprep.subr.mxu0 %v1734
        %1859 = vmatpush1.msra.mxu0 %v1733
        %1860 = vmatprep.subr.mxu0 %v1738
        %1861 = vmatpush1.msra.mxu0 %v1737
        %1862 = vmatprep.subr.mxu0 %v1742
        %1863 = vmatpush1.msra.mxu0 %v1741
        %1864 = vmatprep.subr.mxu0 %v1746
        %1865 = vmatpush1.msra.mxu0 %v1745
        %1866 = vmatprep.subr.mxu0 %v1750
        %1867 = vmatpush1.msra.mxu0 %v1749
        %1868 = vmatprep.subr.mxu0 0.0
        %1869 = vmatpush1.msra.mxu0 0.0
        %1870 = vmatprep.subr.mxu0 0.0
        %1871 = vmatpush1.msra.mxu0 0.0
        %1872 = vmatprep.subr.mxu0 0.0
        %1873 = vmatpush1.msra.mxu0 0.0
        %1874 = vmatprep.subr.mxu0 0.0
        %1875 = vmatpush1.msra.mxu0 0.0
        %1876 = vmatprep.subr.mxu0 0.0
        %1877 = vmatpush1.msra.mxu0 0.0
        %1878 = vmatprep.subr.mxu0 0.0
        %1879 = vmatpush1.msra.mxu0 0.0
        %1880 = vmatprep.subr.mxu0 0.0
        %1881 = vmatpush1.msra.mxu0 0.0
        %1882 = vmatprep.subr.mxu0 0.0
        %1883 = vmatpush1.msra.mxu0 0.0
        %1884 = vmatprep.subr.mxu0 0.0
        %1885 = vmatpush1.msra.mxu0 0.0
        %1886 = vmatprep.subr.mxu0 0.0
        %1887 = vmatpush1.msra.mxu0 0.0
        %1888 = vmatprep.subr.mxu0 0.0
        %1889 = vmatpush1.msra.mxu0 0.0
        %1890 = vmatprep.subr.mxu0 0.0
        %1891 = vmatpush1.msra.mxu0 0.0
        %1892 = vmatprep.mubr.f32.mxu0 %v1755
        %1893 = vmatmul.mubr.f32.gmra.mrb[0].mxu0 %v1752
        %v1894 = vpop.f32.mrb[0].mxu0
        %v1895 = vadd.f32 0.0, %v1894
        %v1896 = vpop.f32.mrb[0].mxu0
        %v1897 = vadd.f32 0.0, %v1896
        %1898 = vdwg.mxu0
        %v1903 = vcombine.low %v1824, %v1826
        %v1904 = vcombine.low %v1895, %v1897
        %v1906 = vunpack.c.l.s4 1966171168
        %v1907 = vunpack.c.0.s8 %v1906
        %v1908 = vlaneseq
        %v1909 = vshrl.u32 %v1908, 7
        %v1910 = vsub.s32 %v1907, %v1909
        %v1911 = vrot.slane %v1903, %v1910
        %v1913 = vunpack.c.l.s4 1966171168
        %v1914 = vunpack.c.0.s8 %v1913
        %v1915 = vlaneseq
        %v1916 = vshrl.u32 %v1915, 7
        %v1917 = vsub.s32 %v1914, %v1916
        %v1918 = vrot.slane %v1904, %v1917
        %v1919 = vcombine.low %v1911, %v1918
        %v1921 = vunpack.c.l.s4 1966171168
        %v1922 = vunpack.c.0.s8 %v1921
        %v1923 = vlaneseq
        %v1924 = vshrl.u32 %v1923, 7
        %v1925 = vsub.s32 %v1922, %v1924
        %v1926 = vrot.slane %v1919, %v1925
        %v1928 = vadd.f32 %v1669, %v1926
        %s1929 = scalar_lea.vmem [#allocation13], 1280
        %v1930 = vld [vmem:[%s1929] sm:$0xff]
        %v1931 = vld [vmem:[%s1929 + $0x8] sm:$0xff]
        %v1932 = vld [vmem:[%s1929 + $0x10] sm:$0xff]
        %v1933 = vld [vmem:[%s1929 + $0x18] sm:$0xff]
        %v1934 = vld [vmem:[%s1929 + $0x20] sm:$0xff]
        %v1935 = vld [vmem:[%s1929 + $0x28] sm:$0xff]
        %v1936 = vld [vmem:[%s1929 + $0x30] sm:$0xff]
        %v1937 = vld [vmem:[%s1929 + $0x38] sm:$0xff]
        %v1938 = vld [vmem:[%s1929 + $0x40] sm:$0xff]
        %v1939 = vld [vmem:[%s1929 + $0x48] sm:$0xff]
        %v1940 = vld [vmem:[%s1929 + $0x50] sm:$0xff]
        %v1941 = vld [vmem:[%s1929 + $0x58] sm:$0xff]
        %v1942 = vld [vmem:[%s1929 + $0x60] sm:$0xff]
        %v1943 = vld [vmem:[%s1929 + $0x68] sm:$0xff]
        %v1944 = vld [vmem:[%s1929 + $0x70] sm:$0xff]
        %v1945 = vld [vmem:[%s1929 + $0x78] sm:$0xff]
        %v1946 = vld [vmem:[%s1929 + $0x80] sm:$0xff]
        %v1947 = vld [vmem:[%s1929 + $0x88] sm:$0xff]
        %v1948 = vld [vmem:[%s1929 + $0x90] sm:$0xff]
        %v1949 = vld [vmem:[%s1929 + $0x98] sm:$0xff]
        %v1950 = vld [vmem:[%s1929 + $0xa0] sm:$0xff]
        %v1951 = vld [vmem:[%s1929 + $0xa8] sm:$0xff]
        %v1952 = vld [vmem:[%s1929 + $0xb0] sm:$0xff]
        %v1953 = vld [vmem:[%s1929 + $0xb8] sm:$0xff]
        %v1954 = vld [vmem:[%s1929 + $0xc0] sm:$0xff]
        %v1955 = vld [vmem:[%s1929 + $0xc8] sm:$0xff]
        %v1956 = vld [vmem:[%s1929 + $0xd0] sm:$0xff]
        %v1957 = vld [vmem:[%s1929 + $0xd8] sm:$0xff]
        %v1958 = vld [vmem:[%s1929 + $0xe0] sm:$0xff]
        %v1959 = vld [vmem:[%s1929 + $0xe8] sm:$0xff]
        %v1960 = vld [vmem:[%s1929 + $0xf0] sm:$0xff]
        %v1961 = vld [vmem:[%s1929 + $0xf8] sm:$0xff]
        %v1962 = vld [vmem:[%s1929 + $0x100] sm:$0xff]
        %v1963 = vld [vmem:[%s1929 + $0x108] sm:$0xff]
        %v1964 = vld [vmem:[%s1929 + $0x110] sm:$0xff]
        %v1965 = vld [vmem:[%s1929 + $0x118] sm:$0xff]
        %v1966 = vld [vmem:[%s1929 + $0x120] sm:$0xff]
        %v1967 = vld [vmem:[%s1929 + $0x128] sm:$0xff]
        %v1968 = vld [vmem:[%s1929 + $0x130] sm:$0xff]
        %v1969 = vld [vmem:[%s1929 + $0x138] sm:$0xff]
        %v1970 = vld [vmem:[%s1929 + $0x140] sm:$0xff]
        %v1971 = vld [vmem:[%s1929 + $0x148] sm:$0xff]
        %v1972 = vld [vmem:[%s1929 + $0x150] sm:$0xff]
        %v1973 = vld [vmem:[%s1929 + $0x158] sm:$0xff]
        %v1974 = vld [vmem:[%s1929 + $0x160] sm:$0xff]
        %v1975 = vld [vmem:[%s1929 + $0x168] sm:$0xff]
        %v1976 = vld [vmem:[%s1929 + $0x170] sm:$0xff]
        %v1977 = vld [vmem:[%s1929 + $0x178] sm:$0xff]
        %v1978 = vld [vmem:[%s1929 + $0x180] sm:$0xff]
        %v1979 = vld [vmem:[%s1929 + $0x188] sm:$0xff]
        %v1980 = vld [vmem:[%s1929 + $0x190] sm:$0xff]
        %v1981 = vld [vmem:[%s1929 + $0x198] sm:$0xff]
        %v1982 = vld [vmem:[%s1929 + $0x1a0] sm:$0xff]
        %v1983 = vld [vmem:[%s1929 + $0x1a8] sm:$0xff]
        %v1984 = vld [vmem:[%s1929 + $0x1b0] sm:$0xff]
        %v1985 = vld [vmem:[%s1929 + $0x1b8] sm:$0xff]
        %v1986 = vld [vmem:[%s1929 + $0x1c0] sm:$0xff]
        %v1987 = vld [vmem:[%s1929 + $0x1c8] sm:$0xff]
        %v1988 = vld [vmem:[%s1929 + $0x1d0] sm:$0xff]
        %v1989 = vld [vmem:[%s1929 + $0x1d8] sm:$0xff]
        %v1990 = vld [vmem:[%s1929 + $0x1e0] sm:$0xff]
        %v1991 = vld [vmem:[%s1929 + $0x1e8] sm:$0xff]
        %v1992 = vld [vmem:[%s1929 + $0x1f0] sm:$0xff]
        %v1993 = vld [vmem:[%s1929 + $0x1f8] sm:$0xff]
        %v1994 = vld [vmem:[%s1929 + $0x200] sm:$0xff]
        %v1995 = vld [vmem:[%s1929 + $0x208] sm:$0xff]
        %v1996 = vld [vmem:[%s1929 + $0x210] sm:$0xff]
        %v1997 = vld [vmem:[%s1929 + $0x218] sm:$0xff]
        %v1998 = vld [vmem:[%s1929 + $0x220] sm:$0xff]
        %v1999 = vld [vmem:[%s1929 + $0x228] sm:$0xff]
        %v2000 = vld [vmem:[%s1929 + $0x230] sm:$0xff]
        %v2001 = vld [vmem:[%s1929 + $0x238] sm:$0xff]
        %v2002 = vld [vmem:[%s1929 + $0x240] sm:$0xff]
        %v2003 = vld [vmem:[%s1929 + $0x248] sm:$0xff]
        %v2004 = vld [vmem:[%s1929 + $0x250] sm:$0xff]
        %v2005 = vld [vmem:[%s1929 + $0x258] sm:$0xff]
        %v2006 = vld [vmem:[%s1929 + $0x260] sm:$0xff]
        %v2007 = vld [vmem:[%s1929 + $0x268] sm:$0xff]
        %v2008 = vld [vmem:[%s1929 + $0x270] sm:$0xff]
        %v2009 = vld [vmem:[%s1929 + $0x278] sm:$0xff]
        %v2010 = vrot.slane %v1411, 2
        %v2011 = vrot.slane %v1412, 2
        %v2013 = vsel %vm1494, %v2011, 0
        %2015 = vmatprep.subr.mxu0 %v1931
        %2016 = vmatpush1.msra.mxu0 %v1930
        %2017 = vmatprep.subr.mxu0 %v1935
        %2018 = vmatpush1.msra.mxu0 %v1934
        %2019 = vmatprep.subr.mxu0 %v1939
        %2020 = vmatpush1.msra.mxu0 %v1938
        %2021 = vmatprep.subr.mxu0 %v1943
        %2022 = vmatpush1.msra.mxu0 %v1942
        %2023 = vmatprep.subr.mxu0 %v1947
        %2024 = vmatpush1.msra.mxu0 %v1946
        %2025 = vmatprep.subr.mxu0 %v1951
        %2026 = vmatpush1.msra.mxu0 %v1950
        %2027 = vmatprep.subr.mxu0 %v1955
        %2028 = vmatpush1.msra.mxu0 %v1954
        %2029 = vmatprep.subr.mxu0 %v1959
        %2030 = vmatpush1.msra.mxu0 %v1958
        %2031 = vmatprep.subr.mxu0 %v1963
        %2032 = vmatpush1.msra.mxu0 %v1962
        %2033 = vmatprep.subr.mxu0 %v1967
        %2034 = vmatpush1.msra.mxu0 %v1966
        %2035 = vmatprep.subr.mxu0 %v1971
        %2036 = vmatpush1.msra.mxu0 %v1970
        %2037 = vmatprep.subr.mxu0 %v1975
        %2038 = vmatpush1.msra.mxu0 %v1974
        %2039 = vmatprep.subr.mxu0 %v1979
        %2040 = vmatpush1.msra.mxu0 %v1978
        %2041 = vmatprep.subr.mxu0 %v1983
        %2042 = vmatpush1.msra.mxu0 %v1982
        %2043 = vmatprep.subr.mxu0 %v1987
        %2044 = vmatpush1.msra.mxu0 %v1986
        %2045 = vmatprep.subr.mxu0 %v1991
        %2046 = vmatpush1.msra.mxu0 %v1990
        %2047 = vmatprep.subr.mxu0 %v1995
        %2048 = vmatpush1.msra.mxu0 %v1994
        %2049 = vmatprep.subr.mxu0 %v1999
        %2050 = vmatpush1.msra.mxu0 %v1998
        %2051 = vmatprep.subr.mxu0 %v2003
        %2052 = vmatpush1.msra.mxu0 %v2002
        %2053 = vmatprep.subr.mxu0 %v2007
        %2054 = vmatpush1.msra.mxu0 %v2006
        %2055 = vmatprep.subr.mxu0 0.0
        %2056 = vmatpush1.msra.mxu0 0.0
        %2057 = vmatprep.subr.mxu0 0.0
        %2058 = vmatpush1.msra.mxu0 0.0
        %2059 = vmatprep.subr.mxu0 0.0
        %2060 = vmatpush1.msra.mxu0 0.0
        %2061 = vmatprep.subr.mxu0 0.0
        %2062 = vmatpush1.msra.mxu0 0.0
        %2063 = vmatprep.subr.mxu0 0.0
        %2064 = vmatpush1.msra.mxu0 0.0
        %2065 = vmatprep.subr.mxu0 0.0
        %2066 = vmatpush1.msra.mxu0 0.0
        %2067 = vmatprep.subr.mxu0 0.0
        %2068 = vmatpush1.msra.mxu0 0.0
        %2069 = vmatprep.subr.mxu0 0.0
        %2070 = vmatpush1.msra.mxu0 0.0
        %2071 = vmatprep.subr.mxu0 0.0
        %2072 = vmatpush1.msra.mxu0 0.0
        %2073 = vmatprep.subr.mxu0 0.0
        %2074 = vmatpush1.msra.mxu0 0.0
        %2075 = vmatprep.subr.mxu0 0.0
        %2076 = vmatpush1.msra.mxu0 0.0
        %2077 = vmatprep.subr.mxu0 0.0
        %2078 = vmatpush1.msra.mxu0 0.0
        %2079 = vmatprep.mubr.f32.mxu0 %v2013
        %2080 = vmatmul.mubr.f32.gmra.mrb[0].mxu0 %v2010
        %v2081 = vpop.f32.mrb[0].mxu0
        %v2082 = vadd.f32 0.0, %v2081
        %v2083 = vpop.f32.mrb[0].mxu0
        %v2084 = vadd.f32 0.0, %v2083
        %2085 = vdwg.mxu0
        %2086 = vmatprep.subr.mxu0 %v1933
        %2087 = vmatpush1.msra.mxu0 %v1932
        %2088 = vmatprep.subr.mxu0 %v1937
        %2089 = vmatpush1.msra.mxu0 %v1936
        %2090 = vmatprep.subr.mxu0 %v1941
        %2091 = vmatpush1.msra.mxu0 %v1940
        %2092 = vmatprep.subr.mxu0 %v1945
        %2093 = vmatpush1.msra.mxu0 %v1944
        %2094 = vmatprep.subr.mxu0 %v1949
        %2095 = vmatpush1.msra.mxu0 %v1948
        %2096 = vmatprep.subr.mxu0 %v1953
        %2097 = vmatpush1.msra.mxu0 %v1952
        %2098 = vmatprep.subr.mxu0 %v1957
        %2099 = vmatpush1.msra.mxu0 %v1956
        %2100 = vmatprep.subr.mxu0 %v1961
        %2101 = vmatpush1.msra.mxu0 %v1960
        %2102 = vmatprep.subr.mxu0 %v1965
        %2103 = vmatpush1.msra.mxu0 %v1964
        %2104 = vmatprep.subr.mxu0 %v1969
        %2105 = vmatpush1.msra.mxu0 %v1968
        %2106 = vmatprep.subr.mxu0 %v1973
        %2107 = vmatpush1.msra.mxu0 %v1972
        %2108 = vmatprep.subr.mxu0 %v1977
        %2109 = vmatpush1.msra.mxu0 %v1976
        %2110 = vmatprep.subr.mxu0 %v1981
        %2111 = vmatpush1.msra.mxu0 %v1980
        %2112 = vmatprep.subr.mxu0 %v1985
        %2113 = vmatpush1.msra.mxu0 %v1984
        %2114 = vmatprep.subr.mxu0 %v1989
        %2115 = vmatpush1.msra.mxu0 %v1988
        %2116 = vmatprep.subr.mxu0 %v1993
        %2117 = vmatpush1.msra.mxu0 %v1992
        %2118 = vmatprep.subr.mxu0 %v1997
        %2119 = vmatpush1.msra.mxu0 %v1996
        %2120 = vmatprep.subr.mxu0 %v2001
        %2121 = vmatpush1.msra.mxu0 %v2000
        %2122 = vmatprep.subr.mxu0 %v2005
        %2123 = vmatpush1.msra.mxu0 %v2004
        %2124 = vmatprep.subr.mxu0 %v2009
        %2125 = vmatpush1.msra.mxu0 %v2008
        %2126 = vmatprep.subr.mxu0 0.0
        %2127 = vmatpush1.msra.mxu0 0.0
        %2128 = vmatprep.subr.mxu0 0.0
        %2129 = vmatpush1.msra.mxu0 0.0
        %2130 = vmatprep.subr.mxu0 0.0
        %2131 = vmatpush1.msra.mxu0 0.0
        %2132 = vmatprep.subr.mxu0 0.0
        %2133 = vmatpush1.msra.mxu0 0.0
        %2134 = vmatprep.subr.mxu0 0.0
        %2135 = vmatpush1.msra.mxu0 0.0
        %2136 = vmatprep.subr.mxu0 0.0
        %2137 = vmatpush1.msra.mxu0 0.0
        %2138 = vmatprep.subr.mxu0 0.0
        %2139 = vmatpush1.msra.mxu0 0.0
        %2140 = vmatprep.subr.mxu0 0.0
        %2141 = vmatpush1.msra.mxu0 0.0
        %2142 = vmatprep.subr.mxu0 0.0
        %2143 = vmatpush1.msra.mxu0 0.0
        %2144 = vmatprep.subr.mxu0 0.0
        %2145 = vmatpush1.msra.mxu0 0.0
        %2146 = vmatprep.subr.mxu0 0.0
        %2147 = vmatpush1.msra.mxu0 0.0
        %2148 = vmatprep.subr.mxu0 0.0
        %2149 = vmatpush1.msra.mxu0 0.0
        %2150 = vmatprep.mubr.f32.mxu0 %v2013
        %2151 = vmatmul.mubr.f32.gmra.mrb[0].mxu0 %v2010
        %v2152 = vpop.f32.mrb[0].mxu0
        %v2153 = vadd.f32 0.0, %v2152
        %v2154 = vpop.f32.mrb[0].mxu0
        %v2155 = vadd.f32 0.0, %v2154
        %2156 = vdwg.mxu0
        %v2161 = vcombine.low %v2082, %v2084
        %v2162 = vcombine.low %v2153, %v2155
        %v2164 = vunpack.c.l.s4 1966171168
        %v2165 = vunpack.c.0.s8 %v2164
        %v2166 = vlaneseq
        %v2167 = vshrl.u32 %v2166, 7
        %v2168 = vsub.s32 %v2165, %v2167
        %v2169 = vrot.slane %v2161, %v2168
        %v2171 = vunpack.c.l.s4 1966171168
        %v2172 = vunpack.c.0.s8 %v2171
        %v2173 = vlaneseq
        %v2174 = vshrl.u32 %v2173, 7
        %v2175 = vsub.s32 %v2172, %v2174
        %v2176 = vrot.slane %v2162, %v2175
        %v2177 = vcombine.low %v2169, %v2176
        %v2179 = vunpack.c.l.s4 1966171168
        %v2180 = vunpack.c.0.s8 %v2179
        %v2181 = vlaneseq
        %v2182 = vshrl.u32 %v2181, 7
        %v2183 = vsub.s32 %v2180, %v2182
        %v2184 = vrot.slane %v2177, %v2183
        %v2186 = vadd.f32 %v1928, %v2184
        %s2187 = scalar_lea.vmem [#allocation13], 1920
        %v2188 = vld [vmem:[%s2187] sm:$0xff]
        %v2189 = vld [vmem:[%s2187 + $0x8] sm:$0xff]
        %v2190 = vld [vmem:[%s2187 + $0x10] sm:$0xff]
        %v2191 = vld [vmem:[%s2187 + $0x18] sm:$0xff]
        %v2192 = vld [vmem:[%s2187 + $0x20] sm:$0xff]
        %v2193 = vld [vmem:[%s2187 + $0x28] sm:$0xff]
        %v2194 = vld [vmem:[%s2187 + $0x30] sm:$0xff]
        %v2195 = vld [vmem:[%s2187 + $0x38] sm:$0xff]
        %v2196 = vld [vmem:[%s2187 + $0x40] sm:$0xff]
        %v2197 = vld [vmem:[%s2187 + $0x48] sm:$0xff]
        %v2198 = vld [vmem:[%s2187 + $0x50] sm:$0xff]
        %v2199 = vld [vmem:[%s2187 + $0x58] sm:$0xff]
        %v2200 = vld [vmem:[%s2187 + $0x60] sm:$0xff]
        %v2201 = vld [vmem:[%s2187 + $0x68] sm:$0xff]
        %v2202 = vld [vmem:[%s2187 + $0x70] sm:$0xff]
        %v2203 = vld [vmem:[%s2187 + $0x78] sm:$0xff]
        %v2204 = vld [vmem:[%s2187 + $0x80] sm:$0xff]
        %v2205 = vld [vmem:[%s2187 + $0x88] sm:$0xff]
        %v2206 = vld [vmem:[%s2187 + $0x90] sm:$0xff]
        %v2207 = vld [vmem:[%s2187 + $0x98] sm:$0xff]
        %v2208 = vld [vmem:[%s2187 + $0xa0] sm:$0xff]
        %v2209 = vld [vmem:[%s2187 + $0xa8] sm:$0xff]
        %v2210 = vld [vmem:[%s2187 + $0xb0] sm:$0xff]
        %v2211 = vld [vmem:[%s2187 + $0xb8] sm:$0xff]
        %v2212 = vld [vmem:[%s2187 + $0xc0] sm:$0xff]
        %v2213 = vld [vmem:[%s2187 + $0xc8] sm:$0xff]
        %v2214 = vld [vmem:[%s2187 + $0xd0] sm:$0xff]
        %v2215 = vld [vmem:[%s2187 + $0xd8] sm:$0xff]
        %v2216 = vld [vmem:[%s2187 + $0xe0] sm:$0xff]
        %v2217 = vld [vmem:[%s2187 + $0xe8] sm:$0xff]
        %v2218 = vld [vmem:[%s2187 + $0xf0] sm:$0xff]
        %v2219 = vld [vmem:[%s2187 + $0xf8] sm:$0xff]
        %v2220 = vld [vmem:[%s2187 + $0x100] sm:$0xff]
        %v2221 = vld [vmem:[%s2187 + $0x108] sm:$0xff]
        %v2222 = vld [vmem:[%s2187 + $0x110] sm:$0xff]
        %v2223 = vld [vmem:[%s2187 + $0x118] sm:$0xff]
        %v2224 = vld [vmem:[%s2187 + $0x120] sm:$0xff]
        %v2225 = vld [vmem:[%s2187 + $0x128] sm:$0xff]
        %v2226 = vld [vmem:[%s2187 + $0x130] sm:$0xff]
        %v2227 = vld [vmem:[%s2187 + $0x138] sm:$0xff]
        %v2228 = vld [vmem:[%s2187 + $0x140] sm:$0xff]
        %v2229 = vld [vmem:[%s2187 + $0x148] sm:$0xff]
        %v2230 = vld [vmem:[%s2187 + $0x150] sm:$0xff]
        %v2231 = vld [vmem:[%s2187 + $0x158] sm:$0xff]
        %v2232 = vld [vmem:[%s2187 + $0x160] sm:$0xff]
        %v2233 = vld [vmem:[%s2187 + $0x168] sm:$0xff]
        %v2234 = vld [vmem:[%s2187 + $0x170] sm:$0xff]
        %v2235 = vld [vmem:[%s2187 + $0x178] sm:$0xff]
        %v2236 = vld [vmem:[%s2187 + $0x180] sm:$0xff]
        %v2237 = vld [vmem:[%s2187 + $0x188] sm:$0xff]
        %v2238 = vld [vmem:[%s2187 + $0x190] sm:$0xff]
        %v2239 = vld [vmem:[%s2187 + $0x198] sm:$0xff]
        %v2240 = vld [vmem:[%s2187 + $0x1a0] sm:$0xff]
        %v2241 = vld [vmem:[%s2187 + $0x1a8] sm:$0xff]
        %v2242 = vld [vmem:[%s2187 + $0x1b0] sm:$0xff]
        %v2243 = vld [vmem:[%s2187 + $0x1b8] sm:$0xff]
        %v2244 = vld [vmem:[%s2187 + $0x1c0] sm:$0xff]
        %v2245 = vld [vmem:[%s2187 + $0x1c8] sm:$0xff]
        %v2246 = vld [vmem:[%s2187 + $0x1d0] sm:$0xff]
        %v2247 = vld [vmem:[%s2187 + $0x1d8] sm:$0xff]
        %v2248 = vld [vmem:[%s2187 + $0x1e0] sm:$0xff]
        %v2249 = vld [vmem:[%s2187 + $0x1e8] sm:$0xff]
        %v2250 = vld [vmem:[%s2187 + $0x1f0] sm:$0xff]
        %v2251 = vld [vmem:[%s2187 + $0x1f8] sm:$0xff]
        %v2252 = vld [vmem:[%s2187 + $0x200] sm:$0xff]
        %v2253 = vld [vmem:[%s2187 + $0x208] sm:$0xff]
        %v2254 = vld [vmem:[%s2187 + $0x210] sm:$0xff]
        %v2255 = vld [vmem:[%s2187 + $0x218] sm:$0xff]
        %v2256 = vld [vmem:[%s2187 + $0x220] sm:$0xff]
        %v2257 = vld [vmem:[%s2187 + $0x228] sm:$0xff]
        %v2258 = vld [vmem:[%s2187 + $0x230] sm:$0xff]
        %v2259 = vld [vmem:[%s2187 + $0x238] sm:$0xff]
        %v2260 = vld [vmem:[%s2187 + $0x240] sm:$0xff]
        %v2261 = vld [vmem:[%s2187 + $0x248] sm:$0xff]
        %v2262 = vld [vmem:[%s2187 + $0x250] sm:$0xff]
        %v2263 = vld [vmem:[%s2187 + $0x258] sm:$0xff]
        %v2264 = vld [vmem:[%s2187 + $0x260] sm:$0xff]
        %v2265 = vld [vmem:[%s2187 + $0x268] sm:$0xff]
        %v2266 = vld [vmem:[%s2187 + $0x270] sm:$0xff]
        %v2267 = vld [vmem:[%s2187 + $0x278] sm:$0xff]
        %v2268 = vrot.slane %v1411, 3
        %v2269 = vrot.slane %v1412, 3
        %v2271 = vsel %vm1494, %v2269, 0
        %2273 = vmatprep.subr.mxu0 %v2189
        %2274 = vmatpush1.msra.mxu0 %v2188
        %2275 = vmatprep.subr.mxu0 %v2193
        %2276 = vmatpush1.msra.mxu0 %v2192
        %2277 = vmatprep.subr.mxu0 %v2197
        %2278 = vmatpush1.msra.mxu0 %v2196
        %2279 = vmatprep.subr.mxu0 %v2201
        %2280 = vmatpush1.msra.mxu0 %v2200
        %2281 = vmatprep.subr.mxu0 %v2205
        %2282 = vmatpush1.msra.mxu0 %v2204
        %2283 = vmatprep.subr.mxu0 %v2209
        %2284 = vmatpush1.msra.mxu0 %v2208
        %2285 = vmatprep.subr.mxu0 %v2213
        %2286 = vmatpush1.msra.mxu0 %v2212
        %2287 = vmatprep.subr.mxu0 %v2217
        %2288 = vmatpush1.msra.mxu0 %v2216
        %2289 = vmatprep.subr.mxu0 %v2221
        %2290 = vmatpush1.msra.mxu0 %v2220
        %2291 = vmatprep.subr.mxu0 %v2225
        %2292 = vmatpush1.msra.mxu0 %v2224
        %2293 = vmatprep.subr.mxu0 %v2229
        %2294 = vmatpush1.msra.mxu0 %v2228
        %2295 = vmatprep.subr.mxu0 %v2233
        %2296 = vmatpush1.msra.mxu0 %v2232
        %2297 = vmatprep.subr.mxu0 %v2237
        %2298 = vmatpush1.msra.mxu0 %v2236
        %2299 = vmatprep.subr.mxu0 %v2241
        %2300 = vmatpush1.msra.mxu0 %v2240
        %2301 = vmatprep.subr.mxu0 %v2245
        %2302 = vmatpush1.msra.mxu0 %v2244
        %2303 = vmatprep.subr.mxu0 %v2249
        %2304 = vmatpush1.msra.mxu0 %v2248
        %2305 = vmatprep.subr.mxu0 %v2253
        %2306 = vmatpush1.msra.mxu0 %v2252
        %2307 = vmatprep.subr.mxu0 %v2257
        %2308 = vmatpush1.msra.mxu0 %v2256
        %2309 = vmatprep.subr.mxu0 %v2261
        %2310 = vmatpush1.msra.mxu0 %v2260
        %2311 = vmatprep.subr.mxu0 %v2265
        %2312 = vmatpush1.msra.mxu0 %v2264
        %2313 = vmatprep.subr.mxu0 0.0
        %2314 = vmatpush1.msra.mxu0 0.0
        %2315 = vmatprep.subr.mxu0 0.0
        %2316 = vmatpush1.msra.mxu0 0.0
        %2317 = vmatprep.subr.mxu0 0.0
        %2318 = vmatpush1.msra.mxu0 0.0
        %2319 = vmatprep.subr.mxu0 0.0
        %2320 = vmatpush1.msra.mxu0 0.0
        %2321 = vmatprep.subr.mxu0 0.0
        %2322 = vmatpush1.msra.mxu0 0.0
        %2323 = vmatprep.subr.mxu0 0.0
        %2324 = vmatpush1.msra.mxu0 0.0
        %2325 = vmatprep.subr.mxu0 0.0
        %2326 = vmatpush1.msra.mxu0 0.0
        %2327 = vmatprep.subr.mxu0 0.0
        %2328 = vmatpush1.msra.mxu0 0.0
        %2329 = vmatprep.subr.mxu0 0.0
        %2330 = vmatpush1.msra.mxu0 0.0
        %2331 = vmatprep.subr.mxu0 0.0
        %2332 = vmatpush1.msra.mxu0 0.0
        %2333 = vmatprep.subr.mxu0 0.0
        %2334 = vmatpush1.msra.mxu0 0.0
        %2335 = vmatprep.subr.mxu0 0.0
        %2336 = vmatpush1.msra.mxu0 0.0
        %2337 = vmatprep.mubr.f32.mxu0 %v2271
        %2338 = vmatmul.mubr.f32.gmra.mrb[0].mxu0 %v2268
        %v2339 = vpop.f32.mrb[0].mxu0
        %v2340 = vadd.f32 0.0, %v2339
        %v2341 = vpop.f32.mrb[0].mxu0
        %v2342 = vadd.f32 0.0, %v2341
        %2343 = vdwg.mxu0
        %2344 = vmatprep.subr.mxu0 %v2191
        %2345 = vmatpush1.msra.mxu0 %v2190
        %2346 = vmatprep.subr.mxu0 %v2195
        %2347 = vmatpush1.msra.mxu0 %v2194
        %2348 = vmatprep.subr.mxu0 %v2199
        %2349 = vmatpush1.msra.mxu0 %v2198
        %2350 = vmatprep.subr.mxu0 %v2203
        %2351 = vmatpush1.msra.mxu0 %v2202
        %2352 = vmatprep.subr.mxu0 %v2207
        %2353 = vmatpush1.msra.mxu0 %v2206
        %2354 = vmatprep.subr.mxu0 %v2211
        %2355 = vmatpush1.msra.mxu0 %v2210
        %2356 = vmatprep.subr.mxu0 %v2215
        %2357 = vmatpush1.msra.mxu0 %v2214
        %2358 = vmatprep.subr.mxu0 %v2219
        %2359 = vmatpush1.msra.mxu0 %v2218
        %2360 = vmatprep.subr.mxu0 %v2223
        %2361 = vmatpush1.msra.mxu0 %v2222
        %2362 = vmatprep.subr.mxu0 %v2227
        %2363 = vmatpush1.msra.mxu0 %v2226
        %2364 = vmatprep.subr.mxu0 %v2231
        %2365 = vmatpush1.msra.mxu0 %v2230
        %2366 = vmatprep.subr.mxu0 %v2235
        %2367 = vmatpush1.msra.mxu0 %v2234
        %2368 = vmatprep.subr.mxu0 %v2239
        %2369 = vmatpush1.msra.mxu0 %v2238
        %2370 = vmatprep.subr.mxu0 %v2243
        %2371 = vmatpush1.msra.mxu0 %v2242
        %2372 = vmatprep.subr.mxu0 %v2247
        %2373 = vmatpush1.msra.mxu0 %v2246
        %2374 = vmatprep.subr.mxu0 %v2251
        %2375 = vmatpush1.msra.mxu0 %v2250
        %2376 = vmatprep.subr.mxu0 %v2255
        %2377 = vmatpush1.msra.mxu0 %v2254
        %2378 = vmatprep.subr.mxu0 %v2259
        %2379 = vmatpush1.msra.mxu0 %v2258
        %2380 = vmatprep.subr.mxu0 %v2263
        %2381 = vmatpush1.msra.mxu0 %v2262
        %2382 = vmatprep.subr.mxu0 %v2267
        %2383 = vmatpush1.msra.mxu0 %v2266
        %2384 = vmatprep.subr.mxu0 0.0
        %2385 = vmatpush1.msra.mxu0 0.0
        %2386 = vmatprep.subr.mxu0 0.0
        %2387 = vmatpush1.msra.mxu0 0.0
        %2388 = vmatprep.subr.mxu0 0.0
        %2389 = vmatpush1.msra.mxu0 0.0
        %2390 = vmatprep.subr.mxu0 0.0
        %2391 = vmatpush1.msra.mxu0 0.0
        %2392 = vmatprep.subr.mxu0 0.0
        %2393 = vmatpush1.msra.mxu0 0.0
        %2394 = vmatprep.subr.mxu0 0.0
        %2395 = vmatpush1.msra.mxu0 0.0
        %2396 = vmatprep.subr.mxu0 0.0
        %2397 = vmatpush1.msra.mxu0 0.0
        %2398 = vmatprep.subr.mxu0 0.0
        %2399 = vmatpush1.msra.mxu0 0.0
        %2400 = vmatprep.subr.mxu0 0.0
        %2401 = vmatpush1.msra.mxu0 0.0
        %2402 = vmatprep.subr.mxu0 0.0
        %2403 = vmatpush1.msra.mxu0 0.0
        %2404 = vmatprep.subr.mxu0 0.0
        %2405 = vmatpush1.msra.mxu0 0.0
        %2406 = vmatprep.subr.mxu0 0.0
        %2407 = vmatpush1.msra.mxu0 0.0
        %2408 = vmatprep.mubr.f32.mxu0 %v2271
        %2409 = vmatmul.mubr.f32.gmra.mrb[0].mxu0 %v2268
        %v2410 = vpop.f32.mrb[0].mxu0
        %v2411 = vadd.f32 0.0, %v2410
        %v2412 = vpop.f32.mrb[0].mxu0
        %v2413 = vadd.f32 0.0, %v2412
        %2414 = vdwg.mxu0
        %v2419 = vcombine.low %v2340, %v2342
        %v2420 = vcombine.low %v2411, %v2413
        %v2422 = vunpack.c.l.s4 1966171168
        %v2423 = vunpack.c.0.s8 %v2422
        %v2424 = vlaneseq
        %v2425 = vshrl.u32 %v2424, 7
        %v2426 = vsub.s32 %v2423, %v2425
        %v2427 = vrot.slane %v2419, %v2426
        %v2429 = vunpack.c.l.s4 1966171168
        %v2430 = vunpack.c.0.s8 %v2429
        %v2431 = vlaneseq
        %v2432 = vshrl.u32 %v2431, 7
        %v2433 = vsub.s32 %v2430, %v2432
        %v2434 = vrot.slane %v2420, %v2433
        %v2435 = vcombine.low %v2427, %v2434
        %v2437 = vunpack.c.l.s4 1966171168
        %v2438 = vunpack.c.0.s8 %v2437
        %v2439 = vlaneseq
        %v2440 = vshrl.u32 %v2439, 7
        %v2441 = vsub.s32 %v2438, %v2440
        %v2442 = vrot.slane %v2435, %v2441
        %v2444 = vadd.f32 %v2186, %v2442
        %s2445 = scalar_lea.vmem [#allocation13], 2560
        %v2446 = vld [vmem:[%s2445] sm:$0xff]
        %v2447 = vld [vmem:[%s2445 + $0x8] sm:$0xff]
        %v2448 = vld [vmem:[%s2445 + $0x10] sm:$0xff]
        %v2449 = vld [vmem:[%s2445 + $0x18] sm:$0xff]
        %v2450 = vld [vmem:[%s2445 + $0x20] sm:$0xff]
        %v2451 = vld [vmem:[%s2445 + $0x28] sm:$0xff]
        %v2452 = vld [vmem:[%s2445 + $0x30] sm:$0xff]
        %v2453 = vld [vmem:[%s2445 + $0x38] sm:$0xff]
        %v2454 = vld [vmem:[%s2445 + $0x40] sm:$0xff]
        %v2455 = vld [vmem:[%s2445 + $0x48] sm:$0xff]
        %v2456 = vld [vmem:[%s2445 + $0x50] sm:$0xff]
        %v2457 = vld [vmem:[%s2445 + $0x58] sm:$0xff]
        %v2458 = vld [vmem:[%s2445 + $0x60] sm:$0xff]
        %v2459 = vld [vmem:[%s2445 + $0x68] sm:$0xff]
        %v2460 = vld [vmem:[%s2445 + $0x70] sm:$0xff]
        %v2461 = vld [vmem:[%s2445 + $0x78] sm:$0xff]
        %v2462 = vld [vmem:[%s2445 + $0x80] sm:$0xff]
        %v2463 = vld [vmem:[%s2445 + $0x88] sm:$0xff]
        %v2464 = vld [vmem:[%s2445 + $0x90] sm:$0xff]
        %v2465 = vld [vmem:[%s2445 + $0x98] sm:$0xff]
        %v2466 = vld [vmem:[%s2445 + $0xa0] sm:$0xff]
        %v2467 = vld [vmem:[%s2445 + $0xa8] sm:$0xff]
        %v2468 = vld [vmem:[%s2445 + $0xb0] sm:$0xff]
        %v2469 = vld [vmem:[%s2445 + $0xb8] sm:$0xff]
        %v2470 = vld [vmem:[%s2445 + $0xc0] sm:$0xff]
        %v2471 = vld [vmem:[%s2445 + $0xc8] sm:$0xff]
        %v2472 = vld [vmem:[%s2445 + $0xd0] sm:$0xff]
        %v2473 = vld [vmem:[%s2445 + $0xd8] sm:$0xff]
        %v2474 = vld [vmem:[%s2445 + $0xe0] sm:$0xff]
        %v2475 = vld [vmem:[%s2445 + $0xe8] sm:$0xff]
        %v2476 = vld [vmem:[%s2445 + $0xf0] sm:$0xff]
        %v2477 = vld [vmem:[%s2445 + $0xf8] sm:$0xff]
        %v2478 = vld [vmem:[%s2445 + $0x100] sm:$0xff]
        %v2479 = vld [vmem:[%s2445 + $0x108] sm:$0xff]
        %v2480 = vld [vmem:[%s2445 + $0x110] sm:$0xff]
        %v2481 = vld [vmem:[%s2445 + $0x118] sm:$0xff]
        %v2482 = vld [vmem:[%s2445 + $0x120] sm:$0xff]
        %v2483 = vld [vmem:[%s2445 + $0x128] sm:$0xff]
        %v2484 = vld [vmem:[%s2445 + $0x130] sm:$0xff]
        %v2485 = vld [vmem:[%s2445 + $0x138] sm:$0xff]
        %v2486 = vld [vmem:[%s2445 + $0x140] sm:$0xff]
        %v2487 = vld [vmem:[%s2445 + $0x148] sm:$0xff]
        %v2488 = vld [vmem:[%s2445 + $0x150] sm:$0xff]
        %v2489 = vld [vmem:[%s2445 + $0x158] sm:$0xff]
        %v2490 = vld [vmem:[%s2445 + $0x160] sm:$0xff]
        %v2491 = vld [vmem:[%s2445 + $0x168] sm:$0xff]
        %v2492 = vld [vmem:[%s2445 + $0x170] sm:$0xff]
        %v2493 = vld [vmem:[%s2445 + $0x178] sm:$0xff]
        %v2494 = vld [vmem:[%s2445 + $0x180] sm:$0xff]
        %v2495 = vld [vmem:[%s2445 + $0x188] sm:$0xff]
        %v2496 = vld [vmem:[%s2445 + $0x190] sm:$0xff]
        %v2497 = vld [vmem:[%s2445 + $0x198] sm:$0xff]
        %v2498 = vld [vmem:[%s2445 + $0x1a0] sm:$0xff]
        %v2499 = vld [vmem:[%s2445 + $0x1a8] sm:$0xff]
        %v2500 = vld [vmem:[%s2445 + $0x1b0] sm:$0xff]
        %v2501 = vld [vmem:[%s2445 + $0x1b8] sm:$0xff]
        %v2502 = vld [vmem:[%s2445 + $0x1c0] sm:$0xff]
        %v2503 = vld [vmem:[%s2445 + $0x1c8] sm:$0xff]
        %v2504 = vld [vmem:[%s2445 + $0x1d0] sm:$0xff]
        %v2505 = vld [vmem:[%s2445 + $0x1d8] sm:$0xff]
        %v2506 = vld [vmem:[%s2445 + $0x1e0] sm:$0xff]
        %v2507 = vld [vmem:[%s2445 + $0x1e8] sm:$0xff]
        %v2508 = vld [vmem:[%s2445 + $0x1f0] sm:$0xff]
        %v2509 = vld [vmem:[%s2445 + $0x1f8] sm:$0xff]
        %v2510 = vld [vmem:[%s2445 + $0x200] sm:$0xff]
        %v2511 = vld [vmem:[%s2445 + $0x208] sm:$0xff]
        %v2512 = vld [vmem:[%s2445 + $0x210] sm:$0xff]
        %v2513 = vld [vmem:[%s2445 + $0x218] sm:$0xff]
        %v2514 = vld [vmem:[%s2445 + $0x220] sm:$0xff]
        %v2515 = vld [vmem:[%s2445 + $0x228] sm:$0xff]
        %v2516 = vld [vmem:[%s2445 + $0x230] sm:$0xff]
        %v2517 = vld [vmem:[%s2445 + $0x238] sm:$0xff]
        %v2518 = vld [vmem:[%s2445 + $0x240] sm:$0xff]
        %v2519 = vld [vmem:[%s2445 + $0x248] sm:$0xff]
        %v2520 = vld [vmem:[%s2445 + $0x250] sm:$0xff]
        %v2521 = vld [vmem:[%s2445 + $0x258] sm:$0xff]
        %v2522 = vld [vmem:[%s2445 + $0x260] sm:$0xff]
        %v2523 = vld [vmem:[%s2445 + $0x268] sm:$0xff]
        %v2524 = vld [vmem:[%s2445 + $0x270] sm:$0xff]
        %v2525 = vld [vmem:[%s2445 + $0x278] sm:$0xff]
        %v2526 = vrot.slane %v1411, 4
        %v2527 = vrot.slane %v1412, 4
        %v2529 = vsel %vm1494, %v2527, 0
        %2531 = vmatprep.subr.mxu0 %v2447
        %2532 = vmatpush1.msra.mxu0 %v2446
        %2533 = vmatprep.subr.mxu0 %v2451
        %2534 = vmatpush1.msra.mxu0 %v2450
        %2535 = vmatprep.subr.mxu0 %v2455
        %2536 = vmatpush1.msra.mxu0 %v2454
        %2537 = vmatprep.subr.mxu0 %v2459
        %2538 = vmatpush1.msra.mxu0 %v2458
        %2539 = vmatprep.subr.mxu0 %v2463
        %2540 = vmatpush1.msra.mxu0 %v2462
        %2541 = vmatprep.subr.mxu0 %v2467
        %2542 = vmatpush1.msra.mxu0 %v2466
        %2543 = vmatprep.subr.mxu0 %v2471
        %2544 = vmatpush1.msra.mxu0 %v2470
        %2545 = vmatprep.subr.mxu0 %v2475
        %2546 = vmatpush1.msra.mxu0 %v2474
        %2547 = vmatprep.subr.mxu0 %v2479
        %2548 = vmatpush1.msra.mxu0 %v2478
        %2549 = vmatprep.subr.mxu0 %v2483
        %2550 = vmatpush1.msra.mxu0 %v2482
        %2551 = vmatprep.subr.mxu0 %v2487
        %2552 = vmatpush1.msra.mxu0 %v2486
        %2553 = vmatprep.subr.mxu0 %v2491
        %2554 = vmatpush1.msra.mxu0 %v2490
        %2555 = vmatprep.subr.mxu0 %v2495
        %2556 = vmatpush1.msra.mxu0 %v2494
        %2557 = vmatprep.subr.mxu0 %v2499
        %2558 = vmatpush1.msra.mxu0 %v2498
        %2559 = vmatprep.subr.mxu0 %v2503
        %2560 = vmatpush1.msra.mxu0 %v2502
        %2561 = vmatprep.subr.mxu0 %v2507
        %2562 = vmatpush1.msra.mxu0 %v2506
        %2563 = vmatprep.subr.mxu0 %v2511
        %2564 = vmatpush1.msra.mxu0 %v2510
        %2565 = vmatprep.subr.mxu0 %v2515
        %2566 = vmatpush1.msra.mxu0 %v2514
        %2567 = vmatprep.subr.mxu0 %v2519
        %2568 = vmatpush1.msra.mxu0 %v2518
        %2569 = vmatprep.subr.mxu0 %v2523
        %2570 = vmatpush1.msra.mxu0 %v2522
        %2571 = vmatprep.subr.mxu0 0.0
        %2572 = vmatpush1.msra.mxu0 0.0
        %2573 = vmatprep.subr.mxu0 0.0
        %2574 = vmatpush1.msra.mxu0 0.0
        %2575 = vmatprep.subr.mxu0 0.0
        %2576 = vmatpush1.msra.mxu0 0.0
        %2577 = vmatprep.subr.mxu0 0.0
        %2578 = vmatpush1.msra.mxu0 0.0
        %2579 = vmatprep.subr.mxu0 0.0
        %2580 = vmatpush1.msra.mxu0 0.0
        %2581 = vmatprep.subr.mxu0 0.0
        %2582 = vmatpush1.msra.mxu0 0.0
        %2583 = vmatprep.subr.mxu0 0.0
        %2584 = vmatpush1.msra.mxu0 0.0
        %2585 = vmatprep.subr.mxu0 0.0
        %2586 = vmatpush1.msra.mxu0 0.0
        %2587 = vmatprep.subr.mxu0 0.0
        %2588 = vmatpush1.msra.mxu0 0.0
        %2589 = vmatprep.subr.mxu0 0.0
        %2590 = vmatpush1.msra.mxu0 0.0
        %2591 = vmatprep.subr.mxu0 0.0
        %2592 = vmatpush1.msra.mxu0 0.0
        %2593 = vmatprep.subr.mxu0 0.0
        %2594 = vmatpush1.msra.mxu0 0.0
        %2595 = vmatprep.mubr.f32.mxu0 %v2529
        %2596 = vmatmul.mubr.f32.gmra.mrb[0].mxu0 %v2526
        %v2597 = vpop.f32.mrb[0].mxu0
        %v2598 = vadd.f32 0.0, %v2597
        %v2599 = vpop.f32.mrb[0].mxu0
        %v2600 = vadd.f32 0.0, %v2599
        %2601 = vdwg.mxu0
        %2602 = vmatprep.subr.mxu0 %v2449
        %2603 = vmatpush1.msra.mxu0 %v2448
        %2604 = vmatprep.subr.mxu0 %v2453
        %2605 = vmatpush1.msra.mxu0 %v2452
        %2606 = vmatprep.subr.mxu0 %v2457
        %2607 = vmatpush1.msra.mxu0 %v2456
        %2608 = vmatprep.subr.mxu0 %v2461
        %2609 = vmatpush1.msra.mxu0 %v2460
        %2610 = vmatprep.subr.mxu0 %v2465
        %2611 = vmatpush1.msra.mxu0 %v2464
        %2612 = vmatprep.subr.mxu0 %v2469
        %2613 = vmatpush1.msra.mxu0 %v2468
        %2614 = vmatprep.subr.mxu0 %v2473
        %2615 = vmatpush1.msra.mxu0 %v2472
        %2616 = vmatprep.subr.mxu0 %v2477
        %2617 = vmatpush1.msra.mxu0 %v2476
        %2618 = vmatprep.subr.mxu0 %v2481
        %2619 = vmatpush1.msra.mxu0 %v2480
        %2620 = vmatprep.subr.mxu0 %v2485
        %2621 = vmatpush1.msra.mxu0 %v2484
        %2622 = vmatprep.subr.mxu0 %v2489
        %2623 = vmatpush1.msra.mxu0 %v2488
        %2624 = vmatprep.subr.mxu0 %v2493
        %2625 = vmatpush1.msra.mxu0 %v2492
        %2626 = vmatprep.subr.mxu0 %v2497
        %2627 = vmatpush1.msra.mxu0 %v2496
        %2628 = vmatprep.subr.mxu0 %v2501
        %2629 = vmatpush1.msra.mxu0 %v2500
        %2630 = vmatprep.subr.mxu0 %v2505
        %2631 = vmatpush1.msra.mxu0 %v2504
        %2632 = vmatprep.subr.mxu0 %v2509
        %2633 = vmatpush1.msra.mxu0 %v2508
        %2634 = vmatprep.subr.mxu0 %v2513
        %2635 = vmatpush1.msra.mxu0 %v2512
        %2636 = vmatprep.subr.mxu0 %v2517
        %2637 = vmatpush1.msra.mxu0 %v2516
        %2638 = vmatprep.subr.mxu0 %v2521
        %2639 = vmatpush1.msra.mxu0 %v2520
        %2640 = vmatprep.subr.mxu0 %v2525
        %2641 = vmatpush1.msra.mxu0 %v2524
        %2642 = vmatprep.subr.mxu0 0.0
        %2643 = vmatpush1.msra.mxu0 0.0
        %2644 = vmatprep.subr.mxu0 0.0
        %2645 = vmatpush1.msra.mxu0 0.0
        %2646 = vmatprep.subr.mxu0 0.0
        %2647 = vmatpush1.msra.mxu0 0.0
        %2648 = vmatprep.subr.mxu0 0.0
        %2649 = vmatpush1.msra.mxu0 0.0
        %2650 = vmatprep.subr.mxu0 0.0
        %2651 = vmatpush1.msra.mxu0 0.0
        %2652 = vmatprep.subr.mxu0 0.0
        %2653 = vmatpush1.msra.mxu0 0.0
        %2654 = vmatprep.subr.mxu0 0.0
        %2655 = vmatpush1.msra.mxu0 0.0
        %2656 = vmatprep.subr.mxu0 0.0
        %2657 = vmatpush1.msra.mxu0 0.0
        %2658 = vmatprep.subr.mxu0 0.0
        %2659 = vmatpush1.msra.mxu0 0.0
        %2660 = vmatprep.subr.mxu0 0.0
        %2661 = vmatpush1.msra.mxu0 0.0
        %2662 = vmatprep.subr.mxu0 0.0
        %2663 = vmatpush1.msra.mxu0 0.0
        %2664 = vmatprep.subr.mxu0 0.0
        %2665 = vmatpush1.msra.mxu0 0.0
        %2666 = vmatprep.mubr.f32.mxu0 %v2529
        %2667 = vmatmul.mubr.f32.gmra.mrb[0].mxu0 %v2526
        %v2668 = vpop.f32.mrb[0].mxu0
        %v2669 = vadd.f32 0.0, %v2668
        %v2670 = vpop.f32.mrb[0].mxu0
        %v2671 = vadd.f32 0.0, %v2670
        %2672 = vdwg.mxu0
        %v2677 = vcombine.low %v2598, %v2600
        %v2678 = vcombine.low %v2669, %v2671
        %v2680 = vunpack.c.l.s4 1966171168
        %v2681 = vunpack.c.0.s8 %v2680
        %v2682 = vlaneseq
        %v2683 = vshrl.u32 %v2682, 7
        %v2684 = vsub.s32 %v2681, %v2683
        %v2685 = vrot.slane %v2677, %v2684
        %v2687 = vunpack.c.l.s4 1966171168
        %v2688 = vunpack.c.0.s8 %v2687
        %v2689 = vlaneseq
        %v2690 = vshrl.u32 %v2689, 7
        %v2691 = vsub.s32 %v2688, %v2690
        %v2692 = vrot.slane %v2678, %v2691
        %v2693 = vcombine.low %v2685, %v2692
        %v2695 = vunpack.c.l.s4 1966171168
        %v2696 = vunpack.c.0.s8 %v2695
        %v2697 = vlaneseq
        %v2698 = vshrl.u32 %v2697, 7
        %v2699 = vsub.s32 %v2696, %v2698
        %v2700 = vrot.slane %v2693, %v2699
        %v2702 = vadd.f32 %v2444, %v2700
        %s2703 = scalar_lea.vmem [#allocation13], 3200
        %v2704 = vld [vmem:[%s2703] sm:$0xff]
        %v2705 = vld [vmem:[%s2703 + $0x8] sm:$0xff]
        %v2706 = vld [vmem:[%s2703 + $0x10] sm:$0xff]
        %v2707 = vld [vmem:[%s2703 + $0x18] sm:$0xff]
        %v2708 = vld [vmem:[%s2703 + $0x20] sm:$0xff]
        %v2709 = vld [vmem:[%s2703 + $0x28] sm:$0xff]
        %v2710 = vld [vmem:[%s2703 + $0x30] sm:$0xff]
        %v2711 = vld [vmem:[%s2703 + $0x38] sm:$0xff]
        %v2712 = vld [vmem:[%s2703 + $0x40] sm:$0xff]
        %v2713 = vld [vmem:[%s2703 + $0x48] sm:$0xff]
        %v2714 = vld [vmem:[%s2703 + $0x50] sm:$0xff]
        %v2715 = vld [vmem:[%s2703 + $0x58] sm:$0xff]
        %v2716 = vld [vmem:[%s2703 + $0x60] sm:$0xff]
        %v2717 = vld [vmem:[%s2703 + $0x68] sm:$0xff]
        %v2718 = vld [vmem:[%s2703 + $0x70] sm:$0xff]
        %v2719 = vld [vmem:[%s2703 + $0x78] sm:$0xff]
        %v2720 = vld [vmem:[%s2703 + $0x80] sm:$0xff]
        %v2721 = vld [vmem:[%s2703 + $0x88] sm:$0xff]
        %v2722 = vld [vmem:[%s2703 + $0x90] sm:$0xff]
        %v2723 = vld [vmem:[%s2703 + $0x98] sm:$0xff]
        %v2724 = vld [vmem:[%s2703 + $0xa0] sm:$0xff]
        %v2725 = vld [vmem:[%s2703 + $0xa8] sm:$0xff]
        %v2726 = vld [vmem:[%s2703 + $0xb0] sm:$0xff]
        %v2727 = vld [vmem:[%s2703 + $0xb8] sm:$0xff]
        %v2728 = vld [vmem:[%s2703 + $0xc0] sm:$0xff]
        %v2729 = vld [vmem:[%s2703 + $0xc8] sm:$0xff]
        %v2730 = vld [vmem:[%s2703 + $0xd0] sm:$0xff]
        %v2731 = vld [vmem:[%s2703 + $0xd8] sm:$0xff]
        %v2732 = vld [vmem:[%s2703 + $0xe0] sm:$0xff]
        %v2733 = vld [vmem:[%s2703 + $0xe8] sm:$0xff]
        %v2734 = vld [vmem:[%s2703 + $0xf0] sm:$0xff]
        %v2735 = vld [vmem:[%s2703 + $0xf8] sm:$0xff]
        %v2736 = vld [vmem:[%s2703 + $0x100] sm:$0xff]
        %v2737 = vld [vmem:[%s2703 + $0x108] sm:$0xff]
        %v2738 = vld [vmem:[%s2703 + $0x110] sm:$0xff]
        %v2739 = vld [vmem:[%s2703 + $0x118] sm:$0xff]
        %v2740 = vld [vmem:[%s2703 + $0x120] sm:$0xff]
        %v2741 = vld [vmem:[%s2703 + $0x128] sm:$0xff]
        %v2742 = vld [vmem:[%s2703 + $0x130] sm:$0xff]
        %v2743 = vld [vmem:[%s2703 + $0x138] sm:$0xff]
        %v2744 = vld [vmem:[%s2703 + $0x140] sm:$0xff]
        %v2745 = vld [vmem:[%s2703 + $0x148] sm:$0xff]
        %v2746 = vld [vmem:[%s2703 + $0x150] sm:$0xff]
        %v2747 = vld [vmem:[%s2703 + $0x158] sm:$0xff]
        %v2748 = vld [vmem:[%s2703 + $0x160] sm:$0xff]
        %v2749 = vld [vmem:[%s2703 + $0x168] sm:$0xff]
        %v2750 = vld [vmem:[%s2703 + $0x170] sm:$0xff]
        %v2751 = vld [vmem:[%s2703 + $0x178] sm:$0xff]
        %v2752 = vld [vmem:[%s2703 + $0x180] sm:$0xff]
        %v2753 = vld [vmem:[%s2703 + $0x188] sm:$0xff]
        %v2754 = vld [vmem:[%s2703 + $0x190] sm:$0xff]
        %v2755 = vld [vmem:[%s2703 + $0x198] sm:$0xff]
        %v2756 = vld [vmem:[%s2703 + $0x1a0] sm:$0xff]
        %v2757 = vld [vmem:[%s2703 + $0x1a8] sm:$0xff]
        %v2758 = vld [vmem:[%s2703 + $0x1b0] sm:$0xff]
        %v2759 = vld [vmem:[%s2703 + $0x1b8] sm:$0xff]
        %v2760 = vld [vmem:[%s2703 + $0x1c0] sm:$0xff]
        %v2761 = vld [vmem:[%s2703 + $0x1c8] sm:$0xff]
        %v2762 = vld [vmem:[%s2703 + $0x1d0] sm:$0xff]
        %v2763 = vld [vmem:[%s2703 + $0x1d8] sm:$0xff]
        %v2764 = vld [vmem:[%s2703 + $0x1e0] sm:$0xff]
        %v2765 = vld [vmem:[%s2703 + $0x1e8] sm:$0xff]
        %v2766 = vld [vmem:[%s2703 + $0x1f0] sm:$0xff]
        %v2767 = vld [vmem:[%s2703 + $0x1f8] sm:$0xff]
        %v2768 = vld [vmem:[%s2703 + $0x200] sm:$0xff]
        %v2769 = vld [vmem:[%s2703 + $0x208] sm:$0xff]
        %v2770 = vld [vmem:[%s2703 + $0x210] sm:$0xff]
        %v2771 = vld [vmem:[%s2703 + $0x218] sm:$0xff]
        %v2772 = vld [vmem:[%s2703 + $0x220] sm:$0xff]
        %v2773 = vld [vmem:[%s2703 + $0x228] sm:$0xff]
        %v2774 = vld [vmem:[%s2703 + $0x230] sm:$0xff]
        %v2775 = vld [vmem:[%s2703 + $0x238] sm:$0xff]
        %v2776 = vld [vmem:[%s2703 + $0x240] sm:$0xff]
        %v2777 = vld [vmem:[%s2703 + $0x248] sm:$0xff]
        %v2778 = vld [vmem:[%s2703 + $0x250] sm:$0xff]
        %v2779 = vld [vmem:[%s2703 + $0x258] sm:$0xff]
        %v2780 = vld [vmem:[%s2703 + $0x260] sm:$0xff]
        %v2781 = vld [vmem:[%s2703 + $0x268] sm:$0xff]
        %v2782 = vld [vmem:[%s2703 + $0x270] sm:$0xff]
        %v2783 = vld [vmem:[%s2703 + $0x278] sm:$0xff]
        %v2784 = vrot.slane %v1411, 5
        %v2785 = vrot.slane %v1412, 5
        %v2787 = vsel %vm1494, %v2785, 0
        %2789 = vmatprep.subr.mxu0 %v2705
        %2790 = vmatpush1.msra.mxu0 %v2704
        %2791 = vmatprep.subr.mxu0 %v2709
        %2792 = vmatpush1.msra.mxu0 %v2708
        %2793 = vmatprep.subr.mxu0 %v2713
        %2794 = vmatpush1.msra.mxu0 %v2712
        %2795 = vmatprep.subr.mxu0 %v2717
        %2796 = vmatpush1.msra.mxu0 %v2716
        %2797 = vmatprep.subr.mxu0 %v2721
        %2798 = vmatpush1.msra.mxu0 %v2720
        %2799 = vmatprep.subr.mxu0 %v2725
        %2800 = vmatpush1.msra.mxu0 %v2724
        %2801 = vmatprep.subr.mxu0 %v2729
        %2802 = vmatpush1.msra.mxu0 %v2728
        %2803 = vmatprep.subr.mxu0 %v2733
        %2804 = vmatpush1.msra.mxu0 %v2732
        %2805 = vmatprep.subr.mxu0 %v2737
        %2806 = vmatpush1.msra.mxu0 %v2736
        %2807 = vmatprep.subr.mxu0 %v2741
        %2808 = vmatpush1.msra.mxu0 %v2740
        %2809 = vmatprep.subr.mxu0 %v2745
        %2810 = vmatpush1.msra.mxu0 %v2744
        %2811 = vmatprep.subr.mxu0 %v2749
        %2812 = vmatpush1.msra.mxu0 %v2748
        %2813 = vmatprep.subr.mxu0 %v2753
        %2814 = vmatpush1.msra.mxu0 %v2752
        %2815 = vmatprep.subr.mxu0 %v2757
        %2816 = vmatpush1.msra.mxu0 %v2756
        %2817 = vmatprep.subr.mxu0 %v2761
        %2818 = vmatpush1.msra.mxu0 %v2760
        %2819 = vmatprep.subr.mxu0 %v2765
        %2820 = vmatpush1.msra.mxu0 %v2764
        %2821 = vmatprep.subr.mxu0 %v2769
        %2822 = vmatpush1.msra.mxu0 %v2768
        %2823 = vmatprep.subr.mxu0 %v2773
        %2824 = vmatpush1.msra.mxu0 %v2772
        %2825 = vmatprep.subr.mxu0 %v2777
        %2826 = vmatpush1.msra.mxu0 %v2776
        %2827 = vmatprep.subr.mxu0 %v2781
        %2828 = vmatpush1.msra.mxu0 %v2780
        %2829 = vmatprep.subr.mxu0 0.0
        %2830 = vmatpush1.msra.mxu0 0.0
        %2831 = vmatprep.subr.mxu0 0.0
        %2832 = vmatpush1.msra.mxu0 0.0
        %2833 = vmatprep.subr.mxu0 0.0
        %2834 = vmatpush1.msra.mxu0 0.0
        %2835 = vmatprep.subr.mxu0 0.0
        %2836 = vmatpush1.msra.mxu0 0.0
        %2837 = vmatprep.subr.mxu0 0.0
        %2838 = vmatpush1.msra.mxu0 0.0
        %2839 = vmatprep.subr.mxu0 0.0
        %2840 = vmatpush1.msra.mxu0 0.0
        %2841 = vmatprep.subr.mxu0 0.0
        %2842 = vmatpush1.msra.mxu0 0.0
        %2843 = vmatprep.subr.mxu0 0.0
        %2844 = vmatpush1.msra.mxu0 0.0
        %2845 = vmatprep.subr.mxu0 0.0
        %2846 = vmatpush1.msra.mxu0 0.0
        %2847 = vmatprep.subr.mxu0 0.0
        %2848 = vmatpush1.msra.mxu0 0.0
        %2849 = vmatprep.subr.mxu0 0.0
        %2850 = vmatpush1.msra.mxu0 0.0
        %2851 = vmatprep.subr.mxu0 0.0
        %2852 = vmatpush1.msra.mxu0 0.0
        %2853 = vmatprep.mubr.f32.mxu0 %v2787
        %2854 = vmatmul.mubr.f32.gmra.mrb[0].mxu0 %v2784
        %v2855 = vpop.f32.mrb[0].mxu0
        %v2856 = vadd.f32 0.0, %v2855
        %v2857 = vpop.f32.mrb[0].mxu0
        %v2858 = vadd.f32 0.0, %v2857
        %2859 = vdwg.mxu0
        %2860 = vmatprep.subr.mxu0 %v2707
        %2861 = vmatpush1.msra.mxu0 %v2706
        %2862 = vmatprep.subr.mxu0 %v2711
        %2863 = vmatpush1.msra.mxu0 %v2710
        %2864 = vmatprep.subr.mxu0 %v2715
        %2865 = vmatpush1.msra.mxu0 %v2714
        %2866 = vmatprep.subr.mxu0 %v2719
        %2867 = vmatpush1.msra.mxu0 %v2718
        %2868 = vmatprep.subr.mxu0 %v2723
        %2869 = vmatpush1.msra.mxu0 %v2722
        %2870 = vmatprep.subr.mxu0 %v2727
        %2871 = vmatpush1.msra.mxu0 %v2726
        %2872 = vmatprep.subr.mxu0 %v2731
        %2873 = vmatpush1.msra.mxu0 %v2730
        %2874 = vmatprep.subr.mxu0 %v2735
        %2875 = vmatpush1.msra.mxu0 %v2734
        %2876 = vmatprep.subr.mxu0 %v2739
        %2877 = vmatpush1.msra.mxu0 %v2738
        %2878 = vmatprep.subr.mxu0 %v2743
        %2879 = vmatpush1.msra.mxu0 %v2742
        %2880 = vmatprep.subr.mxu0 %v2747
        %2881 = vmatpush1.msra.mxu0 %v2746
        %2882 = vmatprep.subr.mxu0 %v2751
        %2883 = vmatpush1.msra.mxu0 %v2750
        %2884 = vmatprep.subr.mxu0 %v2755
        %2885 = vmatpush1.msra.mxu0 %v2754
        %2886 = vmatprep.subr.mxu0 %v2759
        %2887 = vmatpush1.msra.mxu0 %v2758
        %2888 = vmatprep.subr.mxu0 %v2763
        %2889 = vmatpush1.msra.mxu0 %v2762
        %2890 = vmatprep.subr.mxu0 %v2767
        %2891 = vmatpush1.msra.mxu0 %v2766
        %2892 = vmatprep.subr.mxu0 %v2771
        %2893 = vmatpush1.msra.mxu0 %v2770
        %2894 = vmatprep.subr.mxu0 %v2775
        %2895 = vmatpush1.msra.mxu0 %v2774
        %2896 = vmatprep.subr.mxu0 %v2779
        %2897 = vmatpush1.msra.mxu0 %v2778
        %2898 = vmatprep.subr.mxu0 %v2783
        %2899 = vmatpush1.msra.mxu0 %v2782
        %2900 = vmatprep.subr.mxu0 0.0
        %2901 = vmatpush1.msra.mxu0 0.0
        %2902 = vmatprep.subr.mxu0 0.0
        %2903 = vmatpush1.msra.mxu0 0.0
        %2904 = vmatprep.subr.mxu0 0.0
        %2905 = vmatpush1.msra.mxu0 0.0
        %2906 = vmatprep.subr.mxu0 0.0
        %2907 = vmatpush1.msra.mxu0 0.0
        %2908 = vmatprep.subr.mxu0 0.0
        %2909 = vmatpush1.msra.mxu0 0.0
        %2910 = vmatprep.subr.mxu0 0.0
        %2911 = vmatpush1.msra.mxu0 0.0
        %2912 = vmatprep.subr.mxu0 0.0
        %2913 = vmatpush1.msra.mxu0 0.0
        %2914 = vmatprep.subr.mxu0 0.0
        %2915 = vmatpush1.msra.mxu0 0.0
        %2916 = vmatprep.subr.mxu0 0.0
        %2917 = vmatpush1.msra.mxu0 0.0
        %2918 = vmatprep.subr.mxu0 0.0
        %2919 = vmatpush1.msra.mxu0 0.0
        %2920 = vmatprep.subr.mxu0 0.0
        %2921 = vmatpush1.msra.mxu0 0.0
        %2922 = vmatprep.subr.mxu0 0.0
        %2923 = vmatpush1.msra.mxu0 0.0
        %2924 = vmatprep.mubr.f32.mxu0 %v2787
        %2925 = vmatmul.mubr.f32.gmra.mrb[0].mxu0 %v2784
        %v2926 = vpop.f32.mrb[0].mxu0
        %v2927 = vadd.f32 0.0, %v2926
        %v2928 = vpop.f32.mrb[0].mxu0
        %v2929 = vadd.f32 0.0, %v2928
        %2930 = vdwg.mxu0
        %v2935 = vcombine.low %v2856, %v2858
        %v2936 = vcombine.low %v2927, %v2929
        %v2938 = vunpack.c.l.s4 1966171168
        %v2939 = vunpack.c.0.s8 %v2938
        %v2940 = vlaneseq
        %v2941 = vshrl.u32 %v2940, 7
        %v2942 = vsub.s32 %v2939, %v2941
        %v2943 = vrot.slane %v2935, %v2942
        %v2945 = vunpack.c.l.s4 1966171168
        %v2946 = vunpack.c.0.s8 %v2945
        %v2947 = vlaneseq
        %v2948 = vshrl.u32 %v2947, 7
        %v2949 = vsub.s32 %v2946, %v2948
        %v2950 = vrot.slane %v2936, %v2949
        %v2951 = vcombine.low %v2943, %v2950
        %v2953 = vunpack.c.l.s4 1966171168
        %v2954 = vunpack.c.0.s8 %v2953
        %v2955 = vlaneseq
        %v2956 = vshrl.u32 %v2955, 7
        %v2957 = vsub.s32 %v2954, %v2956
        %v2958 = vrot.slane %v2951, %v2957
        %v2960 = vadd.f32 %v2702, %v2958
        %s2961 = scalar_lea.vmem [#allocation13], 3840
        %v2962 = vld [vmem:[%s2961] sm:$0xff]
        %v2963 = vld [vmem:[%s2961 + $0x8] sm:$0xff]
        %v2964 = vld [vmem:[%s2961 + $0x10] sm:$0xff]
        %v2965 = vld [vmem:[%s2961 + $0x18] sm:$0xff]
        %v2966 = vld [vmem:[%s2961 + $0x20] sm:$0xff]
        %v2967 = vld [vmem:[%s2961 + $0x28] sm:$0xff]
        %v2968 = vld [vmem:[%s2961 + $0x30] sm:$0xff]
        %v2969 = vld [vmem:[%s2961 + $0x38] sm:$0xff]
        %v2970 = vld [vmem:[%s2961 + $0x40] sm:$0xff]
        %v2971 = vld [vmem:[%s2961 + $0x48] sm:$0xff]
        %v2972 = vld [vmem:[%s2961 + $0x50] sm:$0xff]
        %v2973 = vld [vmem:[%s2961 + $0x58] sm:$0xff]
        %v2974 = vld [vmem:[%s2961 + $0x60] sm:$0xff]
        %v2975 = vld [vmem:[%s2961 + $0x68] sm:$0xff]
        %v2976 = vld [vmem:[%s2961 + $0x70] sm:$0xff]
        %v2977 = vld [vmem:[%s2961 + $0x78] sm:$0xff]
        %v2978 = vld [vmem:[%s2961 + $0x80] sm:$0xff]
        %v2979 = vld [vmem:[%s2961 + $0x88] sm:$0xff]
        %v2980 = vld [vmem:[%s2961 + $0x90] sm:$0xff]
        %v2981 = vld [vmem:[%s2961 + $0x98] sm:$0xff]
        %v2982 = vld [vmem:[%s2961 + $0xa0] sm:$0xff]
        %v2983 = vld [vmem:[%s2961 + $0xa8] sm:$0xff]
        %v2984 = vld [vmem:[%s2961 + $0xb0] sm:$0xff]
        %v2985 = vld [vmem:[%s2961 + $0xb8] sm:$0xff]
        %v2986 = vld [vmem:[%s2961 + $0xc0] sm:$0xff]
        %v2987 = vld [vmem:[%s2961 + $0xc8] sm:$0xff]
        %v2988 = vld [vmem:[%s2961 + $0xd0] sm:$0xff]
        %v2989 = vld [vmem:[%s2961 + $0xd8] sm:$0xff]
        %v2990 = vld [vmem:[%s2961 + $0xe0] sm:$0xff]
        %v2991 = vld [vmem:[%s2961 + $0xe8] sm:$0xff]
        %v2992 = vld [vmem:[%s2961 + $0xf0] sm:$0xff]
        %v2993 = vld [vmem:[%s2961 + $0xf8] sm:$0xff]
        %v2994 = vld [vmem:[%s2961 + $0x100] sm:$0xff]
        %v2995 = vld [vmem:[%s2961 + $0x108] sm:$0xff]
        %v2996 = vld [vmem:[%s2961 + $0x110] sm:$0xff]
        %v2997 = vld [vmem:[%s2961 + $0x118] sm:$0xff]
        %v2998 = vld [vmem:[%s2961 + $0x120] sm:$0xff]
        %v2999 = vld [vmem:[%s2961 + $0x128] sm:$0xff]
        %v3000 = vld [vmem:[%s2961 + $0x130] sm:$0xff]
        %v3001 = vld [vmem:[%s2961 + $0x138] sm:$0xff]
        %v3002 = vld [vmem:[%s2961 + $0x140] sm:$0xff]
        %v3003 = vld [vmem:[%s2961 + $0x148] sm:$0xff]
        %v3004 = vld [vmem:[%s2961 + $0x150] sm:$0xff]
        %v3005 = vld [vmem:[%s2961 + $0x158] sm:$0xff]
        %v3006 = vld [vmem:[%s2961 + $0x160] sm:$0xff]
        %v3007 = vld [vmem:[%s2961 + $0x168] sm:$0xff]
        %v3008 = vld [vmem:[%s2961 + $0x170] sm:$0xff]
        %v3009 = vld [vmem:[%s2961 + $0x178] sm:$0xff]
        %v3010 = vld [vmem:[%s2961 + $0x180] sm:$0xff]
        %v3011 = vld [vmem:[%s2961 + $0x188] sm:$0xff]
        %v3012 = vld [vmem:[%s2961 + $0x190] sm:$0xff]
        %v3013 = vld [vmem:[%s2961 + $0x198] sm:$0xff]
        %v3014 = vld [vmem:[%s2961 + $0x1a0] sm:$0xff]
        %v3015 = vld [vmem:[%s2961 + $0x1a8] sm:$0xff]
        %v3016 = vld [vmem:[%s2961 + $0x1b0] sm:$0xff]
        %v3017 = vld [vmem:[%s2961 + $0x1b8] sm:$0xff]
        %v3018 = vld [vmem:[%s2961 + $0x1c0] sm:$0xff]
        %v3019 = vld [vmem:[%s2961 + $0x1c8] sm:$0xff]
        %v3020 = vld [vmem:[%s2961 + $0x1d0] sm:$0xff]
        %v3021 = vld [vmem:[%s2961 + $0x1d8] sm:$0xff]
        %v3022 = vld [vmem:[%s2961 + $0x1e0] sm:$0xff]
        %v3023 = vld [vmem:[%s2961 + $0x1e8] sm:$0xff]
        %v3024 = vld [vmem:[%s2961 + $0x1f0] sm:$0xff]
        %v3025 = vld [vmem:[%s2961 + $0x1f8] sm:$0xff]
        %v3026 = vld [vmem:[%s2961 + $0x200] sm:$0xff]
        %v3027 = vld [vmem:[%s2961 + $0x208] sm:$0xff]
        %v3028 = vld [vmem:[%s2961 + $0x210] sm:$0xff]
        %v3029 = vld [vmem:[%s2961 + $0x218] sm:$0xff]
        %v3030 = vld [vmem:[%s2961 + $0x220] sm:$0xff]
        %v3031 = vld [vmem:[%s2961 + $0x228] sm:$0xff]
        %v3032 = vld [vmem:[%s2961 + $0x230] sm:$0xff]
        %v3033 = vld [vmem:[%s2961 + $0x238] sm:$0xff]
        %v3034 = vld [vmem:[%s2961 + $0x240] sm:$0xff]
        %v3035 = vld [vmem:[%s2961 + $0x248] sm:$0xff]
        %v3036 = vld [vmem:[%s2961 + $0x250] sm:$0xff]
        %v3037 = vld [vmem:[%s2961 + $0x258] sm:$0xff]
        %v3038 = vld [vmem:[%s2961 + $0x260] sm:$0xff]
        %v3039 = vld [vmem:[%s2961 + $0x268] sm:$0xff]
        %v3040 = vld [vmem:[%s2961 + $0x270] sm:$0xff]
        %v3041 = vld [vmem:[%s2961 + $0x278] sm:$0xff]
        %v3042 = vrot.slane %v1411, 6
        %v3043 = vrot.slane %v1412, 6
        %v3045 = vsel %vm1494, %v3043, 0
        %3047 = vmatprep.subr.mxu0 %v2963
        %3048 = vmatpush1.msra.mxu0 %v2962
        %3049 = vmatprep.subr.mxu0 %v2967
        %3050 = vmatpush1.msra.mxu0 %v2966
        %3051 = vmatprep.subr.mxu0 %v2971
        %3052 = vmatpush1.msra.mxu0 %v2970
        %3053 = vmatprep.subr.mxu0 %v2975
        %3054 = vmatpush1.msra.mxu0 %v2974
        %3055 = vmatprep.subr.mxu0 %v2979
        %3056 = vmatpush1.msra.mxu0 %v2978
        %3057 = vmatprep.subr.mxu0 %v2983
        %3058 = vmatpush1.msra.mxu0 %v2982
        %3059 = vmatprep.subr.mxu0 %v2987
        %3060 = vmatpush1.msra.mxu0 %v2986
        %3061 = vmatprep.subr.mxu0 %v2991
        %3062 = vmatpush1.msra.mxu0 %v2990
        %3063 = vmatprep.subr.mxu0 %v2995
        %3064 = vmatpush1.msra.mxu0 %v2994
        %3065 = vmatprep.subr.mxu0 %v2999
        %3066 = vmatpush1.msra.mxu0 %v2998
        %3067 = vmatprep.subr.mxu0 %v3003
        %3068 = vmatpush1.msra.mxu0 %v3002
        %3069 = vmatprep.subr.mxu0 %v3007
        %3070 = vmatpush1.msra.mxu0 %v3006
        %3071 = vmatprep.subr.mxu0 %v3011
        %3072 = vmatpush1.msra.mxu0 %v3010
        %3073 = vmatprep.subr.mxu0 %v3015
        %3074 = vmatpush1.msra.mxu0 %v3014
        %3075 = vmatprep.subr.mxu0 %v3019
        %3076 = vmatpush1.msra.mxu0 %v3018
        %3077 = vmatprep.subr.mxu0 %v3023
        %3078 = vmatpush1.msra.mxu0 %v3022
        %3079 = vmatprep.subr.mxu0 %v3027
        %3080 = vmatpush1.msra.mxu0 %v3026
        %3081 = vmatprep.subr.mxu0 %v3031
        %3082 = vmatpush1.msra.mxu0 %v3030
        %3083 = vmatprep.subr.mxu0 %v3035
        %3084 = vmatpush1.msra.mxu0 %v3034
        %3085 = vmatprep.subr.mxu0 %v3039
        %3086 = vmatpush1.msra.mxu0 %v3038
        %3087 = vmatprep.subr.mxu0 0.0
        %3088 = vmatpush1.msra.mxu0 0.0
        %3089 = vmatprep.subr.mxu0 0.0
        %3090 = vmatpush1.msra.mxu0 0.0
        %3091 = vmatprep.subr.mxu0 0.0
        %3092 = vmatpush1.msra.mxu0 0.0
        %3093 = vmatprep.subr.mxu0 0.0
        %3094 = vmatpush1.msra.mxu0 0.0
        %3095 = vmatprep.subr.mxu0 0.0
        %3096 = vmatpush1.msra.mxu0 0.0
        %3097 = vmatprep.subr.mxu0 0.0
        %3098 = vmatpush1.msra.mxu0 0.0
        %3099 = vmatprep.subr.mxu0 0.0
        %3100 = vmatpush1.msra.mxu0 0.0
        %3101 = vmatprep.subr.mxu0 0.0
        %3102 = vmatpush1.msra.mxu0 0.0
        %3103 = vmatprep.subr.mxu0 0.0
        %3104 = vmatpush1.msra.mxu0 0.0
        %3105 = vmatprep.subr.mxu0 0.0
        %3106 = vmatpush1.msra.mxu0 0.0
        %3107 = vmatprep.subr.mxu0 0.0
        %3108 = vmatpush1.msra.mxu0 0.0
        %3109 = vmatprep.subr.mxu0 0.0
        %3110 = vmatpush1.msra.mxu0 0.0
        %3111 = vmatprep.mubr.f32.mxu0 %v3045
        %3112 = vmatmul.mubr.f32.gmra.mrb[0].mxu0 %v3042
        %v3113 = vpop.f32.mrb[0].mxu0
        %v3114 = vadd.f32 0.0, %v3113
        %v3115 = vpop.f32.mrb[0].mxu0
        %v3116 = vadd.f32 0.0, %v3115
        %3117 = vdwg.mxu0
        %3118 = vmatprep.subr.mxu0 %v2965
        %3119 = vmatpush1.msra.mxu0 %v2964
        %3120 = vmatprep.subr.mxu0 %v2969
        %3121 = vmatpush1.msra.mxu0 %v2968
        %3122 = vmatprep.subr.mxu0 %v2973
        %3123 = vmatpush1.msra.mxu0 %v2972
        %3124 = vmatprep.subr.mxu0 %v2977
        %3125 = vmatpush1.msra.mxu0 %v2976
        %3126 = vmatprep.subr.mxu0 %v2981
        %3127 = vmatpush1.msra.mxu0 %v2980
        %3128 = vmatprep.subr.mxu0 %v2985
        %3129 = vmatpush1.msra.mxu0 %v2984
        %3130 = vmatprep.subr.mxu0 %v2989
        %3131 = vmatpush1.msra.mxu0 %v2988
        %3132 = vmatprep.subr.mxu0 %v2993
        %3133 = vmatpush1.msra.mxu0 %v2992
        %3134 = vmatprep.subr.mxu0 %v2997
        %3135 = vmatpush1.msra.mxu0 %v2996
        %3136 = vmatprep.subr.mxu0 %v3001
        %3137 = vmatpush1.msra.mxu0 %v3000
        %3138 = vmatprep.subr.mxu0 %v3005
        %3139 = vmatpush1.msra.mxu0 %v3004
        %3140 = vmatprep.subr.mxu0 %v3009
        %3141 = vmatpush1.msra.mxu0 %v3008
        %3142 = vmatprep.subr.mxu0 %v3013
        %3143 = vmatpush1.msra.mxu0 %v3012
        %3144 = vmatprep.subr.mxu0 %v3017
        %3145 = vmatpush1.msra.mxu0 %v3016
        %3146 = vmatprep.subr.mxu0 %v3021
        %3147 = vmatpush1.msra.mxu0 %v3020
        %3148 = vmatprep.subr.mxu0 %v3025
        %3149 = vmatpush1.msra.mxu0 %v3024
        %3150 = vmatprep.subr.mxu0 %v3029
        %3151 = vmatpush1.msra.mxu0 %v3028
        %3152 = vmatprep.subr.mxu0 %v3033
        %3153 = vmatpush1.msra.mxu0 %v3032
        %3154 = vmatprep.subr.mxu0 %v3037
        %3155 = vmatpush1.msra.mxu0 %v3036
        %3156 = vmatprep.subr.mxu0 %v3041
        %3157 = vmatpush1.msra.mxu0 %v3040
        %3158 = vmatprep.subr.mxu0 0.0
        %3159 = vmatpush1.msra.mxu0 0.0
        %3160 = vmatprep.subr.mxu0 0.0
        %3161 = vmatpush1.msra.mxu0 0.0
        %3162 = vmatprep.subr.mxu0 0.0
        %3163 = vmatpush1.msra.mxu0 0.0
        %3164 = vmatprep.subr.mxu0 0.0
        %3165 = vmatpush1.msra.mxu0 0.0
        %3166 = vmatprep.subr.mxu0 0.0
        %3167 = vmatpush1.msra.mxu0 0.0
        %3168 = vmatprep.subr.mxu0 0.0
        %3169 = vmatpush1.msra.mxu0 0.0
        %3170 = vmatprep.subr.mxu0 0.0
        %3171 = vmatpush1.msra.mxu0 0.0
        %3172 = vmatprep.subr.mxu0 0.0
        %3173 = vmatpush1.msra.mxu0 0.0
        %3174 = vmatprep.subr.mxu0 0.0
        %3175 = vmatpush1.msra.mxu0 0.0
        %3176 = vmatprep.subr.mxu0 0.0
        %3177 = vmatpush1.msra.mxu0 0.0
        %3178 = vmatprep.subr.mxu0 0.0
        %3179 = vmatpush1.msra.mxu0 0.0
        %3180 = vmatprep.subr.mxu0 0.0
        %3181 = vmatpush1.msra.mxu0 0.0
        %3182 = vmatprep.mubr.f32.mxu0 %v3045
        %3183 = vmatmul.mubr.f32.gmra.mrb[0].mxu0 %v3042
        %v3184 = vpop.f32.mrb[0].mxu0
        %v3185 = vadd.f32 0.0, %v3184
        %v3186 = vpop.f32.mrb[0].mxu0
        %v3187 = vadd.f32 0.0, %v3186
        %3188 = vdwg.mxu0
        %v3193 = vcombine.low %v3114, %v3116
        %v3194 = vcombine.low %v3185, %v3187
        %v3196 = vunpack.c.l.s4 1966171168
        %v3197 = vunpack.c.0.s8 %v3196
        %v3198 = vlaneseq
        %v3199 = vshrl.u32 %v3198, 7
        %v3200 = vsub.s32 %v3197, %v3199
        %v3201 = vrot.slane %v3193, %v3200
        %v3203 = vunpack.c.l.s4 1966171168
        %v3204 = vunpack.c.0.s8 %v3203
        %v3205 = vlaneseq
        %v3206 = vshrl.u32 %v3205, 7
        %v3207 = vsub.s32 %v3204, %v3206
        %v3208 = vrot.slane %v3194, %v3207
        %v3209 = vcombine.low %v3201, %v3208
        %v3211 = vunpack.c.l.s4 1966171168
        %v3212 = vunpack.c.0.s8 %v3211
        %v3213 = vlaneseq
        %v3214 = vshrl.u32 %v3213, 7
        %v3215 = vsub.s32 %v3212, %v3214
        %v3216 = vrot.slane %v3209, %v3215
        %v3218 = vadd.f32 %v2960, %v3216
        %s3219 = scalar_lea.vmem [#allocation13], 4480
        %v3220 = vld [vmem:[%s3219] sm:$0xff]
        %v3221 = vld [vmem:[%s3219 + $0x8] sm:$0xff]
        %v3222 = vld [vmem:[%s3219 + $0x10] sm:$0xff]
        %v3223 = vld [vmem:[%s3219 + $0x18] sm:$0xff]
        %v3224 = vld [vmem:[%s3219 + $0x20] sm:$0xff]
        %v3225 = vld [vmem:[%s3219 + $0x28] sm:$0xff]
        %v3226 = vld [vmem:[%s3219 + $0x30] sm:$0xff]
        %v3227 = vld [vmem:[%s3219 + $0x38] sm:$0xff]
        %v3228 = vld [vmem:[%s3219 + $0x40] sm:$0xff]
        %v3229 = vld [vmem:[%s3219 + $0x48] sm:$0xff]
        %v3230 = vld [vmem:[%s3219 + $0x50] sm:$0xff]
        %v3231 = vld [vmem:[%s3219 + $0x58] sm:$0xff]
        %v3232 = vld [vmem:[%s3219 + $0x60] sm:$0xff]
        %v3233 = vld [vmem:[%s3219 + $0x68] sm:$0xff]
        %v3234 = vld [vmem:[%s3219 + $0x70] sm:$0xff]
        %v3235 = vld [vmem:[%s3219 + $0x78] sm:$0xff]
        %v3236 = vld [vmem:[%s3219 + $0x80] sm:$0xff]
        %v3237 = vld [vmem:[%s3219 + $0x88] sm:$0xff]
        %v3238 = vld [vmem:[%s3219 + $0x90] sm:$0xff]
        %v3239 = vld [vmem:[%s3219 + $0x98] sm:$0xff]
        %v3240 = vld [vmem:[%s3219 + $0xa0] sm:$0xff]
        %v3241 = vld [vmem:[%s3219 + $0xa8] sm:$0xff]
        %v3242 = vld [vmem:[%s3219 + $0xb0] sm:$0xff]
        %v3243 = vld [vmem:[%s3219 + $0xb8] sm:$0xff]
        %v3244 = vld [vmem:[%s3219 + $0xc0] sm:$0xff]
        %v3245 = vld [vmem:[%s3219 + $0xc8] sm:$0xff]
        %v3246 = vld [vmem:[%s3219 + $0xd0] sm:$0xff]
        %v3247 = vld [vmem:[%s3219 + $0xd8] sm:$0xff]
        %v3248 = vld [vmem:[%s3219 + $0xe0] sm:$0xff]
        %v3249 = vld [vmem:[%s3219 + $0xe8] sm:$0xff]
        %v3250 = vld [vmem:[%s3219 + $0xf0] sm:$0xff]
        %v3251 = vld [vmem:[%s3219 + $0xf8] sm:$0xff]
        %v3252 = vld [vmem:[%s3219 + $0x100] sm:$0xff]
        %v3253 = vld [vmem:[%s3219 + $0x108] sm:$0xff]
        %v3254 = vld [vmem:[%s3219 + $0x110] sm:$0xff]
        %v3255 = vld [vmem:[%s3219 + $0x118] sm:$0xff]
        %v3256 = vld [vmem:[%s3219 + $0x120] sm:$0xff]
        %v3257 = vld [vmem:[%s3219 + $0x128] sm:$0xff]
        %v3258 = vld [vmem:[%s3219 + $0x130] sm:$0xff]
        %v3259 = vld [vmem:[%s3219 + $0x138] sm:$0xff]
        %v3260 = vld [vmem:[%s3219 + $0x140] sm:$0xff]
        %v3261 = vld [vmem:[%s3219 + $0x148] sm:$0xff]
        %v3262 = vld [vmem:[%s3219 + $0x150] sm:$0xff]
        %v3263 = vld [vmem:[%s3219 + $0x158] sm:$0xff]
        %v3264 = vld [vmem:[%s3219 + $0x160] sm:$0xff]
        %v3265 = vld [vmem:[%s3219 + $0x168] sm:$0xff]
        %v3266 = vld [vmem:[%s3219 + $0x170] sm:$0xff]
        %v3267 = vld [vmem:[%s3219 + $0x178] sm:$0xff]
        %v3268 = vld [vmem:[%s3219 + $0x180] sm:$0xff]
        %v3269 = vld [vmem:[%s3219 + $0x188] sm:$0xff]
        %v3270 = vld [vmem:[%s3219 + $0x190] sm:$0xff]
        %v3271 = vld [vmem:[%s3219 + $0x198] sm:$0xff]
        %v3272 = vld [vmem:[%s3219 + $0x1a0] sm:$0xff]
        %v3273 = vld [vmem:[%s3219 + $0x1a8] sm:$0xff]
        %v3274 = vld [vmem:[%s3219 + $0x1b0] sm:$0xff]
        %v3275 = vld [vmem:[%s3219 + $0x1b8] sm:$0xff]
        %v3276 = vld [vmem:[%s3219 + $0x1c0] sm:$0xff]
        %v3277 = vld [vmem:[%s3219 + $0x1c8] sm:$0xff]
        %v3278 = vld [vmem:[%s3219 + $0x1d0] sm:$0xff]
        %v3279 = vld [vmem:[%s3219 + $0x1d8] sm:$0xff]
        %v3280 = vld [vmem:[%s3219 + $0x1e0] sm:$0xff]
        %v3281 = vld [vmem:[%s3219 + $0x1e8] sm:$0xff]
        %v3282 = vld [vmem:[%s3219 + $0x1f0] sm:$0xff]
        %v3283 = vld [vmem:[%s3219 + $0x1f8] sm:$0xff]
        %v3284 = vld [vmem:[%s3219 + $0x200] sm:$0xff]
        %v3285 = vld [vmem:[%s3219 + $0x208] sm:$0xff]
        %v3286 = vld [vmem:[%s3219 + $0x210] sm:$0xff]
        %v3287 = vld [vmem:[%s3219 + $0x218] sm:$0xff]
        %v3288 = vld [vmem:[%s3219 + $0x220] sm:$0xff]
        %v3289 = vld [vmem:[%s3219 + $0x228] sm:$0xff]
        %v3290 = vld [vmem:[%s3219 + $0x230] sm:$0xff]
        %v3291 = vld [vmem:[%s3219 + $0x238] sm:$0xff]
        %v3292 = vld [vmem:[%s3219 + $0x240] sm:$0xff]
        %v3293 = vld [vmem:[%s3219 + $0x248] sm:$0xff]
        %v3294 = vld [vmem:[%s3219 + $0x250] sm:$0xff]
        %v3295 = vld [vmem:[%s3219 + $0x258] sm:$0xff]
        %v3296 = vld [vmem:[%s3219 + $0x260] sm:$0xff]
        %v3297 = vld [vmem:[%s3219 + $0x268] sm:$0xff]
        %v3298 = vld [vmem:[%s3219 + $0x270] sm:$0xff]
        %v3299 = vld [vmem:[%s3219 + $0x278] sm:$0xff]
        %v3300 = vrot.slane %v1411, 7
        %v3301 = vrot.slane %v1412, 7
        %v3303 = vsel %vm1494, %v3301, 0
        %3305 = vmatprep.subr.mxu0 %v3221
        %3306 = vmatpush1.msra.mxu0 %v3220
        %3307 = vmatprep.subr.mxu0 %v3225
        %3308 = vmatpush1.msra.mxu0 %v3224
        %3309 = vmatprep.subr.mxu0 %v3229
        %3310 = vmatpush1.msra.mxu0 %v3228
        %3311 = vmatprep.subr.mxu0 %v3233
        %3312 = vmatpush1.msra.mxu0 %v3232
        %3313 = vmatprep.subr.mxu0 %v3237
        %3314 = vmatpush1.msra.mxu0 %v3236
        %3315 = vmatprep.subr.mxu0 %v3241
        %3316 = vmatpush1.msra.mxu0 %v3240
        %3317 = vmatprep.subr.mxu0 %v3245
        %3318 = vmatpush1.msra.mxu0 %v3244
        %3319 = vmatprep.subr.mxu0 %v3249
        %3320 = vmatpush1.msra.mxu0 %v3248
        %3321 = vmatprep.subr.mxu0 %v3253
        %3322 = vmatpush1.msra.mxu0 %v3252
        %3323 = vmatprep.subr.mxu0 %v3257
        %3324 = vmatpush1.msra.mxu0 %v3256
        %3325 = vmatprep.subr.mxu0 %v3261
        %3326 = vmatpush1.msra.mxu0 %v3260
        %3327 = vmatprep.subr.mxu0 %v3265
        %3328 = vmatpush1.msra.mxu0 %v3264
        %3329 = vmatprep.subr.mxu0 %v3269
        %3330 = vmatpush1.msra.mxu0 %v3268
        %3331 = vmatprep.subr.mxu0 %v3273
        %3332 = vmatpush1.msra.mxu0 %v3272
        %3333 = vmatprep.subr.mxu0 %v3277
        %3334 = vmatpush1.msra.mxu0 %v3276
        %3335 = vmatprep.subr.mxu0 %v3281
        %3336 = vmatpush1.msra.mxu0 %v3280
        %3337 = vmatprep.subr.mxu0 %v3285
        %3338 = vmatpush1.msra.mxu0 %v3284
        %3339 = vmatprep.subr.mxu0 %v3289
        %3340 = vmatpush1.msra.mxu0 %v3288
        %3341 = vmatprep.subr.mxu0 %v3293
        %3342 = vmatpush1.msra.mxu0 %v3292
        %3343 = vmatprep.subr.mxu0 %v3297
        %3344 = vmatpush1.msra.mxu0 %v3296
        %3345 = vmatprep.subr.mxu0 0.0
        %3346 = vmatpush1.msra.mxu0 0.0
        %3347 = vmatprep.subr.mxu0 0.0
        %3348 = vmatpush1.msra.mxu0 0.0
        %3349 = vmatprep.subr.mxu0 0.0
        %3350 = vmatpush1.msra.mxu0 0.0
        %3351 = vmatprep.subr.mxu0 0.0
        %3352 = vmatpush1.msra.mxu0 0.0
        %3353 = vmatprep.subr.mxu0 0.0
        %3354 = vmatpush1.msra.mxu0 0.0
        %3355 = vmatprep.subr.mxu0 0.0
        %3356 = vmatpush1.msra.mxu0 0.0
        %3357 = vmatprep.subr.mxu0 0.0
        %3358 = vmatpush1.msra.mxu0 0.0
        %3359 = vmatprep.subr.mxu0 0.0
        %3360 = vmatpush1.msra.mxu0 0.0
        %3361 = vmatprep.subr.mxu0 0.0
        %3362 = vmatpush1.msra.mxu0 0.0
        %3363 = vmatprep.subr.mxu0 0.0
        %3364 = vmatpush1.msra.mxu0 0.0
        %3365 = vmatprep.subr.mxu0 0.0
        %3366 = vmatpush1.msra.mxu0 0.0
        %3367 = vmatprep.subr.mxu0 0.0
        %3368 = vmatpush1.msra.mxu0 0.0
        %3369 = vmatprep.mubr.f32.mxu0 %v3303
        %3370 = vmatmul.mubr.f32.gmra.mrb[0].mxu0 %v3300
        %v3371 = vpop.f32.mrb[0].mxu0
        %v3372 = vadd.f32 0.0, %v3371
        %v3373 = vpop.f32.mrb[0].mxu0
        %v3374 = vadd.f32 0.0, %v3373
        %3375 = vdwg.mxu0
        %3376 = vmatprep.subr.mxu0 %v3223
        %3377 = vmatpush1.msra.mxu0 %v3222
        %3378 = vmatprep.subr.mxu0 %v3227
        %3379 = vmatpush1.msra.mxu0 %v3226
        %3380 = vmatprep.subr.mxu0 %v3231
        %3381 = vmatpush1.msra.mxu0 %v3230
        %3382 = vmatprep.subr.mxu0 %v3235
        %3383 = vmatpush1.msra.mxu0 %v3234
        %3384 = vmatprep.subr.mxu0 %v3239
        %3385 = vmatpush1.msra.mxu0 %v3238
        %3386 = vmatprep.subr.mxu0 %v3243
        %3387 = vmatpush1.msra.mxu0 %v3242
        %3388 = vmatprep.subr.mxu0 %v3247
        %3389 = vmatpush1.msra.mxu0 %v3246
        %3390 = vmatprep.subr.mxu0 %v3251
        %3391 = vmatpush1.msra.mxu0 %v3250
        %3392 = vmatprep.subr.mxu0 %v3255
        %3393 = vmatpush1.msra.mxu0 %v3254
        %3394 = vmatprep.subr.mxu0 %v3259
        %3395 = vmatpush1.msra.mxu0 %v3258
        %3396 = vmatprep.subr.mxu0 %v3263
        %3397 = vmatpush1.msra.mxu0 %v3262
        %3398 = vmatprep.subr.mxu0 %v3267
        %3399 = vmatpush1.msra.mxu0 %v3266
        %3400 = vmatprep.subr.mxu0 %v3271
        %3401 = vmatpush1.msra.mxu0 %v3270
        %3402 = vmatprep.subr.mxu0 %v3275
        %3403 = vmatpush1.msra.mxu0 %v3274
        %3404 = vmatprep.subr.mxu0 %v3279
        %3405 = vmatpush1.msra.mxu0 %v3278
        %3406 = vmatprep.subr.mxu0 %v3283
        %3407 = vmatpush1.msra.mxu0 %v3282
        %3408 = vmatprep.subr.mxu0 %v3287
        %3409 = vmatpush1.msra.mxu0 %v3286
        %3410 = vmatprep.subr.mxu0 %v3291
        %3411 = vmatpush1.msra.mxu0 %v3290
        %3412 = vmatprep.subr.mxu0 %v3295
        %3413 = vmatpush1.msra.mxu0 %v3294
        %3414 = vmatprep.subr.mxu0 %v3299
        %3415 = vmatpush1.msra.mxu0 %v3298
        %3416 = vmatprep.subr.mxu0 0.0
        %3417 = vmatpush1.msra.mxu0 0.0
        %3418 = vmatprep.subr.mxu0 0.0
        %3419 = vmatpush1.msra.mxu0 0.0
        %3420 = vmatprep.subr.mxu0 0.0
        %3421 = vmatpush1.msra.mxu0 0.0
        %3422 = vmatprep.subr.mxu0 0.0
        %3423 = vmatpush1.msra.mxu0 0.0
        %3424 = vmatprep.subr.mxu0 0.0
        %3425 = vmatpush1.msra.mxu0 0.0
        %3426 = vmatprep.subr.mxu0 0.0
        %3427 = vmatpush1.msra.mxu0 0.0
        %3428 = vmatprep.subr.mxu0 0.0
        %3429 = vmatpush1.msra.mxu0 0.0
        %3430 = vmatprep.subr.mxu0 0.0
        %3431 = vmatpush1.msra.mxu0 0.0
        %3432 = vmatprep.subr.mxu0 0.0
        %3433 = vmatpush1.msra.mxu0 0.0
        %3434 = vmatprep.subr.mxu0 0.0
        %3435 = vmatpush1.msra.mxu0 0.0
        %3436 = vmatprep.subr.mxu0 0.0
        %3437 = vmatpush1.msra.mxu0 0.0
        %3438 = vmatprep.subr.mxu0 0.0
        %3439 = vmatpush1.msra.mxu0 0.0
        %3440 = vmatprep.mubr.f32.mxu0 %v3303
        %3441 = vmatmul.mubr.f32.gmra.mrb[0].mxu0 %v3300
        %v3442 = vpop.f32.mrb[0].mxu0
        %v3443 = vadd.f32 0.0, %v3442
        %v3444 = vpop.f32.mrb[0].mxu0
        %v3445 = vadd.f32 0.0, %v3444
        %3446 = vdwg.mxu0
        %v3451 = vcombine.low %v3372, %v3374
        %v3452 = vcombine.low %v3443, %v3445
        %v3454 = vunpack.c.l.s4 1966171168
        %v3455 = vunpack.c.0.s8 %v3454
        %v3456 = vlaneseq
        %v3457 = vshrl.u32 %v3456, 7
        %v3458 = vsub.s32 %v3455, %v3457
        %v3459 = vrot.slane %v3451, %v3458
        %v3461 = vunpack.c.l.s4 1966171168
        %v3462 = vunpack.c.0.s8 %v3461
        %v3463 = vlaneseq
        %v3464 = vshrl.u32 %v3463, 7
        %v3465 = vsub.s32 %v3462, %v3464
        %v3466 = vrot.slane %v3452, %v3465
        %v3467 = vcombine.low %v3459, %v3466
        %v3469 = vunpack.c.l.s4 1966171168
        %v3470 = vunpack.c.0.s8 %v3469
        %v3471 = vlaneseq
        %v3472 = vshrl.u32 %v3471, 7
        %v3473 = vsub.s32 %v3470, %v3472
        %v3474 = vrot.slane %v3467, %v3473
        %v3476 = vadd.f32 %v3218, %v3474
        %vm3477 = vcmp.ge.f32.partialorder %v3476, 0.0
        %v3478 = vmul.f32 %v3476, 0.01
        %v3479 = vsel %vm3477, %v3476, %v3478
        %v3480 = vld [vmem:[%s15] sm:$0xff]
        %v3481 = vld [vmem:[%s15 + $0x8] sm:$0xff]
        %v3482 = vld [vmem:[%s15 + $0x10] sm:$0xff]
        %v3483 = vld [vmem:[%s15 + $0x18] sm:$0xff]
        %v3484 = vld [vmem:[%s15 + $0x20] sm:$0xff]
        %v3485 = vld [vmem:[%s15 + $0x28] sm:$0xff]
        %v3486 = vld [vmem:[%s15 + $0x30] sm:$0xff]
        %v3487 = vld [vmem:[%s15 + $0x38] sm:$0xff]
        %v3488 = vld [vmem:[%s15 + $0x40] sm:$0xff]
        %v3489 = vld [vmem:[%s15 + $0x48] sm:$0xff]
        %v3490 = vld [vmem:[%s15 + $0x50] sm:$0xff]
        %v3491 = vld [vmem:[%s15 + $0x58] sm:$0xff]
        %v3492 = vld [vmem:[%s15 + $0x60] sm:$0xff]
        %v3493 = vld [vmem:[%s15 + $0x68] sm:$0xff]
        %v3494 = vld [vmem:[%s15 + $0x70] sm:$0xff]
        %v3495 = vld [vmem:[%s15 + $0x78] sm:$0xff]
        %v3496 = vld [vmem:[%s15 + $0x80] sm:$0xff]
        %v3497 = vld [vmem:[%s15 + $0x88] sm:$0xff]
        %v3498 = vld [vmem:[%s15 + $0x90] sm:$0xff]
        %v3499 = vld [vmem:[%s15 + $0x98] sm:$0xff]
        %v3500 = vld [vmem:[%s15 + $0xa0] sm:$0xff]
        %v3501 = vld [vmem:[%s15 + $0xa8] sm:$0xff]
        %v3502 = vld [vmem:[%s15 + $0xb0] sm:$0xff]
        %v3503 = vld [vmem:[%s15 + $0xb8] sm:$0xff]
        %v3504 = vld [vmem:[%s15 + $0xc0] sm:$0xff]
        %v3505 = vld [vmem:[%s15 + $0xc8] sm:$0xff]
        %v3506 = vld [vmem:[%s15 + $0xd0] sm:$0xff]
        %v3507 = vld [vmem:[%s15 + $0xd8] sm:$0xff]
        %v3508 = vld [vmem:[%s15 + $0xe0] sm:$0xff]
        %v3509 = vld [vmem:[%s15 + $0xe8] sm:$0xff]
        %v3510 = vld [vmem:[%s15 + $0xf0] sm:$0xff]
        %v3511 = vld [vmem:[%s15 + $0xf8] sm:$0xff]
        %v3512 = vld [vmem:[%s15 + $0x100] sm:$0xff]
        %v3513 = vld [vmem:[%s15 + $0x108] sm:$0xff]
        %v3514 = vld [vmem:[%s15 + $0x110] sm:$0xff]
        %v3515 = vld [vmem:[%s15 + $0x118] sm:$0xff]
        %v3516 = vld [vmem:[%s15 + $0x120] sm:$0xff]
        %v3517 = vld [vmem:[%s15 + $0x128] sm:$0xff]
        %v3518 = vld [vmem:[%s15 + $0x130] sm:$0xff]
        %v3519 = vld [vmem:[%s15 + $0x138] sm:$0xff]
        %v3520 = vld [vmem:[%s15 + $0x140] sm:$0xff]
        %v3521 = vld [vmem:[%s15 + $0x148] sm:$0xff]
        %v3522 = vld [vmem:[%s15 + $0x150] sm:$0xff]
        %v3523 = vld [vmem:[%s15 + $0x158] sm:$0xff]
        %v3524 = vld [vmem:[%s15 + $0x160] sm:$0xff]
        %v3525 = vld [vmem:[%s15 + $0x168] sm:$0xff]
        %v3526 = vld [vmem:[%s15 + $0x170] sm:$0xff]
        %v3527 = vld [vmem:[%s15 + $0x178] sm:$0xff]
        %v3528 = vld [vmem:[%s15 + $0x180] sm:$0xff]
        %v3529 = vld [vmem:[%s15 + $0x188] sm:$0xff]
        %v3530 = vld [vmem:[%s15 + $0x190] sm:$0xff]
        %v3531 = vld [vmem:[%s15 + $0x198] sm:$0xff]
        %v3532 = vld [vmem:[%s15 + $0x1a0] sm:$0xff]
        %v3533 = vld [vmem:[%s15 + $0x1a8] sm:$0xff]
        %v3534 = vld [vmem:[%s15 + $0x1b0] sm:$0xff]
        %v3535 = vld [vmem:[%s15 + $0x1b8] sm:$0xff]
        %v3536 = vld [vmem:[%s15 + $0x1c0] sm:$0xff]
        %v3537 = vld [vmem:[%s15 + $0x1c8] sm:$0xff]
        %v3538 = vld [vmem:[%s15 + $0x1d0] sm:$0xff]
        %v3539 = vld [vmem:[%s15 + $0x1d8] sm:$0xff]
        %v3540 = vld [vmem:[%s15 + $0x1e0] sm:$0xff]
        %v3541 = vld [vmem:[%s15 + $0x1e8] sm:$0xff]
        %v3542 = vld [vmem:[%s15 + $0x1f0] sm:$0xff]
        %v3543 = vld [vmem:[%s15 + $0x1f8] sm:$0xff]
        %v3544 = vld [vmem:[#allocation2] sm:$0x1]
        %v3546 = vlaneseq
        %v3547 = vshrl.u32 %v3546, 7
        %v3548 = vsub.s32 0, %v3547
        %v3549 = vrot.slane %v3479, %v3548
        %v3550 = vlaneseq
        %v3551 = vshrl.u32 %v3550, 7
        %v3552 = vsub.s32 1, %v3551
        %v3553 = vrot.slane %v3479, %v3552
        %v3554 = vlaneseq
        %v3555 = vshrl.u32 %v3554, 7
        %v3556 = vsub.s32 2, %v3555
        %v3557 = vrot.slane %v3479, %v3556
        %v3558 = vlaneseq
        %v3559 = vshrl.u32 %v3558, 7
        %v3560 = vsub.s32 3, %v3559
        %v3561 = vrot.slane %v3479, %v3560
        %3566 = vmatprep.subr.mxu0 0.0
        %3567 = vmatpush1.msra.mxu0 %v3480
        %3568 = vmatprep.subr.mxu0 0.0
        %3569 = vmatpush1.msra.mxu0 %v3481
        %3570 = vmatprep.subr.mxu0 0.0
        %3571 = vmatpush1.msra.mxu0 %v3482
        %3572 = vmatprep.subr.mxu0 0.0
        %3573 = vmatpush1.msra.mxu0 %v3483
        %3574 = vmatprep.subr.mxu0 0.0
        %3575 = vmatpush1.msra.mxu0 %v3484
        %3576 = vmatprep.subr.mxu0 0.0
        %3577 = vmatpush1.msra.mxu0 %v3485
        %3578 = vmatprep.subr.mxu0 0.0
        %3579 = vmatpush1.msra.mxu0 %v3486
        %3580 = vmatprep.subr.mxu0 0.0
        %3581 = vmatpush1.msra.mxu0 %v3487
        %3582 = vmatprep.subr.mxu0 0.0
        %3583 = vmatpush1.msra.mxu0 %v3488
        %3584 = vmatprep.subr.mxu0 0.0
        %3585 = vmatpush1.msra.mxu0 %v3489
        %3586 = vmatprep.subr.mxu0 0.0
        %3587 = vmatpush1.msra.mxu0 %v3490
        %3588 = vmatprep.subr.mxu0 0.0
        %3589 = vmatpush1.msra.mxu0 %v3491
        %3590 = vmatprep.subr.mxu0 0.0
        %3591 = vmatpush1.msra.mxu0 %v3492
        %3592 = vmatprep.subr.mxu0 0.0
        %3593 = vmatpush1.msra.mxu0 %v3493
        %3594 = vmatprep.subr.mxu0 0.0
        %3595 = vmatpush1.msra.mxu0 %v3494
        %3596 = vmatprep.subr.mxu0 0.0
        %3597 = vmatpush1.msra.mxu0 %v3495
        %3598 = vmatprep.subr.mxu0 0.0
        %3599 = vmatpush1.msra.mxu0 %v3496
        %3600 = vmatprep.subr.mxu0 0.0
        %3601 = vmatpush1.msra.mxu0 %v3497
        %3602 = vmatprep.subr.mxu0 0.0
        %3603 = vmatpush1.msra.mxu0 %v3498
        %3604 = vmatprep.subr.mxu0 0.0
        %3605 = vmatpush1.msra.mxu0 %v3499
        %3606 = vmatprep.subr.mxu0 0.0
        %3607 = vmatpush1.msra.mxu0 %v3500
        %3608 = vmatprep.subr.mxu0 0.0
        %3609 = vmatpush1.msra.mxu0 %v3501
        %3610 = vmatprep.subr.mxu0 0.0
        %3611 = vmatpush1.msra.mxu0 %v3502
        %3612 = vmatprep.subr.mxu0 0.0
        %3613 = vmatpush1.msra.mxu0 %v3503
        %3614 = vmatprep.subr.mxu0 0.0
        %3615 = vmatpush1.msra.mxu0 %v3504
        %3616 = vmatprep.subr.mxu0 0.0
        %3617 = vmatpush1.msra.mxu0 %v3505
        %3618 = vmatprep.subr.mxu0 0.0
        %3619 = vmatpush1.msra.mxu0 %v3506
        %3620 = vmatprep.subr.mxu0 0.0
        %3621 = vmatpush1.msra.mxu0 %v3507
        %3622 = vmatprep.subr.mxu0 0.0
        %3623 = vmatpush1.msra.mxu0 %v3508
        %3624 = vmatprep.subr.mxu0 0.0
        %3625 = vmatpush1.msra.mxu0 %v3509
        %3626 = vmatprep.subr.mxu0 0.0
        %3627 = vmatpush1.msra.mxu0 %v3510
        %3628 = vmatprep.subr.mxu0 0.0
        %3629 = vmatpush1.msra.mxu0 %v3511
        %3630 = vmatprep.mubr.f32.mxu0 %v3553
        %3631 = vmatmul.mubr.f32.gmra.mrb[0].mxu0 %v3549
        %v3632 = vpop.f32.mrb[0].mxu0
        %v3633 = vadd.f32 %v3544, %v3632
        %v3634 = vpop.f32.mrb[0].mxu0
        %3635 = vdwg.mxu0
        %3636 = vmatprep.subr.mxu0 0.0
        %3637 = vmatpush1.msra.mxu0 %v3512
        %3638 = vmatprep.subr.mxu0 0.0
        %3639 = vmatpush1.msra.mxu0 %v3513
        %3640 = vmatprep.subr.mxu0 0.0
        %3641 = vmatpush1.msra.mxu0 %v3514
        %3642 = vmatprep.subr.mxu0 0.0
        %3643 = vmatpush1.msra.mxu0 %v3515
        %3644 = vmatprep.subr.mxu0 0.0
        %3645 = vmatpush1.msra.mxu0 %v3516
        %3646 = vmatprep.subr.mxu0 0.0
        %3647 = vmatpush1.msra.mxu0 %v3517
        %3648 = vmatprep.subr.mxu0 0.0
        %3649 = vmatpush1.msra.mxu0 %v3518
        %3650 = vmatprep.subr.mxu0 0.0
        %3651 = vmatpush1.msra.mxu0 %v3519
        %3652 = vmatprep.subr.mxu0 0.0
        %3653 = vmatpush1.msra.mxu0 %v3520
        %3654 = vmatprep.subr.mxu0 0.0
        %3655 = vmatpush1.msra.mxu0 %v3521
        %3656 = vmatprep.subr.mxu0 0.0
        %3657 = vmatpush1.msra.mxu0 %v3522
        %3658 = vmatprep.subr.mxu0 0.0
        %3659 = vmatpush1.msra.mxu0 %v3523
        %3660 = vmatprep.subr.mxu0 0.0
        %3661 = vmatpush1.msra.mxu0 %v3524
        %3662 = vmatprep.subr.mxu0 0.0
        %3663 = vmatpush1.msra.mxu0 %v3525
        %3664 = vmatprep.subr.mxu0 0.0
        %3665 = vmatpush1.msra.mxu0 %v3526
        %3666 = vmatprep.subr.mxu0 0.0
        %3667 = vmatpush1.msra.mxu0 %v3527
        %3668 = vmatprep.subr.mxu0 0.0
        %3669 = vmatpush1.msra.mxu0 %v3528
        %3670 = vmatprep.subr.mxu0 0.0
        %3671 = vmatpush1.msra.mxu0 %v3529
        %3672 = vmatprep.subr.mxu0 0.0
        %3673 = vmatpush1.msra.mxu0 %v3530
        %3674 = vmatprep.subr.mxu0 0.0
        %3675 = vmatpush1.msra.mxu0 %v3531
        %3676 = vmatprep.subr.mxu0 0.0
        %3677 = vmatpush1.msra.mxu0 %v3532
        %3678 = vmatprep.subr.mxu0 0.0
        %3679 = vmatpush1.msra.mxu0 %v3533
        %3680 = vmatprep.subr.mxu0 0.0
        %3681 = vmatpush1.msra.mxu0 %v3534
        %3682 = vmatprep.subr.mxu0 0.0
        %3683 = vmatpush1.msra.mxu0 %v3535
        %3684 = vmatprep.subr.mxu0 0.0
        %3685 = vmatpush1.msra.mxu0 %v3536
        %3686 = vmatprep.subr.mxu0 0.0
        %3687 = vmatpush1.msra.mxu0 %v3537
        %3688 = vmatprep.subr.mxu0 0.0
        %3689 = vmatpush1.msra.mxu0 %v3538
        %3690 = vmatprep.subr.mxu0 0.0
        %3691 = vmatpush1.msra.mxu0 %v3539
        %3692 = vmatprep.subr.mxu0 0.0
        %3693 = vmatpush1.msra.mxu0 %v3540
        %3694 = vmatprep.subr.mxu0 0.0
        %3695 = vmatpush1.msra.mxu0 %v3541
        %3696 = vmatprep.subr.mxu0 0.0
        %3697 = vmatpush1.msra.mxu0 %v3542
        %3698 = vmatprep.subr.mxu0 0.0
        %3699 = vmatpush1.msra.mxu0 %v3543
        %3700 = vmatprep.mubr.f32.mxu0 %v3561
        %3701 = vmatmul.mubr.f32.gmra.mrb[0].mxu0 %v3557
        %v3702 = vpop.f32.mrb[0].mxu0
        %v3703 = vadd.f32 %v3633, %v3702
        %v3704 = vpop.f32.mrb[0].mxu0
        %3705 = vdwg.mxu0
        %vm3706 = vcmask 0
        %3707 = vst.msk [vmem:[%s658] sm:$0x1] %vm3706, %v3703
        %p3708 = scmp.lt.s32.totalorder %s37, 1
        %s3709 = scalar_select %p3708, %s37, 1
        %s3710 = scalar_lea.vmem %s17, %s3709
        // Predicated region
        $region121: #{tpu_custom_call.1} parent=87 // pred_check
          %p3711 = pneg %p417
        $region122: #{tpu_custom_call.1} parent=87 // pred_check_branch
          %3713 = sbr.rel (%p3711) target = $region124
        $region123: #{tpu_custom_call.1} parent=87 // pred_region
          _
        $region124: #{tpu_custom_call.1} parent=87 // pred_fallthru
          _
      $region88: #{tpu_custom_call.1} parent=5 // pred_fallthru
        _
      %p3714 = scmp.le.s32.totalorder 2, %s32
      // Predicated region
      $region125: #{tpu_custom_call.1} parent=5 // pred_check
        %p3715 = pneg %p3714
      $region126: #{tpu_custom_call.1} parent=5 // pred_check_branch
        %3717 = sbr.rel (%p3715) target = $region128
      $region127: #{tpu_custom_call.1} parent=5 // pred_region
        %s3718 = ssub.s32 %s32, 2
        // Predicated region
        $region129: #{tpu_custom_call.1} parent=127 // pred_check
          %p3719 = pneg %p423
        $region130: #{tpu_custom_call.1} parent=127 // pred_check_branch
          %3721 = sbr.rel (%p3719) target = $region132
        $region131: #{tpu_custom_call.1} parent=127 // pred_region
          %p3722 = scmp.lt.s32.totalorder %s38, 1
          %s3723 = scalar_select %p3722, %s38, 1
          %s3724 = scalar_lea.vmem %s17, %s3723
        $region132: #{tpu_custom_call.1} parent=127 // pred_fallthru
          _
      $region128: #{tpu_custom_call.1} parent=5 // pred_fallthru
        _
    $region6: #{tpu_custom_call.1} parent=1 // loop_footer
      %s36 = sadd.s32 1, %s32
    $region7: #{tpu_custom_call.1} parent=1 // loop_footer_branch
      %31 = sbr.rel target = $region3
    $region8: #{tpu_custom_call.1} parent=1 // loop_exit
      _
    %3725 = vsyncpa [#allocation4], 1
    %s3726 = scalar_lea.sflag [#allocation4], 1
    %3727 = vsyncpa %s3726, 1
    %3728 = vsyncpa [#allocation6], 1
    %3729 = vsyncpa [#allocation9], 1
    %3730 = vsyncpa [#allocation12], 1
    %3731 = vsyncpa [#allocation15], 1

</llo_original>
